<compile_context>
chip_gen: v6e
topology: v6e:2x2x1
jax: 0.10.0
libtpu: 0.0.40
codegen_flags: <defaults>
</compile_context>

<pallas_src>
import functools
import math

import jax
import jax.numpy as jnp
from jax.experimental import pallas as pl
from jax.experimental.pallas import tpu as pltpu


def encoder_kernel(x_ref, pos_qk_ref,
                   wqkv_ref, bqkv_ref, wo_ref, bo_ref,
                   w1_ref, b1_ref, w2_ref, b2_ref,
                   g1_ref, be1_ref, g2_ref, be2_ref,
                   gf_ref, bf_ref,
                   out_ref, attn_ref,
                   ctx_scratch,
                   *, num_layers, num_heads, eps, q_block):
    BT, L, D = x_ref.shape                  # batch tile, sequence, feature
    R = BT * L                              # flattened row count
    H = num_heads
    dh = D // H
    inv_d = 1.0 / D
    scale = 1.0 / math.sqrt(dh)
    bf16 = jnp.bfloat16

    def layer_norm(h, g, b):
        # f32 math; mean via precomputed 1/D (no divide).
        mu = jnp.sum(h, axis=-1, keepdims=True) * inv_d
        c = h - mu
        var = jnp.sum(c * c, axis=-1, keepdims=True) * inv_d
        return c * jax.lax.rsqrt(var + eps) * g + b

    # Running activation, kept as a lane-friendly 2-D (B*L, D) row slab.
    x = x_ref[...].astype(jnp.float32).reshape(R, D)

    for l in range(num_layers):                     # static unroll over layers
        # ---- fused QKV projection: one (R,D)x(D,3D) MXU pass --------------
        qkv = jnp.dot(x.astype(bf16), wqkv_ref[l],
                      preferred_element_type=jnp.float32) + bqkv_ref[l]     # (R, 3D)

        # pos_embed feeds only q/k; the (L, 2D) correction (pos @ [Wq|Wk]) is
        # batch-independent and was precomputed in the wrapper.
        qk = qkv[:, :2 * D].reshape(BT, L, 2 * D) + pos_qk_ref[l][None]     # (BT,L,2D)
        q3 = (qk[..., :D] * scale).astype(bf16)     # fold 1/sqrt(dh) into q once
        k3 = qk[..., D:].astype(bf16)
        v3 = qkv[:, 2 * D:].reshape(BT, L, D).astype(bf16)

        # ---- attention: per-head static loop, tiled over query blocks -----
        # Per-head probabilities are written straight to attn_ref; per-head
        # context goes into the ctx VMEM scratch slab (no stack/concat).
        for h in range(H):
            hsl = slice(h * dh, (h + 1) * dh)
            kh = k3[..., hsl]                       # (BT, L, dh)
            vh = v3[..., hsl]
            for q0 in range(0, L, q_block):
                qs = slice(q0, q0 + q_block)
                qh = q3[:, qs, hsl]                 # (BT, Tq, dh)
                s = jnp.einsum('bqd,bkd->bqk', qh, kh,
                               preferred_element_type=jnp.float32)          # (BT,Tq,L)
                s = s - jnp.max(s, axis=-1, keepdims=True)
                p = jnp.exp(s)
                # approx reciprocal (EUP): rows sum to ~1, not exactly 1.
                p = p * pl.reciprocal(jnp.sum(p, axis=-1, keepdims=True),
                                      approx=True)
                attn_ref[l, :, h, qs] = p.astype(attn_ref.dtype)
                ctx_scratch[:, qs, hsl] = jnp.einsum(
                    'bqk,bkd->bqd', p.astype(bf16), vh,
                    preferred_element_type=jnp.float32)

        ctx = ctx_scratch[...].reshape(R, D)
        attn_out = jnp.dot(ctx.astype(bf16), wo_ref[l],
                           preferred_element_type=jnp.float32) + bo_ref[l]

        # residual + LayerNorm 1
        y = layer_norm(x + attn_out, g1_ref[l], be1_ref[l])

        # FFN
        f = jnp.dot(y.astype(bf16), w1_ref[l],
                    preferred_element_type=jnp.float32) + b1_ref[l]
        f = jnp.maximum(f, 0.0)
        f = jnp.dot(f.astype(bf16), w2_ref[l],
                    preferred_element_type=jnp.float32) + b2_ref[l]

        # residual + LayerNorm 2
        x = layer_norm(y + f, g2_ref[l], be2_ref[l])

    # Final LayerNorm fused into the same kernel (no extra HBM round trip).
    x = layer_norm(x, gf_ref[...], bf_ref[...])
    out_ref[...] = x.reshape(BT, L, D).astype(out_ref.dtype)


def encoder_forward(x, pos_embed, layer_params, norm_params, *, num_heads,
                    eps=1e-5, batch_block=None, q_block=256,
                    vmem_limit_bytes=48 * 1024 * 1024):
    """Mirrors Encoder.forward with conv_layers=None, norm=LayerNorm, attn_mask=None.

    Returns (x_out, [attn_layer_0, attn_layer_1, ...]); attention maps are bf16.
    vmem_limit_bytes: ~48-56 MiB is safe on v7x; raise toward ~100 MiB on v5e/v6e.
    """
    B, L, D = x.shape
    NL = len(layer_params)
    H = num_heads
    F_hidden = layer_params[0]["w1"].shape[1]
    bf16 = jnp.bfloat16

    # Stack per-layer parameters along a leading layer axis; fuse q|k|v weights.
    stack = lambda n: jnp.stack([p[n] for p in layer_params], axis=0)
    wqkv = jnp.stack([jnp.concatenate([p["wq"], p["wk"], p["wv"]], axis=1)
                      for p in layer_params], axis=0)            # (NL, D, 3D)
    bqkv = jnp.stack([jnp.concatenate([p["bq"], p["bk"], p["bv"]], axis=1)
                      for p in layer_params], axis=0)            # (NL, 1, 3D)

    # pos_embed only feeds q/k; by linearity (x+pos)W = xW + posW, so the
    # (NL, L, 2D) correction is batch-independent -> compute ONCE here, in f32.
    pos_qk = jnp.einsum('ld,ndk->nlk',
                        pos_embed.astype(jnp.float32),
                        wqkv[:, :, :2 * D].astype(jnp.float32))  # (NL, L, 2D)

    # Matmul weights pre-cast to bf16 (half the DMA / VMEM); biases & LN in f32.
    weights = [wqkv.astype(bf16), bqkv,
               stack("wo").astype(bf16), stack("bo"),
               stack("w1").astype(bf16), stack("b1"),
               stack("w2").astype(bf16), stack("b2"),
               stack("g1"), stack("be1"), stack("g2"), stack("be2"),
               norm_params["g"], norm_params["b"]]

    # Batch tile: default 1 so the grid has >= 2 steps whenever B >= 2
    # (both v7x TensorCores busy; pipeliner gets overlap).
    BT = batch_block if batch_block is not None else (1 if B > 1 else B)
    assert B % BT == 0
    grid = (B // BT,)

    # Query-block size for attention tiling (static unroll inside the kernel).
    qb = min(q_block, L)
    if L % qb != 0:
        qb = L

    def full_spec(a):
        return pl.BlockSpec(a.shape, lambda b, _n=a.ndim: (0,) * _n)

    # Advisory cost estimate so XLA schedules around this fused call sensibly.
    flops = 2 * NL * B * L * (3 * D * D          # fused QKV
                              + 2 * L * D        # scores + context
                              + D * D            # output projection
                              + 2 * D * F_hidden)  # FFN
    transcendentals = NL * B * H * L * L + (2 * NL + 1) * B * L
    bytes_accessed = (x.size * x.dtype.itemsize                    # x in
                      + B * L * D * x.dtype.itemsize               # x out
                      + NL * B * H * L * L * 2                     # attn out (bf16)
                      + pos_qk.size * 4
                      + sum(int(w.size) * w.dtype.itemsize for w in weights))
    ce = pl.CostEstimate(flops=flops, transcendentals=transcendentals,
                         bytes_accessed=bytes_accessed)

    out, attn = pl.pallas_call(
        functools.partial(encoder_kernel, num_layers=NL, num_heads=H,
                          eps=eps, q_block=qb),
        grid=grid,
        in_specs=[pl.BlockSpec((BT, L, D), lambda b: (b, 0, 0)),       # x: batch tile
                  pl.BlockSpec((NL, L, 2 * D), lambda b: (0, 0, 0))]   # pos correction
                 + [full_spec(w) for w in weights],
        out_specs=[pl.BlockSpec((BT, L, D), lambda b: (b, 0, 0)),
                   pl.BlockSpec((NL, BT, H, L, L), lambda b: (0, b, 0, 0, 0))],
        out_shape=[jax.ShapeDtypeStruct((B, L, D), x.dtype),
                   jax.ShapeDtypeStruct((NL, B, H, L, L), jnp.bfloat16)],
        scratch_shapes=[pltpu.VMEM((BT, L, D), jnp.float32)],          # ctx slab
        compiler_params=pltpu.CompilerParams(
            dimension_semantics=("parallel",),
            vmem_limit_bytes=vmem_limit_bytes),
        cost_estimate=ce,
    )(x, pos_qk, *weights)

    # Return attention weights per layer to mirror the PyTorch `attns` list.
    return out, [attn[l] for l in range(NL)]


if __name__ == "__main__":
    B, L, D, H, F = 2, 8, 32, 4, 64
    NUM_LAYERS = 2

    keys = iter(jax.random.split(jax.random.PRNGKey(0), 64))

    def randn(shape, scale=0.05):
        return scale * jax.random.normal(next(keys), shape, dtype=jnp.float32)

    x = randn((B, L, D), scale=1.0)
    pos_embed = randn((L, D), scale=1.0)

    layer_params = []
    for _ in range(NUM_LAYERS):
        layer_params.append(dict(
            wq=randn((D, D)), bq=randn((1, D)),
            wk=randn((D, D)), bk=randn((1, D)),
            wv=randn((D, D)), bv=randn((1, D)),
            wo=randn((D, D)), bo=randn((1, D)),
            w1=randn((D, F)), b1=randn((1, F)),
            w2=randn((F, D)), b2=randn((1, D)),
            g1=jnp.ones((1, D), jnp.float32), be1=jnp.zeros((1, D), jnp.float32),
            g2=jnp.ones((1, D), jnp.float32), be2=jnp.zeros((1, D), jnp.float32),
        ))
    norm_params = dict(g=jnp.ones((1, D), jnp.float32),
                       b=jnp.zeros((1, D), jnp.float32))

    out, attns = encoder_forward(x, pos_embed, layer_params, norm_params,
                                 num_heads=H)
    jax.block_until_ready(out)
    jax.block_until_ready(attns)

    assert out.shape == (B, L, D)
    assert len(attns) == NUM_LAYERS
    assert all(a.shape == (B, H, L, L) for a in attns)
    assert bool(jnp.all(jnp.isfinite(out)))
    for a in attns:
        af = a.astype(jnp.float32)
        assert bool(jnp.all(jnp.isfinite(af)))
        # softmax rows should sum to ~1 (approx reciprocal + bf16 storage)
        assert bool(jnp.all(jnp.abs(jnp.sum(af, axis=-1) - 1.0) < 2e-2))
    print("KERNEL_OK")
</pallas_src>

<mosaic_0001>
module attributes {stable_mosaic.version = 11 : i64} {
  func.func @encoder_kernel(%arg0: i32, %arg1: memref<1x8x32xf32, #tpu.memory_space<vmem>>, %arg2: memref<2x8x64xf32, #tpu.memory_space<vmem>>, %arg3: memref<2x32x96xbf16, #tpu.memory_space<vmem>>, %arg4: memref<2x1x96xf32, #tpu.memory_space<vmem>>, %arg5: memref<2x32x32xbf16, #tpu.memory_space<vmem>>, %arg6: memref<2x1x32xf32, #tpu.memory_space<vmem>>, %arg7: memref<2x32x64xbf16, #tpu.memory_space<vmem>>, %arg8: memref<2x1x64xf32, #tpu.memory_space<vmem>>, %arg9: memref<2x64x32xbf16, #tpu.memory_space<vmem>>, %arg10: memref<2x1x32xf32, #tpu.memory_space<vmem>>, %arg11: memref<2x1x32xf32, #tpu.memory_space<vmem>>, %arg12: memref<2x1x32xf32, #tpu.memory_space<vmem>>, %arg13: memref<2x1x32xf32, #tpu.memory_space<vmem>>, %arg14: memref<2x1x32xf32, #tpu.memory_space<vmem>>, %arg15: memref<1x32xf32, #tpu.memory_space<vmem>>, %arg16: memref<1x32xf32, #tpu.memory_space<vmem>>, %arg17: memref<1x8x32xf32, #tpu.memory_space<vmem>>, %arg18: memref<2x1x4x8x8xbf16, #tpu.memory_space<vmem>>, %arg19: memref<1x8x32xf32, #tpu.memory_space<vmem>>) attributes {dimension_semantics = [#tpu.dimension_semantics<parallel>], iteration_bounds = array<i64: 2>, scalar_prefetch = 0 : i64, scratch_operands = 1 : i64, tpu.core_type = #tpu.core_type<tc>, window_params = [{transform_indices = @transform_0, window_bounds = array<i64: 1, 8, 32>}, {pipeline_mode = #tpu.pipeline_mode<synchronous>, transform_indices = @transform_1, window_bounds = array<i64: 2, 8, 64>}, {pipeline_mode = #tpu.pipeline_mode<synchronous>, transform_indices = @transform_2, window_bounds = array<i64: 2, 32, 96>}, {pipeline_mode = #tpu.pipeline_mode<synchronous>, transform_indices = @transform_3, window_bounds = array<i64: 2, 1, 96>}, {pipeline_mode = #tpu.pipeline_mode<synchronous>, transform_indices = @transform_4, window_bounds = array<i64: 2, 32, 32>}, {pipeline_mode = #tpu.pipeline_mode<synchronous>, transform_indices = @transform_5, window_bounds = array<i64: 2, 1, 32>}, {pipeline_mode = #tpu.pipeline_mode<synchronous>, transform_indices = @transform_6, window_bounds = array<i64: 2, 32, 64>}, {pipeline_mode = #tpu.pipeline_mode<synchronous>, transform_indices = @transform_7, window_bounds = array<i64: 2, 1, 64>}, {pipeline_mode = #tpu.pipeline_mode<synchronous>, transform_indices = @transform_8, window_bounds = array<i64: 2, 64, 32>}, {pipeline_mode = #tpu.pipeline_mode<synchronous>, transform_indices = @transform_9, window_bounds = array<i64: 2, 1, 32>}, {pipeline_mode = #tpu.pipeline_mode<synchronous>, transform_indices = @transform_10, window_bounds = array<i64: 2, 1, 32>}, {pipeline_mode = #tpu.pipeline_mode<synchronous>, transform_indices = @transform_11, window_bounds = array<i64: 2, 1, 32>}, {pipeline_mode = #tpu.pipeline_mode<synchronous>, transform_indices = @transform_12, window_bounds = array<i64: 2, 1, 32>}, {pipeline_mode = #tpu.pipeline_mode<synchronous>, transform_indices = @transform_13, window_bounds = array<i64: 2, 1, 32>}, {pipeline_mode = #tpu.pipeline_mode<synchronous>, transform_indices = @transform_14, window_bounds = array<i64: 1, 32>}, {pipeline_mode = #tpu.pipeline_mode<synchronous>, transform_indices = @transform_15, window_bounds = array<i64: 1, 32>}, {transform_indices = @transform_16, window_bounds = array<i64: 1, 8, 32>}, {transform_indices = @transform_17, window_bounds = array<i64: 2, 1, 4, 8, 8>}]} {
    %c0 = arith.constant 0 : index
    %c0_0 = arith.constant 0 : index
    %c0_1 = arith.constant 0 : index
    %0 = vector.load %arg1[%c0, %c0_0, %c0_1] : memref<1x8x32xf32, #tpu.memory_space<vmem>>, vector<1x8x32xf32>
    %1 = vector.shape_cast %0 : vector<1x8x32xf32> to vector<8x32xf32>
    %2 = arith.truncf %1 : vector<8x32xf32> to vector<8x32xbf16>
    %c0_2 = arith.constant 0 : index
    %c0_3 = arith.constant 0 : index
    %c0_4 = arith.constant 0 : index
    %3 = vector.load %arg3[%c0_2, %c0_3, %c0_4] : memref<2x32x96xbf16, #tpu.memory_space<vmem>>, vector<1x32x96xbf16>
    %4 = vector.shape_cast %3 : vector<1x32x96xbf16> to vector<32x96xbf16>
    %cst = arith.constant dense<0.000000e+00> : vector<8x96xf32>
    %5 = tpu.matmul %2, %4, %cst {dimension_numbers = #tpu.dot_dimension_numbers<[1], [0], [0], [1], [0, 0, 1, 1], [], []>} : vector<8x32xbf16>, vector<32x96xbf16>, vector<8x96xf32> -> vector<8x96xf32>
    %c0_5 = arith.constant 0 : index
    %c0_6 = arith.constant 0 : index
    %c0_7 = arith.constant 0 : index
    %6 = vector.load %arg4[%c0_5, %c0_6, %c0_7] : memref<2x1x96xf32, #tpu.memory_space<vmem>>, vector<1x1x96xf32>
    %7 = vector.shape_cast %6 : vector<1x1x96xf32> to vector<1x96xf32>
    %8 = vector.broadcast %7 : vector<1x96xf32> to vector<8x96xf32>
    %9 = arith.addf %5, %8 : vector<8x96xf32>
    %10 = vector.extract_strided_slice %9 {offsets = [0, 0], sizes = [8, 64], strides = [1, 1]} : vector<8x96xf32> to vector<8x64xf32>
    %11 = vector.shape_cast %10 : vector<8x64xf32> to vector<1x8x64xf32>
    %c0_8 = arith.constant 0 : index
    %c0_9 = arith.constant 0 : index
    %c0_10 = arith.constant 0 : index
    %12 = vector.load %arg2[%c0_8, %c0_9, %c0_10] : memref<2x8x64xf32, #tpu.memory_space<vmem>>, vector<1x8x64xf32>
    %13 = vector.shape_cast %12 : vector<1x8x64xf32> to vector<8x64xf32>
    %14 = vector.shape_cast %13 : vector<8x64xf32> to vector<1x8x64xf32>
    %15 = arith.addf %11, %14 : vector<1x8x64xf32>
    %16 = vector.extract_strided_slice %15 {offsets = [0, 0, 0], sizes = [1, 8, 32], strides = [1, 1, 1]} : vector<1x8x64xf32> to vector<1x8x32xf32>
    %cst_11 = arith.constant 0.353553385 : f32
    %17 = vector.broadcast %cst_11 : f32 to vector<1x8x32xf32>
    %18 = arith.mulf %16, %17 : vector<1x8x32xf32>
    %19 = arith.truncf %18 : vector<1x8x32xf32> to vector<1x8x32xbf16>
    %20 = vector.extract_strided_slice %15 {offsets = [0, 0, 32], sizes = [1, 8, 32], strides = [1, 1, 1]} : vector<1x8x64xf32> to vector<1x8x32xf32>
    %21 = arith.truncf %20 : vector<1x8x32xf32> to vector<1x8x32xbf16>
    %22 = vector.extract_strided_slice %9 {offsets = [0, 64], sizes = [8, 32], strides = [1, 1]} : vector<8x96xf32> to vector<8x32xf32>
    %23 = vector.shape_cast %22 : vector<8x32xf32> to vector<1x8x32xf32>
    %24 = arith.truncf %23 : vector<1x8x32xf32> to vector<1x8x32xbf16>
    %25 = vector.extract_strided_slice %21 {offsets = [0, 0, 0], sizes = [1, 8, 8], strides = [1, 1, 1]} : vector<1x8x32xbf16> to vector<1x8x8xbf16>
    %26 = vector.extract_strided_slice %24 {offsets = [0, 0, 0], sizes = [1, 8, 8], strides = [1, 1, 1]} : vector<1x8x32xbf16> to vector<1x8x8xbf16>
    %27 = vector.extract_strided_slice %19 {offsets = [0, 0, 0], sizes = [1, 8, 8], strides = [1, 1, 1]} : vector<1x8x32xbf16> to vector<1x8x8xbf16>
    "tpu.trace_start"() <{level = 10 : i32, message = "bqd,bkd->bqk"}> : () -> ()
    %cst_12 = arith.constant dense<0.000000e+00> : vector<1x8x8xf32>
    %28 = tpu.matmul %27, %25, %cst_12 {dimension_numbers = #tpu.dot_dimension_numbers<[2], [2], [1], [1], [0, 0, 0, 1, 1, 1], [0], [0]>} : vector<1x8x8xbf16>, vector<1x8x8xbf16>, vector<1x8x8xf32> -> vector<1x8x8xf32>
    "tpu.trace_stop"() : () -> ()
    %cst_13 = arith.constant dense<0xFF800000> : vector<1x8xf32>
    %29 = vector.multi_reduction <maximumf>, %28, %cst_13 [2] : vector<1x8x8xf32> to vector<1x8xf32>
    %30 = vector.shape_cast %29 : vector<1x8xf32> to vector<1x8x1xf32>
    %31 = vector.broadcast %30 : vector<1x8x1xf32> to vector<1x8x8xf32>
    %32 = arith.subf %28, %31 : vector<1x8x8xf32>
    %33 = math.exp %32 : vector<1x8x8xf32>
    %cst_14 = arith.constant dense<0.000000e+00> : vector<1x8xf32>
    %34 = vector.multi_reduction <add>, %33, %cst_14 [2] : vector<1x8x8xf32> to vector<1x8xf32>
    %35 = vector.shape_cast %34 : vector<1x8xf32> to vector<1x8x1xf32>
    %36 = tpu.reciprocal %35 {approx = true} : vector<1x8x1xf32> -> vector<1x8x1xf32>
    %37 = vector.broadcast %36 : vector<1x8x1xf32> to vector<1x8x8xf32>
    %38 = arith.mulf %33, %37 : vector<1x8x8xf32>
    %39 = arith.truncf %38 : vector<1x8x8xf32> to vector<1x8x8xbf16>
    %c0_15 = arith.constant 0 : index
    %c0_16 = arith.constant 0 : index
    %c0_17 = arith.constant 0 : index
    %c0_18 = arith.constant 0 : index
    %c0_19 = arith.constant 0 : index
    %40 = vector.load %arg18[%c0_15, %c0_16, %c0_17, %c0_18, %c0_19] : memref<2x1x4x8x8xbf16, #tpu.memory_space<vmem>>, vector<1x1x1x8x8xbf16>
    %41 = vector.shape_cast %40 : vector<1x1x1x8x8xbf16> to vector<1x8x8xbf16>
    %42 = vector.shape_cast %39 : vector<1x8x8xbf16> to vector<1x1x1x8x8xbf16>
    tpu.vector_store %arg18[%c0_15, %c0_16, %c0_17, %c0_18, %c0_19], %42 {strides = array<i32>} : memref<2x1x4x8x8xbf16, #tpu.memory_space<vmem>>, vector<1x1x1x8x8xbf16>,
    %43 = arith.truncf %38 : vector<1x8x8xf32> to vector<1x8x8xbf16>
    "tpu.trace_start"() <{level = 10 : i32, message = "bqk,bkd->bqd"}> : () -> ()
    %cst_20 = arith.constant dense<0.000000e+00> : vector<1x8x8xf32>
    %44 = tpu.matmul %43, %26, %cst_20 {dimension_numbers = #tpu.dot_dimension_numbers<[2], [1], [1], [2], [0, 0, 0, 1, 1, 2], [0], [0]>} : vector<1x8x8xbf16>, vector<1x8x8xbf16>, vector<1x8x8xf32> -> vector<1x8x8xf32>
    "tpu.trace_stop"() : () -> ()
    %c0_21 = arith.constant 0 : index
    %c0_22 = arith.constant 0 : index
    %c0_23 = arith.constant 0 : index
    %45 = vector.load %arg19[%c0_21, %c0_22, %c0_23] : memref<1x8x32xf32, #tpu.memory_space<vmem>>, vector<1x8x8xf32>
    tpu.vector_store %arg19[%c0_21, %c0_22, %c0_23], %44 {strides = array<i32>} : memref<1x8x32xf32, #tpu.memory_space<vmem>>, vector<1x8x8xf32>,
    %46 = vector.extract_strided_slice %21 {offsets = [0, 0, 8], sizes = [1, 8, 8], strides = [1, 1, 1]} : vector<1x8x32xbf16> to vector<1x8x8xbf16>
    %47 = vector.extract_strided_slice %24 {offsets = [0, 0, 8], sizes = [1, 8, 8], strides = [1, 1, 1]} : vector<1x8x32xbf16> to vector<1x8x8xbf16>
    %48 = vector.extract_strided_slice %19 {offsets = [0, 0, 8], sizes = [1, 8, 8], strides = [1, 1, 1]} : vector<1x8x32xbf16> to vector<1x8x8xbf16>
    "tpu.trace_start"() <{level = 10 : i32, message = "bqd,bkd->bqk"}> : () -> ()
    %cst_24 = arith.constant dense<0.000000e+00> : vector<1x8x8xf32>
    %49 = tpu.matmul %48, %46, %cst_24 {dimension_numbers = #tpu.dot_dimension_numbers<[2], [2], [1], [1], [0, 0, 0, 1, 1, 1], [0], [0]>} : vector<1x8x8xbf16>, vector<1x8x8xbf16>, vector<1x8x8xf32> -> vector<1x8x8xf32>
    "tpu.trace_stop"() : () -> ()
    %cst_25 = arith.constant dense<0xFF800000> : vector<1x8xf32>
    %50 = vector.multi_reduction <maximumf>, %49, %cst_25 [2] : vector<1x8x8xf32> to vector<1x8xf32>
    %51 = vector.shape_cast %50 : vector<1x8xf32> to vector<1x8x1xf32>
    %52 = vector.broadcast %51 : vector<1x8x1xf32> to vector<1x8x8xf32>
    %53 = arith.subf %49, %52 : vector<1x8x8xf32>
    %54 = math.exp %53 : vector<1x8x8xf32>
    %cst_26 = arith.constant dense<0.000000e+00> : vector<1x8xf32>
    %55 = vector.multi_reduction <add>, %54, %cst_26 [2] : vector<1x8x8xf32> to vector<1x8xf32>
    %56 = vector.shape_cast %55 : vector<1x8xf32> to vector<1x8x1xf32>
    %57 = tpu.reciprocal %56 {approx = true} : vector<1x8x1xf32> -> vector<1x8x1xf32>
    %58 = vector.broadcast %57 : vector<1x8x1xf32> to vector<1x8x8xf32>
    %59 = arith.mulf %54, %58 : vector<1x8x8xf32>
    %60 = arith.truncf %59 : vector<1x8x8xf32> to vector<1x8x8xbf16>
    %c0_27 = arith.constant 0 : index
    %c0_28 = arith.constant 0 : index
    %c1 = arith.constant 1 : index
    %c0_29 = arith.constant 0 : index
    %c0_30 = arith.constant 0 : index
    %61 = vector.load %arg18[%c0_27, %c0_28, %c1, %c0_29, %c0_30] : memref<2x1x4x8x8xbf16, #tpu.memory_space<vmem>>, vector<1x1x1x8x8xbf16>
    %62 = vector.shape_cast %61 : vector<1x1x1x8x8xbf16> to vector<1x8x8xbf16>
    %63 = vector.shape_cast %60 : vector<1x8x8xbf16> to vector<1x1x1x8x8xbf16>
    tpu.vector_store %arg18[%c0_27, %c0_28, %c1, %c0_29, %c0_30], %63 {strides = array<i32>} : memref<2x1x4x8x8xbf16, #tpu.memory_space<vmem>>, vector<1x1x1x8x8xbf16>,
    %64 = arith.truncf %59 : vector<1x8x8xf32> to vector<1x8x8xbf16>
    "tpu.trace_start"() <{level = 10 : i32, message = "bqk,bkd->bqd"}> : () -> ()
    %cst_31 = arith.constant dense<0.000000e+00> : vector<1x8x8xf32>
    %65 = tpu.matmul %64, %47, %cst_31 {dimension_numbers = #tpu.dot_dimension_numbers<[2], [1], [1], [2], [0, 0, 0, 1, 1, 2], [0], [0]>} : vector<1x8x8xbf16>, vector<1x8x8xbf16>, vector<1x8x8xf32> -> vector<1x8x8xf32>
    "tpu.trace_stop"() : () -> ()
    %c0_32 = arith.constant 0 : index
    %c0_33 = arith.constant 0 : index
    %c8 = arith.constant 8 : index
    %66 = vector.load %arg19[%c0_32, %c0_33, %c8] : memref<1x8x32xf32, #tpu.memory_space<vmem>>, vector<1x8x8xf32>
    tpu.vector_store %arg19[%c0_32, %c0_33, %c8], %65 {strides = array<i32>} : memref<1x8x32xf32, #tpu.memory_space<vmem>>, vector<1x8x8xf32>,
    %67 = vector.extract_strided_slice %21 {offsets = [0, 0, 16], sizes = [1, 8, 8], strides = [1, 1, 1]} : vector<1x8x32xbf16> to vector<1x8x8xbf16>
    %68 = vector.extract_strided_slice %24 {offsets = [0, 0, 16], sizes = [1, 8, 8], strides = [1, 1, 1]} : vector<1x8x32xbf16> to vector<1x8x8xbf16>
    %69 = vector.extract_strided_slice %19 {offsets = [0, 0, 16], sizes = [1, 8, 8], strides = [1, 1, 1]} : vector<1x8x32xbf16> to vector<1x8x8xbf16>
    "tpu.trace_start"() <{level = 10 : i32, message = "bqd,bkd->bqk"}> : () -> ()
    %cst_34 = arith.constant dense<0.000000e+00> : vector<1x8x8xf32>
    %70 = tpu.matmul %69, %67, %cst_34 {dimension_numbers = #tpu.dot_dimension_numbers<[2], [2], [1], [1], [0, 0, 0, 1, 1, 1], [0], [0]>} : vector<1x8x8xbf16>, vector<1x8x8xbf16>, vector<1x8x8xf32> -> vector<1x8x8xf32>
    "tpu.trace_stop"() : () -> ()
    %cst_35 = arith.constant dense<0xFF800000> : vector<1x8xf32>
    %71 = vector.multi_reduction <maximumf>, %70, %cst_35 [2] : vector<1x8x8xf32> to vector<1x8xf32>
    %72 = vector.shape_cast %71 : vector<1x8xf32> to vector<1x8x1xf32>
    %73 = vector.broadcast %72 : vector<1x8x1xf32> to vector<1x8x8xf32>
    %74 = arith.subf %70, %73 : vector<1x8x8xf32>
    %75 = math.exp %74 : vector<1x8x8xf32>
    %cst_36 = arith.constant dense<0.000000e+00> : vector<1x8xf32>
    %76 = vector.multi_reduction <add>, %75, %cst_36 [2] : vector<1x8x8xf32> to vector<1x8xf32>
    %77 = vector.shape_cast %76 : vector<1x8xf32> to vector<1x8x1xf32>
    %78 = tpu.reciprocal %77 {approx = true} : vector<1x8x1xf32> -> vector<1x8x1xf32>
    %79 = vector.broadcast %78 : vector<1x8x1xf32> to vector<1x8x8xf32>
    %80 = arith.mulf %75, %79 : vector<1x8x8xf32>
    %81 = arith.truncf %80 : vector<1x8x8xf32> to vector<1x8x8xbf16>
    %c0_37 = arith.constant 0 : index
    %c0_38 = arith.constant 0 : index
    %c2 = arith.constant 2 : index
    %c0_39 = arith.constant 0 : index
    %c0_40 = arith.constant 0 : index
    %82 = vector.load %arg18[%c0_37, %c0_38, %c2, %c0_39, %c0_40] : memref<2x1x4x8x8xbf16, #tpu.memory_space<vmem>>, vector<1x1x1x8x8xbf16>
    %83 = vector.shape_cast %82 : vector<1x1x1x8x8xbf16> to vector<1x8x8xbf16>
    %84 = vector.shape_cast %81 : vector<1x8x8xbf16> to vector<1x1x1x8x8xbf16>
    tpu.vector_store %arg18[%c0_37, %c0_38, %c2, %c0_39, %c0_40], %84 {strides = array<i32>} : memref<2x1x4x8x8xbf16, #tpu.memory_space<vmem>>, vector<1x1x1x8x8xbf16>,
    %85 = arith.truncf %80 : vector<1x8x8xf32> to vector<1x8x8xbf16>
    "tpu.trace_start"() <{level = 10 : i32, message = "bqk,bkd->bqd"}> : () -> ()
    %cst_41 = arith.constant dense<0.000000e+00> : vector<1x8x8xf32>
    %86 = tpu.matmul %85, %68, %cst_41 {dimension_numbers = #tpu.dot_dimension_numbers<[2], [1], [1], [2], [0, 0, 0, 1, 1, 2], [0], [0]>} : vector<1x8x8xbf16>, vector<1x8x8xbf16>, vector<1x8x8xf32> -> vector<1x8x8xf32>
    "tpu.trace_stop"() : () -> ()
    %c0_42 = arith.constant 0 : index
    %c0_43 = arith.constant 0 : index
    %c16 = arith.constant 16 : index
    %87 = vector.load %arg19[%c0_42, %c0_43, %c16] : memref<1x8x32xf32, #tpu.memory_space<vmem>>, vector<1x8x8xf32>
    tpu.vector_store %arg19[%c0_42, %c0_43, %c16], %86 {strides = array<i32>} : memref<1x8x32xf32, #tpu.memory_space<vmem>>, vector<1x8x8xf32>,
    %88 = vector.extract_strided_slice %21 {offsets = [0, 0, 24], sizes = [1, 8, 8], strides = [1, 1, 1]} : vector<1x8x32xbf16> to vector<1x8x8xbf16>
    %89 = vector.extract_strided_slice %24 {offsets = [0, 0, 24], sizes = [1, 8, 8], strides = [1, 1, 1]} : vector<1x8x32xbf16> to vector<1x8x8xbf16>
    %90 = vector.extract_strided_slice %19 {offsets = [0, 0, 24], sizes = [1, 8, 8], strides = [1, 1, 1]} : vector<1x8x32xbf16> to vector<1x8x8xbf16>
    "tpu.trace_start"() <{level = 10 : i32, message = "bqd,bkd->bqk"}> : () -> ()
    %cst_44 = arith.constant dense<0.000000e+00> : vector<1x8x8xf32>
    %91 = tpu.matmul %90, %88, %cst_44 {dimension_numbers = #tpu.dot_dimension_numbers<[2], [2], [1], [1], [0, 0, 0, 1, 1, 1], [0], [0]>} : vector<1x8x8xbf16>, vector<1x8x8xbf16>, vector<1x8x8xf32> -> vector<1x8x8xf32>
    "tpu.trace_stop"() : () -> ()
    %cst_45 = arith.constant dense<0xFF800000> : vector<1x8xf32>
    %92 = vector.multi_reduction <maximumf>, %91, %cst_45 [2] : vector<1x8x8xf32> to vector<1x8xf32>
    %93 = vector.shape_cast %92 : vector<1x8xf32> to vector<1x8x1xf32>
    %94 = vector.broadcast %93 : vector<1x8x1xf32> to vector<1x8x8xf32>
    %95 = arith.subf %91, %94 : vector<1x8x8xf32>
    %96 = math.exp %95 : vector<1x8x8xf32>
    %cst_46 = arith.constant dense<0.000000e+00> : vector<1x8xf32>
    %97 = vector.multi_reduction <add>, %96, %cst_46 [2] : vector<1x8x8xf32> to vector<1x8xf32>
    %98 = vector.shape_cast %97 : vector<1x8xf32> to vector<1x8x1xf32>
    %99 = tpu.reciprocal %98 {approx = true} : vector<1x8x1xf32> -> vector<1x8x1xf32>
    %100 = vector.broadcast %99 : vector<1x8x1xf32> to vector<1x8x8xf32>
    %101 = arith.mulf %96, %100 : vector<1x8x8xf32>
    %102 = arith.truncf %101 : vector<1x8x8xf32> to vector<1x8x8xbf16>
    %c0_47 = arith.constant 0 : index
    %c0_48 = arith.constant 0 : index
    %c3 = arith.constant 3 : index
    %c0_49 = arith.constant 0 : index
    %c0_50 = arith.constant 0 : index
    %103 = vector.load %arg18[%c0_47, %c0_48, %c3, %c0_49, %c0_50] : memref<2x1x4x8x8xbf16, #tpu.memory_space<vmem>>, vector<1x1x1x8x8xbf16>
    %104 = vector.shape_cast %103 : vector<1x1x1x8x8xbf16> to vector<1x8x8xbf16>
    %105 = vector.shape_cast %102 : vector<1x8x8xbf16> to vector<1x1x1x8x8xbf16>
    tpu.vector_store %arg18[%c0_47, %c0_48, %c3, %c0_49, %c0_50], %105 {strides = array<i32>} : memref<2x1x4x8x8xbf16, #tpu.memory_space<vmem>>, vector<1x1x1x8x8xbf16>,
    %106 = arith.truncf %101 : vector<1x8x8xf32> to vector<1x8x8xbf16>
    "tpu.trace_start"() <{level = 10 : i32, message = "bqk,bkd->bqd"}> : () -> ()
    %cst_51 = arith.constant dense<0.000000e+00> : vector<1x8x8xf32>
    %107 = tpu.matmul %106, %89, %cst_51 {dimension_numbers = #tpu.dot_dimension_numbers<[2], [1], [1], [2], [0, 0, 0, 1, 1, 2], [0], [0]>} : vector<1x8x8xbf16>, vector<1x8x8xbf16>, vector<1x8x8xf32> -> vector<1x8x8xf32>
    "tpu.trace_stop"() : () -> ()
    %c0_52 = arith.constant 0 : index
    %c0_53 = arith.constant 0 : index
    %c24 = arith.constant 24 : index
    %108 = vector.load %arg19[%c0_52, %c0_53, %c24] : memref<1x8x32xf32, #tpu.memory_space<vmem>>, vector<1x8x8xf32>
    tpu.vector_store %arg19[%c0_52, %c0_53, %c24], %107 {strides = array<i32>} : memref<1x8x32xf32, #tpu.memory_space<vmem>>, vector<1x8x8xf32>,
    %c0_54 = arith.constant 0 : index
    %c0_55 = arith.constant 0 : index
    %c0_56 = arith.constant 0 : index
    %109 = vector.load %arg19[%c0_54, %c0_55, %c0_56] : memref<1x8x32xf32, #tpu.memory_space<vmem>>, vector<1x8x32xf32>
    %110 = vector.shape_cast %109 : vector<1x8x32xf32> to vector<8x32xf32>
    %111 = arith.truncf %110 : vector<8x32xf32> to vector<8x32xbf16>
    %c0_57 = arith.constant 0 : index
    %c0_58 = arith.constant 0 : index
    %c0_59 = arith.constant 0 : index
    %112 = vector.load %arg5[%c0_57, %c0_58, %c0_59] : memref<2x32x32xbf16, #tpu.memory_space<vmem>>, vector<1x32x32xbf16>
    %113 = vector.shape_cast %112 : vector<1x32x32xbf16> to vector<32x32xbf16>
    %cst_60 = arith.constant dense<0.000000e+00> : vector<8x32xf32>
    %114 = tpu.matmul %111, %113, %cst_60 {dimension_numbers = #tpu.dot_dimension_numbers<[1], [0], [0], [1], [0, 0, 1, 1], [], []>} : vector<8x32xbf16>, vector<32x32xbf16>, vector<8x32xf32> -> vector<8x32xf32>
    %c0_61 = arith.constant 0 : index
    %c0_62 = arith.constant 0 : index
    %c0_63 = arith.constant 0 : index
    %115 = vector.load %arg6[%c0_61, %c0_62, %c0_63] : memref<2x1x32xf32, #tpu.memory_space<vmem>>, vector<1x1x32xf32>
    %116 = vector.shape_cast %115 : vector<1x1x32xf32> to vector<1x32xf32>
    %117 = vector.broadcast %116 : vector<1x32xf32> to vector<8x32xf32>
    %118 = arith.addf %114, %117 : vector<8x32xf32>
    %119 = arith.addf %1, %118 : vector<8x32xf32>
    %c0_64 = arith.constant 0 : index
    %c0_65 = arith.constant 0 : index
    %c0_66 = arith.constant 0 : index
    %120 = vector.load %arg11[%c0_64, %c0_65, %c0_66] : memref<2x1x32xf32, #tpu.memory_space<vmem>>, vector<1x1x32xf32>
    %121 = vector.shape_cast %120 : vector<1x1x32xf32> to vector<1x32xf32>
    %c0_67 = arith.constant 0 : index
    %c0_68 = arith.constant 0 : index
    %c0_69 = arith.constant 0 : index
    %122 = vector.load %arg12[%c0_67, %c0_68, %c0_69] : memref<2x1x32xf32, #tpu.memory_space<vmem>>, vector<1x1x32xf32>
    %123 = vector.shape_cast %122 : vector<1x1x32xf32> to vector<1x32xf32>
    %cst_70 = arith.constant dense<0.000000e+00> : vector<8xf32>
    %124 = vector.multi_reduction <add>, %119, %cst_70 [1] : vector<8x32xf32> to vector<8xf32>
    %125 = vector.shape_cast %124 : vector<8xf32> to vector<8x1xf32>
    %cst_71 = arith.constant 3.125000e-02 : f32
    %126 = vector.broadcast %cst_71 : f32 to vector<8x1xf32>
    %127 = arith.mulf %125, %126 : vector<8x1xf32>
    %128 = vector.broadcast %127 : vector<8x1xf32> to vector<8x32xf32>
    %129 = arith.subf %119, %128 : vector<8x32xf32>
    %130 = arith.mulf %129, %129 : vector<8x32xf32>
    %cst_72 = arith.constant dense<0.000000e+00> : vector<8xf32>
    %131 = vector.multi_reduction <add>, %130, %cst_72 [1] : vector<8x32xf32> to vector<8xf32>
    %132 = vector.shape_cast %131 : vector<8xf32> to vector<8x1xf32>
    %cst_73 = arith.constant 3.125000e-02 : f32
    %133 = vector.broadcast %cst_73 : f32 to vector<8x1xf32>
    %134 = arith.mulf %132, %133 : vector<8x1xf32>
    %cst_74 = arith.constant 9.99999974E-6 : f32
    %135 = vector.broadcast %cst_74 : f32 to vector<8x1xf32>
    %136 = arith.addf %134, %135 : vector<8x1xf32>
    %137 = math.rsqrt %136 : vector<8x1xf32>
    %138 = vector.broadcast %137 : vector<8x1xf32> to vector<8x32xf32>
    %139 = arith.mulf %129, %138 : vector<8x32xf32>
    %140 = vector.broadcast %121 : vector<1x32xf32> to vector<8x32xf32>
    %141 = arith.mulf %139, %140 : vector<8x32xf32>
    %142 = vector.broadcast %123 : vector<1x32xf32> to vector<8x32xf32>
    %143 = arith.addf %141, %142 : vector<8x32xf32>
    %144 = arith.truncf %143 : vector<8x32xf32> to vector<8x32xbf16>
    %c0_75 = arith.constant 0 : index
    %c0_76 = arith.constant 0 : index
    %c0_77 = arith.constant 0 : index
    %145 = vector.load %arg7[%c0_75, %c0_76, %c0_77] : memref<2x32x64xbf16, #tpu.memory_space<vmem>>, vector<1x32x64xbf16>
    %146 = vector.shape_cast %145 : vector<1x32x64xbf16> to vector<32x64xbf16>
    %cst_78 = arith.constant dense<0.000000e+00> : vector<8x64xf32>
    %147 = tpu.matmul %144, %146, %cst_78 {dimension_numbers = #tpu.dot_dimension_numbers<[1], [0], [0], [1], [0, 0, 1, 1], [], []>} : vector<8x32xbf16>, vector<32x64xbf16>, vector<8x64xf32> -> vector<8x64xf32>
    %c0_79 = arith.constant 0 : index
    %c0_80 = arith.constant 0 : index
    %c0_81 = arith.constant 0 : index
    %148 = vector.load %arg8[%c0_79, %c0_80, %c0_81] : memref<2x1x64xf32, #tpu.memory_space<vmem>>, vector<1x1x64xf32>
    %149 = vector.shape_cast %148 : vector<1x1x64xf32> to vector<1x64xf32>
    %150 = vector.broadcast %149 : vector<1x64xf32> to vector<8x64xf32>
    %151 = arith.addf %147, %150 : vector<8x64xf32>
    %cst_82 = arith.constant 0.000000e+00 : f32
    %152 = vector.broadcast %cst_82 : f32 to vector<8x64xf32>
    %153 = arith.maximumf %151, %152 : vector<8x64xf32>
    %154 = arith.truncf %153 : vector<8x64xf32> to vector<8x64xbf16>
    %c0_83 = arith.constant 0 : index
    %c0_84 = arith.constant 0 : index
    %c0_85 = arith.constant 0 : index
    %155 = vector.load %arg9[%c0_83, %c0_84, %c0_85] : memref<2x64x32xbf16, #tpu.memory_space<vmem>>, vector<1x64x32xbf16>
    %156 = vector.shape_cast %155 : vector<1x64x32xbf16> to vector<64x32xbf16>
    %cst_86 = arith.constant dense<0.000000e+00> : vector<8x32xf32>
    %157 = tpu.matmul %154, %156, %cst_86 {dimension_numbers = #tpu.dot_dimension_numbers<[1], [0], [0], [1], [0, 0, 1, 1], [], []>} : vector<8x64xbf16>, vector<64x32xbf16>, vector<8x32xf32> -> vector<8x32xf32>
    %c0_87 = arith.constant 0 : index
    %c0_88 = arith.constant 0 : index
    %c0_89 = arith.constant 0 : index
    %158 = vector.load %arg10[%c0_87, %c0_88, %c0_89] : memref<2x1x32xf32, #tpu.memory_space<vmem>>, vector<1x1x32xf32>
    %159 = vector.shape_cast %158 : vector<1x1x32xf32> to vector<1x32xf32>
    %160 = vector.broadcast %159 : vector<1x32xf32> to vector<8x32xf32>
    %161 = arith.addf %157, %160 : vector<8x32xf32>
    %162 = arith.addf %143, %161 : vector<8x32xf32>
    %c0_90 = arith.constant 0 : index
    %c0_91 = arith.constant 0 : index
    %c0_92 = arith.constant 0 : index
    %163 = vector.load %arg13[%c0_90, %c0_91, %c0_92] : memref<2x1x32xf32, #tpu.memory_space<vmem>>, vector<1x1x32xf32>
    %164 = vector.shape_cast %163 : vector<1x1x32xf32> to vector<1x32xf32>
    %c0_93 = arith.constant 0 : index
    %c0_94 = arith.constant 0 : index
    %c0_95 = arith.constant 0 : index
    %165 = vector.load %arg14[%c0_93, %c0_94, %c0_95] : memref<2x1x32xf32, #tpu.memory_space<vmem>>, vector<1x1x32xf32>
    %166 = vector.shape_cast %165 : vector<1x1x32xf32> to vector<1x32xf32>
    %cst_96 = arith.constant dense<0.000000e+00> : vector<8xf32>
    %167 = vector.multi_reduction <add>, %162, %cst_96 [1] : vector<8x32xf32> to vector<8xf32>
    %168 = vector.shape_cast %167 : vector<8xf32> to vector<8x1xf32>
    %cst_97 = arith.constant 3.125000e-02 : f32
    %169 = vector.broadcast %cst_97 : f32 to vector<8x1xf32>
    %170 = arith.mulf %168, %169 : vector<8x1xf32>
    %171 = vector.broadcast %170 : vector<8x1xf32> to vector<8x32xf32>
    %172 = arith.subf %162, %171 : vector<8x32xf32>
    %173 = arith.mulf %172, %172 : vector<8x32xf32>
    %cst_98 = arith.constant dense<0.000000e+00> : vector<8xf32>
    %174 = vector.multi_reduction <add>, %173, %cst_98 [1] : vector<8x32xf32> to vector<8xf32>
    %175 = vector.shape_cast %174 : vector<8xf32> to vector<8x1xf32>
    %cst_99 = arith.constant 3.125000e-02 : f32
    %176 = vector.broadcast %cst_99 : f32 to vector<8x1xf32>
    %177 = arith.mulf %175, %176 : vector<8x1xf32>
    %cst_100 = arith.constant 9.99999974E-6 : f32
    %178 = vector.broadcast %cst_100 : f32 to vector<8x1xf32>
    %179 = arith.addf %177, %178 : vector<8x1xf32>
    %180 = math.rsqrt %179 : vector<8x1xf32>
    %181 = vector.broadcast %180 : vector<8x1xf32> to vector<8x32xf32>
    %182 = arith.mulf %172, %181 : vector<8x32xf32>
    %183 = vector.broadcast %164 : vector<1x32xf32> to vector<8x32xf32>
    %184 = arith.mulf %182, %183 : vector<8x32xf32>
    %185 = vector.broadcast %166 : vector<1x32xf32> to vector<8x32xf32>
    %186 = arith.addf %184, %185 : vector<8x32xf32>
    %187 = arith.truncf %186 : vector<8x32xf32> to vector<8x32xbf16>
    %c1_101 = arith.constant 1 : index
    %c0_102 = arith.constant 0 : index
    %c0_103 = arith.constant 0 : index
    %188 = vector.load %arg3[%c1_101, %c0_102, %c0_103] : memref<2x32x96xbf16, #tpu.memory_space<vmem>>, vector<1x32x96xbf16>
    %189 = vector.shape_cast %188 : vector<1x32x96xbf16> to vector<32x96xbf16>
    %cst_104 = arith.constant dense<0.000000e+00> : vector<8x96xf32>
    %190 = tpu.matmul %187, %189, %cst_104 {dimension_numbers = #tpu.dot_dimension_numbers<[1], [0], [0], [1], [0, 0, 1, 1], [], []>} : vector<8x32xbf16>, vector<32x96xbf16>, vector<8x96xf32> -> vector<8x96xf32>
    %c1_105 = arith.constant 1 : index
    %c0_106 = arith.constant 0 : index
    %c0_107 = arith.constant 0 : index
    %191 = vector.load %arg4[%c1_105, %c0_106, %c0_107] : memref<2x1x96xf32, #tpu.memory_space<vmem>>, vector<1x1x96xf32>
    %192 = vector.shape_cast %191 : vector<1x1x96xf32> to vector<1x96xf32>
    %193 = vector.broadcast %192 : vector<1x96xf32> to vector<8x96xf32>
    %194 = arith.addf %190, %193 : vector<8x96xf32>
    %195 = vector.extract_strided_slice %194 {offsets = [0, 0], sizes = [8, 64], strides = [1, 1]} : vector<8x96xf32> to vector<8x64xf32>
    %196 = vector.shape_cast %195 : vector<8x64xf32> to vector<1x8x64xf32>
    %c1_108 = arith.constant 1 : index
    %c0_109 = arith.constant 0 : index
    %c0_110 = arith.constant 0 : index
    %197 = vector.load %arg2[%c1_108, %c0_109, %c0_110] : memref<2x8x64xf32, #tpu.memory_space<vmem>>, vector<1x8x64xf32>
    %198 = vector.shape_cast %197 : vector<1x8x64xf32> to vector<8x64xf32>
    %199 = vector.shape_cast %198 : vector<8x64xf32> to vector<1x8x64xf32>
    %200 = arith.addf %196, %199 : vector<1x8x64xf32>
    %201 = vector.extract_strided_slice %200 {offsets = [0, 0, 0], sizes = [1, 8, 32], strides = [1, 1, 1]} : vector<1x8x64xf32> to vector<1x8x32xf32>
    %cst_111 = arith.constant 0.353553385 : f32
    %202 = vector.broadcast %cst_111 : f32 to vector<1x8x32xf32>
    %203 = arith.mulf %201, %202 : vector<1x8x32xf32>
    %204 = arith.truncf %203 : vector<1x8x32xf32> to vector<1x8x32xbf16>
    %205 = vector.extract_strided_slice %200 {offsets = [0, 0, 32], sizes = [1, 8, 32], strides = [1, 1, 1]} : vector<1x8x64xf32> to vector<1x8x32xf32>
    %206 = arith.truncf %205 : vector<1x8x32xf32> to vector<1x8x32xbf16>
    %207 = vector.extract_strided_slice %194 {offsets = [0, 64], sizes = [8, 32], strides = [1, 1]} : vector<8x96xf32> to vector<8x32xf32>
    %208 = vector.shape_cast %207 : vector<8x32xf32> to vector<1x8x32xf32>
    %209 = arith.truncf %208 : vector<1x8x32xf32> to vector<1x8x32xbf16>
    %210 = vector.extract_strided_slice %206 {offsets = [0, 0, 0], sizes = [1, 8, 8], strides = [1, 1, 1]} : vector<1x8x32xbf16> to vector<1x8x8xbf16>
    %211 = vector.extract_strided_slice %209 {offsets = [0, 0, 0], sizes = [1, 8, 8], strides = [1, 1, 1]} : vector<1x8x32xbf16> to vector<1x8x8xbf16>
    %212 = vector.extract_strided_slice %204 {offsets = [0, 0, 0], sizes = [1, 8, 8], strides = [1, 1, 1]} : vector<1x8x32xbf16> to vector<1x8x8xbf16>
    "tpu.trace_start"() <{level = 10 : i32, message = "bqd,bkd->bqk"}> : () -> ()
    %cst_112 = arith.constant dense<0.000000e+00> : vector<1x8x8xf32>
    %213 = tpu.matmul %212, %210, %cst_112 {dimension_numbers = #tpu.dot_dimension_numbers<[2], [2], [1], [1], [0, 0, 0, 1, 1, 1], [0], [0]>} : vector<1x8x8xbf16>, vector<1x8x8xbf16>, vector<1x8x8xf32> -> vector<1x8x8xf32>
    "tpu.trace_stop"() : () -> ()
    %cst_113 = arith.constant dense<0xFF800000> : vector<1x8xf32>
    %214 = vector.multi_reduction <maximumf>, %213, %cst_113 [2] : vector<1x8x8xf32> to vector<1x8xf32>
    %215 = vector.shape_cast %214 : vector<1x8xf32> to vector<1x8x1xf32>
    %216 = vector.broadcast %215 : vector<1x8x1xf32> to vector<1x8x8xf32>
    %217 = arith.subf %213, %216 : vector<1x8x8xf32>
    %218 = math.exp %217 : vector<1x8x8xf32>
    %cst_114 = arith.constant dense<0.000000e+00> : vector<1x8xf32>
    %219 = vector.multi_reduction <add>, %218, %cst_114 [2] : vector<1x8x8xf32> to vector<1x8xf32>
    %220 = vector.shape_cast %219 : vector<1x8xf32> to vector<1x8x1xf32>
    %221 = tpu.reciprocal %220 {approx = true} : vector<1x8x1xf32> -> vector<1x8x1xf32>
    %222 = vector.broadcast %221 : vector<1x8x1xf32> to vector<1x8x8xf32>
    %223 = arith.mulf %218, %222 : vector<1x8x8xf32>
    %224 = arith.truncf %223 : vector<1x8x8xf32> to vector<1x8x8xbf16>
    %c1_115 = arith.constant 1 : index
    %c0_116 = arith.constant 0 : index
    %c0_117 = arith.constant 0 : index
    %c0_118 = arith.constant 0 : index
    %c0_119 = arith.constant 0 : index
    %225 = vector.load %arg18[%c1_115, %c0_116, %c0_117, %c0_118, %c0_119] : memref<2x1x4x8x8xbf16, #tpu.memory_space<vmem>>, vector<1x1x1x8x8xbf16>
    %226 = vector.shape_cast %225 : vector<1x1x1x8x8xbf16> to vector<1x8x8xbf16>
    %227 = vector.shape_cast %224 : vector<1x8x8xbf16> to vector<1x1x1x8x8xbf16>
    tpu.vector_store %arg18[%c1_115, %c0_116, %c0_117, %c0_118, %c0_119], %227 {strides = array<i32>} : memref<2x1x4x8x8xbf16, #tpu.memory_space<vmem>>, vector<1x1x1x8x8xbf16>,
    %228 = arith.truncf %223 : vector<1x8x8xf32> to vector<1x8x8xbf16>
    "tpu.trace_start"() <{level = 10 : i32, message = "bqk,bkd->bqd"}> : () -> ()
    %cst_120 = arith.constant dense<0.000000e+00> : vector<1x8x8xf32>
    %229 = tpu.matmul %228, %211, %cst_120 {dimension_numbers = #tpu.dot_dimension_numbers<[2], [1], [1], [2], [0, 0, 0, 1, 1, 2], [0], [0]>} : vector<1x8x8xbf16>, vector<1x8x8xbf16>, vector<1x8x8xf32> -> vector<1x8x8xf32>
    "tpu.trace_stop"() : () -> ()
    %c0_121 = arith.constant 0 : index
    %c0_122 = arith.constant 0 : index
    %c0_123 = arith.constant 0 : index
    %230 = vector.load %arg19[%c0_121, %c0_122, %c0_123] : memref<1x8x32xf32, #tpu.memory_space<vmem>>, vector<1x8x8xf32>
    tpu.vector_store %arg19[%c0_121, %c0_122, %c0_123], %229 {strides = array<i32>} : memref<1x8x32xf32, #tpu.memory_space<vmem>>, vector<1x8x8xf32>,
    %231 = vector.extract_strided_slice %206 {offsets = [0, 0, 8], sizes = [1, 8, 8], strides = [1, 1, 1]} : vector<1x8x32xbf16> to vector<1x8x8xbf16>
    %232 = vector.extract_strided_slice %209 {offsets = [0, 0, 8], sizes = [1, 8, 8], strides = [1, 1, 1]} : vector<1x8x32xbf16> to vector<1x8x8xbf16>
    %233 = vector.extract_strided_slice %204 {offsets = [0, 0, 8], sizes = [1, 8, 8], strides = [1, 1, 1]} : vector<1x8x32xbf16> to vector<1x8x8xbf16>
    "tpu.trace_start"() <{level = 10 : i32, message = "bqd,bkd->bqk"}> : () -> ()
    %cst_124 = arith.constant dense<0.000000e+00> : vector<1x8x8xf32>
    %234 = tpu.matmul %233, %231, %cst_124 {dimension_numbers = #tpu.dot_dimension_numbers<[2], [2], [1], [1], [0, 0, 0, 1, 1, 1], [0], [0]>} : vector<1x8x8xbf16>, vector<1x8x8xbf16>, vector<1x8x8xf32> -> vector<1x8x8xf32>
    "tpu.trace_stop"() : () -> ()
    %cst_125 = arith.constant dense<0xFF800000> : vector<1x8xf32>
    %235 = vector.multi_reduction <maximumf>, %234, %cst_125 [2] : vector<1x8x8xf32> to vector<1x8xf32>
    %236 = vector.shape_cast %235 : vector<1x8xf32> to vector<1x8x1xf32>
    %237 = vector.broadcast %236 : vector<1x8x1xf32> to vector<1x8x8xf32>
    %238 = arith.subf %234, %237 : vector<1x8x8xf32>
    %239 = math.exp %238 : vector<1x8x8xf32>
    %cst_126 = arith.constant dense<0.000000e+00> : vector<1x8xf32>
    %240 = vector.multi_reduction <add>, %239, %cst_126 [2] : vector<1x8x8xf32> to vector<1x8xf32>
    %241 = vector.shape_cast %240 : vector<1x8xf32> to vector<1x8x1xf32>
    %242 = tpu.reciprocal %241 {approx = true} : vector<1x8x1xf32> -> vector<1x8x1xf32>
    %243 = vector.broadcast %242 : vector<1x8x1xf32> to vector<1x8x8xf32>
    %244 = arith.mulf %239, %243 : vector<1x8x8xf32>
    %245 = arith.truncf %244 : vector<1x8x8xf32> to vector<1x8x8xbf16>
    %c1_127 = arith.constant 1 : index
    %c0_128 = arith.constant 0 : index
    %c1_129 = arith.constant 1 : index
    %c0_130 = arith.constant 0 : index
    %c0_131 = arith.constant 0 : index
    %246 = vector.load %arg18[%c1_127, %c0_128, %c1_129, %c0_130, %c0_131] : memref<2x1x4x8x8xbf16, #tpu.memory_space<vmem>>, vector<1x1x1x8x8xbf16>
    %247 = vector.shape_cast %246 : vector<1x1x1x8x8xbf16> to vector<1x8x8xbf16>
    %248 = vector.shape_cast %245 : vector<1x8x8xbf16> to vector<1x1x1x8x8xbf16>
    tpu.vector_store %arg18[%c1_127, %c0_128, %c1_129, %c0_130, %c0_131], %248 {strides = array<i32>} : memref<2x1x4x8x8xbf16, #tpu.memory_space<vmem>>, vector<1x1x1x8x8xbf16>,
    %249 = arith.truncf %244 : vector<1x8x8xf32> to vector<1x8x8xbf16>
    "tpu.trace_start"() <{level = 10 : i32, message = "bqk,bkd->bqd"}> : () -> ()
    %cst_132 = arith.constant dense<0.000000e+00> : vector<1x8x8xf32>
    %250 = tpu.matmul %249, %232, %cst_132 {dimension_numbers = #tpu.dot_dimension_numbers<[2], [1], [1], [2], [0, 0, 0, 1, 1, 2], [0], [0]>} : vector<1x8x8xbf16>, vector<1x8x8xbf16>, vector<1x8x8xf32> -> vector<1x8x8xf32>
    "tpu.trace_stop"() : () -> ()
    %c0_133 = arith.constant 0 : index
    %c0_134 = arith.constant 0 : index
    %c8_135 = arith.constant 8 : index
    %251 = vector.load %arg19[%c0_133, %c0_134, %c8_135] : memref<1x8x32xf32, #tpu.memory_space<vmem>>, vector<1x8x8xf32>
    tpu.vector_store %arg19[%c0_133, %c0_134, %c8_135], %250 {strides = array<i32>} : memref<1x8x32xf32, #tpu.memory_space<vmem>>, vector<1x8x8xf32>,
    %252 = vector.extract_strided_slice %206 {offsets = [0, 0, 16], sizes = [1, 8, 8], strides = [1, 1, 1]} : vector<1x8x32xbf16> to vector<1x8x8xbf16>
    %253 = vector.extract_strided_slice %209 {offsets = [0, 0, 16], sizes = [1, 8, 8], strides = [1, 1, 1]} : vector<1x8x32xbf16> to vector<1x8x8xbf16>
    %254 = vector.extract_strided_slice %204 {offsets = [0, 0, 16], sizes = [1, 8, 8], strides = [1, 1, 1]} : vector<1x8x32xbf16> to vector<1x8x8xbf16>
    "tpu.trace_start"() <{level = 10 : i32, message = "bqd,bkd->bqk"}> : () -> ()
    %cst_136 = arith.constant dense<0.000000e+00> : vector<1x8x8xf32>
    %255 = tpu.matmul %254, %252, %cst_136 {dimension_numbers = #tpu.dot_dimension_numbers<[2], [2], [1], [1], [0, 0, 0, 1, 1, 1], [0], [0]>} : vector<1x8x8xbf16>, vector<1x8x8xbf16>, vector<1x8x8xf32> -> vector<1x8x8xf32>
    "tpu.trace_stop"() : () -> ()
    %cst_137 = arith.constant dense<0xFF800000> : vector<1x8xf32>
    %256 = vector.multi_reduction <maximumf>, %255, %cst_137 [2] : vector<1x8x8xf32> to vector<1x8xf32>
    %257 = vector.shape_cast %256 : vector<1x8xf32> to vector<1x8x1xf32>
    %258 = vector.broadcast %257 : vector<1x8x1xf32> to vector<1x8x8xf32>
    %259 = arith.subf %255, %258 : vector<1x8x8xf32>
    %260 = math.exp %259 : vector<1x8x8xf32>
    %cst_138 = arith.constant dense<0.000000e+00> : vector<1x8xf32>
    %261 = vector.multi_reduction <add>, %260, %cst_138 [2] : vector<1x8x8xf32> to vector<1x8xf32>
    %262 = vector.shape_cast %261 : vector<1x8xf32> to vector<1x8x1xf32>
    %263 = tpu.reciprocal %262 {approx = true} : vector<1x8x1xf32> -> vector<1x8x1xf32>
    %264 = vector.broadcast %263 : vector<1x8x1xf32> to vector<1x8x8xf32>
    %265 = arith.mulf %260, %264 : vector<1x8x8xf32>
    %266 = arith.truncf %265 : vector<1x8x8xf32> to vector<1x8x8xbf16>
    %c1_139 = arith.constant 1 : index
    %c0_140 = arith.constant 0 : index
    %c2_141 = arith.constant 2 : index
    %c0_142 = arith.constant 0 : index
    %c0_143 = arith.constant 0 : index
    %267 = vector.load %arg18[%c1_139, %c0_140, %c2_141, %c0_142, %c0_143] : memref<2x1x4x8x8xbf16, #tpu.memory_space<vmem>>, vector<1x1x1x8x8xbf16>
    %268 = vector.shape_cast %267 : vector<1x1x1x8x8xbf16> to vector<1x8x8xbf16>
    %269 = vector.shape_cast %266 : vector<1x8x8xbf16> to vector<1x1x1x8x8xbf16>
    tpu.vector_store %arg18[%c1_139, %c0_140, %c2_141, %c0_142, %c0_143], %269 {strides = array<i32>} : memref<2x1x4x8x8xbf16, #tpu.memory_space<vmem>>, vector<1x1x1x8x8xbf16>,
    %270 = arith.truncf %265 : vector<1x8x8xf32> to vector<1x8x8xbf16>
    "tpu.trace_start"() <{level = 10 : i32, message = "bqk,bkd->bqd"}> : () -> ()
    %cst_144 = arith.constant dense<0.000000e+00> : vector<1x8x8xf32>
    %271 = tpu.matmul %270, %253, %cst_144 {dimension_numbers = #tpu.dot_dimension_numbers<[2], [1], [1], [2], [0, 0, 0, 1, 1, 2], [0], [0]>} : vector<1x8x8xbf16>, vector<1x8x8xbf16>, vector<1x8x8xf32> -> vector<1x8x8xf32>
    "tpu.trace_stop"() : () -> ()
    %c0_145 = arith.constant 0 : index
    %c0_146 = arith.constant 0 : index
    %c16_147 = arith.constant 16 : index
    %272 = vector.load %arg19[%c0_145, %c0_146, %c16_147] : memref<1x8x32xf32, #tpu.memory_space<vmem>>, vector<1x8x8xf32>
    tpu.vector_store %arg19[%c0_145, %c0_146, %c16_147], %271 {strides = array<i32>} : memref<1x8x32xf32, #tpu.memory_space<vmem>>, vector<1x8x8xf32>,
    %273 = vector.extract_strided_slice %206 {offsets = [0, 0, 24], sizes = [1, 8, 8], strides = [1, 1, 1]} : vector<1x8x32xbf16> to vector<1x8x8xbf16>
    %274 = vector.extract_strided_slice %209 {offsets = [0, 0, 24], sizes = [1, 8, 8], strides = [1, 1, 1]} : vector<1x8x32xbf16> to vector<1x8x8xbf16>
    %275 = vector.extract_strided_slice %204 {offsets = [0, 0, 24], sizes = [1, 8, 8], strides = [1, 1, 1]} : vector<1x8x32xbf16> to vector<1x8x8xbf16>
    "tpu.trace_start"() <{level = 10 : i32, message = "bqd,bkd->bqk"}> : () -> ()
    %cst_148 = arith.constant dense<0.000000e+00> : vector<1x8x8xf32>
    %276 = tpu.matmul %275, %273, %cst_148 {dimension_numbers = #tpu.dot_dimension_numbers<[2], [2], [1], [1], [0, 0, 0, 1, 1, 1], [0], [0]>} : vector<1x8x8xbf16>, vector<1x8x8xbf16>, vector<1x8x8xf32> -> vector<1x8x8xf32>
    "tpu.trace_stop"() : () -> ()
    %cst_149 = arith.constant dense<0xFF800000> : vector<1x8xf32>
    %277 = vector.multi_reduction <maximumf>, %276, %cst_149 [2] : vector<1x8x8xf32> to vector<1x8xf32>
    %278 = vector.shape_cast %277 : vector<1x8xf32> to vector<1x8x1xf32>
    %279 = vector.broadcast %278 : vector<1x8x1xf32> to vector<1x8x8xf32>
    %280 = arith.subf %276, %279 : vector<1x8x8xf32>
    %281 = math.exp %280 : vector<1x8x8xf32>
    %cst_150 = arith.constant dense<0.000000e+00> : vector<1x8xf32>
    %282 = vector.multi_reduction <add>, %281, %cst_150 [2] : vector<1x8x8xf32> to vector<1x8xf32>
    %283 = vector.shape_cast %282 : vector<1x8xf32> to vector<1x8x1xf32>
    %284 = tpu.reciprocal %283 {approx = true} : vector<1x8x1xf32> -> vector<1x8x1xf32>
    %285 = vector.broadcast %284 : vector<1x8x1xf32> to vector<1x8x8xf32>
    %286 = arith.mulf %281, %285 : vector<1x8x8xf32>
    %287 = arith.truncf %286 : vector<1x8x8xf32> to vector<1x8x8xbf16>
    %c1_151 = arith.constant 1 : index
    %c0_152 = arith.constant 0 : index
    %c3_153 = arith.constant 3 : index
    %c0_154 = arith.constant 0 : index
    %c0_155 = arith.constant 0 : index
    %288 = vector.load %arg18[%c1_151, %c0_152, %c3_153, %c0_154, %c0_155] : memref<2x1x4x8x8xbf16, #tpu.memory_space<vmem>>, vector<1x1x1x8x8xbf16>
    %289 = vector.shape_cast %288 : vector<1x1x1x8x8xbf16> to vector<1x8x8xbf16>
    %290 = vector.shape_cast %287 : vector<1x8x8xbf16> to vector<1x1x1x8x8xbf16>
    tpu.vector_store %arg18[%c1_151, %c0_152, %c3_153, %c0_154, %c0_155], %290 {strides = array<i32>} : memref<2x1x4x8x8xbf16, #tpu.memory_space<vmem>>, vector<1x1x1x8x8xbf16>,
    %291 = arith.truncf %286 : vector<1x8x8xf32> to vector<1x8x8xbf16>
    "tpu.trace_start"() <{level = 10 : i32, message = "bqk,bkd->bqd"}> : () -> ()
    %cst_156 = arith.constant dense<0.000000e+00> : vector<1x8x8xf32>
    %292 = tpu.matmul %291, %274, %cst_156 {dimension_numbers = #tpu.dot_dimension_numbers<[2], [1], [1], [2], [0, 0, 0, 1, 1, 2], [0], [0]>} : vector<1x8x8xbf16>, vector<1x8x8xbf16>, vector<1x8x8xf32> -> vector<1x8x8xf32>
    "tpu.trace_stop"() : () -> ()
    %c0_157 = arith.constant 0 : index
    %c0_158 = arith.constant 0 : index
    %c24_159 = arith.constant 24 : index
    %293 = vector.load %arg19[%c0_157, %c0_158, %c24_159] : memref<1x8x32xf32, #tpu.memory_space<vmem>>, vector<1x8x8xf32>
    tpu.vector_store %arg19[%c0_157, %c0_158, %c24_159], %292 {strides = array<i32>} : memref<1x8x32xf32, #tpu.memory_space<vmem>>, vector<1x8x8xf32>,
    %c0_160 = arith.constant 0 : index
    %c0_161 = arith.constant 0 : index
    %c0_162 = arith.constant 0 : index
    %294 = vector.load %arg19[%c0_160, %c0_161, %c0_162] : memref<1x8x32xf32, #tpu.memory_space<vmem>>, vector<1x8x32xf32>
    %295 = vector.shape_cast %294 : vector<1x8x32xf32> to vector<8x32xf32>
    %296 = arith.truncf %295 : vector<8x32xf32> to vector<8x32xbf16>
    %c1_163 = arith.constant 1 : index
    %c0_164 = arith.constant 0 : index
    %c0_165 = arith.constant 0 : index
    %297 = vector.load %arg5[%c1_163, %c0_164, %c0_165] : memref<2x32x32xbf16, #tpu.memory_space<vmem>>, vector<1x32x32xbf16>
    %298 = vector.shape_cast %297 : vector<1x32x32xbf16> to vector<32x32xbf16>
    %cst_166 = arith.constant dense<0.000000e+00> : vector<8x32xf32>
    %299 = tpu.matmul %296, %298, %cst_166 {dimension_numbers = #tpu.dot_dimension_numbers<[1], [0], [0], [1], [0, 0, 1, 1], [], []>} : vector<8x32xbf16>, vector<32x32xbf16>, vector<8x32xf32> -> vector<8x32xf32>
    %c1_167 = arith.constant 1 : index
    %c0_168 = arith.constant 0 : index
    %c0_169 = arith.constant 0 : index
    %300 = vector.load %arg6[%c1_167, %c0_168, %c0_169] : memref<2x1x32xf32, #tpu.memory_space<vmem>>, vector<1x1x32xf32>
    %301 = vector.shape_cast %300 : vector<1x1x32xf32> to vector<1x32xf32>
    %302 = vector.broadcast %301 : vector<1x32xf32> to vector<8x32xf32>
    %303 = arith.addf %299, %302 : vector<8x32xf32>
    %304 = arith.addf %186, %303 : vector<8x32xf32>
    %c1_170 = arith.constant 1 : index
    %c0_171 = arith.constant 0 : index
    %c0_172 = arith.constant 0 : index
    %305 = vector.load %arg11[%c1_170, %c0_171, %c0_172] : memref<2x1x32xf32, #tpu.memory_space<vmem>>, vector<1x1x32xf32>
    %306 = vector.shape_cast %305 : vector<1x1x32xf32> to vector<1x32xf32>
    %c1_173 = arith.constant 1 : index
    %c0_174 = arith.constant 0 : index
    %c0_175 = arith.constant 0 : index
    %307 = vector.load %arg12[%c1_173, %c0_174, %c0_175] : memref<2x1x32xf32, #tpu.memory_space<vmem>>, vector<1x1x32xf32>
    %308 = vector.shape_cast %307 : vector<1x1x32xf32> to vector<1x32xf32>
    %cst_176 = arith.constant dense<0.000000e+00> : vector<8xf32>
    %309 = vector.multi_reduction <add>, %304, %cst_176 [1] : vector<8x32xf32> to vector<8xf32>
    %310 = vector.shape_cast %309 : vector<8xf32> to vector<8x1xf32>
    %cst_177 = arith.constant 3.125000e-02 : f32
    %311 = vector.broadcast %cst_177 : f32 to vector<8x1xf32>
    %312 = arith.mulf %310, %311 : vector<8x1xf32>
    %313 = vector.broadcast %312 : vector<8x1xf32> to vector<8x32xf32>
    %314 = arith.subf %304, %313 : vector<8x32xf32>
    %315 = arith.mulf %314, %314 : vector<8x32xf32>
    %cst_178 = arith.constant dense<0.000000e+00> : vector<8xf32>
    %316 = vector.multi_reduction <add>, %315, %cst_178 [1] : vector<8x32xf32> to vector<8xf32>
    %317 = vector.shape_cast %316 : vector<8xf32> to vector<8x1xf32>
    %cst_179 = arith.constant 3.125000e-02 : f32
    %318 = vector.broadcast %cst_179 : f32 to vector<8x1xf32>
    %319 = arith.mulf %317, %318 : vector<8x1xf32>
    %cst_180 = arith.constant 9.99999974E-6 : f32
    %320 = vector.broadcast %cst_180 : f32 to vector<8x1xf32>
    %321 = arith.addf %319, %320 : vector<8x1xf32>
    %322 = math.rsqrt %321 : vector<8x1xf32>
    %323 = vector.broadcast %322 : vector<8x1xf32> to vector<8x32xf32>
    %324 = arith.mulf %314, %323 : vector<8x32xf32>
    %325 = vector.broadcast %306 : vector<1x32xf32> to vector<8x32xf32>
    %326 = arith.mulf %324, %325 : vector<8x32xf32>
    %327 = vector.broadcast %308 : vector<1x32xf32> to vector<8x32xf32>
    %328 = arith.addf %326, %327 : vector<8x32xf32>
    %329 = arith.truncf %328 : vector<8x32xf32> to vector<8x32xbf16>
    %c1_181 = arith.constant 1 : index
    %c0_182 = arith.constant 0 : index
    %c0_183 = arith.constant 0 : index
    %330 = vector.load %arg7[%c1_181, %c0_182, %c0_183] : memref<2x32x64xbf16, #tpu.memory_space<vmem>>, vector<1x32x64xbf16>
    %331 = vector.shape_cast %330 : vector<1x32x64xbf16> to vector<32x64xbf16>
    %cst_184 = arith.constant dense<0.000000e+00> : vector<8x64xf32>
    %332 = tpu.matmul %329, %331, %cst_184 {dimension_numbers = #tpu.dot_dimension_numbers<[1], [0], [0], [1], [0, 0, 1, 1], [], []>} : vector<8x32xbf16>, vector<32x64xbf16>, vector<8x64xf32> -> vector<8x64xf32>
    %c1_185 = arith.constant 1 : index
    %c0_186 = arith.constant 0 : index
    %c0_187 = arith.constant 0 : index
    %333 = vector.load %arg8[%c1_185, %c0_186, %c0_187] : memref<2x1x64xf32, #tpu.memory_space<vmem>>, vector<1x1x64xf32>
    %334 = vector.shape_cast %333 : vector<1x1x64xf32> to vector<1x64xf32>
    %335 = vector.broadcast %334 : vector<1x64xf32> to vector<8x64xf32>
    %336 = arith.addf %332, %335 : vector<8x64xf32>
    %cst_188 = arith.constant 0.000000e+00 : f32
    %337 = vector.broadcast %cst_188 : f32 to vector<8x64xf32>
    %338 = arith.maximumf %336, %337 : vector<8x64xf32>
    %339 = arith.truncf %338 : vector<8x64xf32> to vector<8x64xbf16>
    %c1_189 = arith.constant 1 : index
    %c0_190 = arith.constant 0 : index
    %c0_191 = arith.constant 0 : index
    %340 = vector.load %arg9[%c1_189, %c0_190, %c0_191] : memref<2x64x32xbf16, #tpu.memory_space<vmem>>, vector<1x64x32xbf16>
    %341 = vector.shape_cast %340 : vector<1x64x32xbf16> to vector<64x32xbf16>
    %cst_192 = arith.constant dense<0.000000e+00> : vector<8x32xf32>
    %342 = tpu.matmul %339, %341, %cst_192 {dimension_numbers = #tpu.dot_dimension_numbers<[1], [0], [0], [1], [0, 0, 1, 1], [], []>} : vector<8x64xbf16>, vector<64x32xbf16>, vector<8x32xf32> -> vector<8x32xf32>
    %c1_193 = arith.constant 1 : index
    %c0_194 = arith.constant 0 : index
    %c0_195 = arith.constant 0 : index
    %343 = vector.load %arg10[%c1_193, %c0_194, %c0_195] : memref<2x1x32xf32, #tpu.memory_space<vmem>>, vector<1x1x32xf32>
    %344 = vector.shape_cast %343 : vector<1x1x32xf32> to vector<1x32xf32>
    %345 = vector.broadcast %344 : vector<1x32xf32> to vector<8x32xf32>
    %346 = arith.addf %342, %345 : vector<8x32xf32>
    %347 = arith.addf %328, %346 : vector<8x32xf32>
    %c1_196 = arith.constant 1 : index
    %c0_197 = arith.constant 0 : index
    %c0_198 = arith.constant 0 : index
    %348 = vector.load %arg13[%c1_196, %c0_197, %c0_198] : memref<2x1x32xf32, #tpu.memory_space<vmem>>, vector<1x1x32xf32>
    %349 = vector.shape_cast %348 : vector<1x1x32xf32> to vector<1x32xf32>
    %c1_199 = arith.constant 1 : index
    %c0_200 = arith.constant 0 : index
    %c0_201 = arith.constant 0 : index
    %350 = vector.load %arg14[%c1_199, %c0_200, %c0_201] : memref<2x1x32xf32, #tpu.memory_space<vmem>>, vector<1x1x32xf32>
    %351 = vector.shape_cast %350 : vector<1x1x32xf32> to vector<1x32xf32>
    %cst_202 = arith.constant dense<0.000000e+00> : vector<8xf32>
    %352 = vector.multi_reduction <add>, %347, %cst_202 [1] : vector<8x32xf32> to vector<8xf32>
    %353 = vector.shape_cast %352 : vector<8xf32> to vector<8x1xf32>
    %cst_203 = arith.constant 3.125000e-02 : f32
    %354 = vector.broadcast %cst_203 : f32 to vector<8x1xf32>
    %355 = arith.mulf %353, %354 : vector<8x1xf32>
    %356 = vector.broadcast %355 : vector<8x1xf32> to vector<8x32xf32>
    %357 = arith.subf %347, %356 : vector<8x32xf32>
    %358 = arith.mulf %357, %357 : vector<8x32xf32>
    %cst_204 = arith.constant dense<0.000000e+00> : vector<8xf32>
    %359 = vector.multi_reduction <add>, %358, %cst_204 [1] : vector<8x32xf32> to vector<8xf32>
    %360 = vector.shape_cast %359 : vector<8xf32> to vector<8x1xf32>
    %cst_205 = arith.constant 3.125000e-02 : f32
    %361 = vector.broadcast %cst_205 : f32 to vector<8x1xf32>
    %362 = arith.mulf %360, %361 : vector<8x1xf32>
    %cst_206 = arith.constant 9.99999974E-6 : f32
    %363 = vector.broadcast %cst_206 : f32 to vector<8x1xf32>
    %364 = arith.addf %362, %363 : vector<8x1xf32>
    %365 = math.rsqrt %364 : vector<8x1xf32>
    %366 = vector.broadcast %365 : vector<8x1xf32> to vector<8x32xf32>
    %367 = arith.mulf %357, %366 : vector<8x32xf32>
    %368 = vector.broadcast %349 : vector<1x32xf32> to vector<8x32xf32>
    %369 = arith.mulf %367, %368 : vector<8x32xf32>
    %370 = vector.broadcast %351 : vector<1x32xf32> to vector<8x32xf32>
    %371 = arith.addf %369, %370 : vector<8x32xf32>
    %c0_207 = arith.constant 0 : index
    %c0_208 = arith.constant 0 : index
    %372 = vector.load %arg15[%c0_207, %c0_208] : memref<1x32xf32, #tpu.memory_space<vmem>>, vector<1x32xf32>
    %c0_209 = arith.constant 0 : index
    %c0_210 = arith.constant 0 : index
    %373 = vector.load %arg16[%c0_209, %c0_210] : memref<1x32xf32, #tpu.memory_space<vmem>>, vector<1x32xf32>
    %cst_211 = arith.constant dense<0.000000e+00> : vector<8xf32>
    %374 = vector.multi_reduction <add>, %371, %cst_211 [1] : vector<8x32xf32> to vector<8xf32>
    %375 = vector.shape_cast %374 : vector<8xf32> to vector<8x1xf32>
    %cst_212 = arith.constant 3.125000e-02 : f32
    %376 = vector.broadcast %cst_212 : f32 to vector<8x1xf32>
    %377 = arith.mulf %375, %376 : vector<8x1xf32>
    %378 = vector.broadcast %377 : vector<8x1xf32> to vector<8x32xf32>
    %379 = arith.subf %371, %378 : vector<8x32xf32>
    %380 = arith.mulf %379, %379 : vector<8x32xf32>
    %cst_213 = arith.constant dense<0.000000e+00> : vector<8xf32>
    %381 = vector.multi_reduction <add>, %380, %cst_213 [1] : vector<8x32xf32> to vector<8xf32>
    %382 = vector.shape_cast %381 : vector<8xf32> to vector<8x1xf32>
    %cst_214 = arith.constant 3.125000e-02 : f32
    %383 = vector.broadcast %cst_214 : f32 to vector<8x1xf32>
    %384 = arith.mulf %382, %383 : vector<8x1xf32>
    %cst_215 = arith.constant 9.99999974E-6 : f32
    %385 = vector.broadcast %cst_215 : f32 to vector<8x1xf32>
    %386 = arith.addf %384, %385 : vector<8x1xf32>
    %387 = math.rsqrt %386 : vector<8x1xf32>
    %388 = vector.broadcast %387 : vector<8x1xf32> to vector<8x32xf32>
    %389 = arith.mulf %379, %388 : vector<8x32xf32>
    %390 = vector.broadcast %372 : vector<1x32xf32> to vector<8x32xf32>
    %391 = arith.mulf %389, %390 : vector<8x32xf32>
    %392 = vector.broadcast %373 : vector<1x32xf32> to vector<8x32xf32>
    %393 = arith.addf %391, %392 : vector<8x32xf32>
    %394 = vector.shape_cast %393 : vector<8x32xf32> to vector<1x8x32xf32>
    %c0_216 = arith.constant 0 : index
    %c0_217 = arith.constant 0 : index
    %c0_218 = arith.constant 0 : index
    %395 = vector.load %arg17[%c0_216, %c0_217, %c0_218] : memref<1x8x32xf32, #tpu.memory_space<vmem>>, vector<1x8x32xf32>
    tpu.vector_store %arg17[%c0_216, %c0_217, %c0_218], %394 {strides = array<i32>} : memref<1x8x32xf32, #tpu.memory_space<vmem>>, vector<1x8x32xf32>,
    return
  }
  func.func @transform_0(%arg0: i32) -> (i32, i32, i32) {
    %c0_i32 = arith.constant 0 : i32
    %c0_i32_0 = arith.constant 0 : i32
    %c0_i32_1 = arith.constant 0 : i32
    return %arg0, %c0_i32, %c0_i32_0 : i32, i32, i32
  }
  func.func @transform_1(%arg0: i32) -> (i32, i32, i32) {
    %c0_i32 = arith.constant 0 : i32
    %c0_i32_0 = arith.constant 0 : i32
    %c0_i32_1 = arith.constant 0 : i32
    %c0_i32_2 = arith.constant 0 : i32
    return %c0_i32, %c0_i32_0, %c0_i32_1 : i32, i32, i32
  }
  func.func @transform_2(%arg0: i32) -> (i32, i32, i32) {
    %c0_i32 = arith.constant 0 : i32
    %c0_i32_0 = arith.constant 0 : i32
    %c0_i32_1 = arith.constant 0 : i32
    %c0_i32_2 = arith.constant 0 : i32
    return %c0_i32, %c0_i32_0, %c0_i32_1 : i32, i32, i32
  }
  func.func @transform_3(%arg0: i32) -> (i32, i32, i32) {
    %c0_i32 = arith.constant 0 : i32
    %c0_i32_0 = arith.constant 0 : i32
    %c0_i32_1 = arith.constant 0 : i32
    %c0_i32_2 = arith.constant 0 : i32
    return %c0_i32, %c0_i32_0, %c0_i32_1 : i32, i32, i32
  }
  func.func @transform_4(%arg0: i32) -> (i32, i32, i32) {
    %c0_i32 = arith.constant 0 : i32
    %c0_i32_0 = arith.constant 0 : i32
    %c0_i32_1 = arith.constant 0 : i32
    %c0_i32_2 = arith.constant 0 : i32
    return %c0_i32, %c0_i32_0, %c0_i32_1 : i32, i32, i32
  }
  func.func @transform_5(%arg0: i32) -> (i32, i32, i32) {
    %c0_i32 = arith.constant 0 : i32
    %c0_i32_0 = arith.constant 0 : i32
    %c0_i32_1 = arith.constant 0 : i32
    %c0_i32_2 = arith.constant 0 : i32
    return %c0_i32, %c0_i32_0, %c0_i32_1 : i32, i32, i32
  }
  func.func @transform_6(%arg0: i32) -> (i32, i32, i32) {
    %c0_i32 = arith.constant 0 : i32
    %c0_i32_0 = arith.constant 0 : i32
    %c0_i32_1 = arith.constant 0 : i32
    %c0_i32_2 = arith.constant 0 : i32
    return %c0_i32, %c0_i32_0, %c0_i32_1 : i32, i32, i32
  }
  func.func @transform_7(%arg0: i32) -> (i32, i32, i32) {
    %c0_i32 = arith.constant 0 : i32
    %c0_i32_0 = arith.constant 0 : i32
    %c0_i32_1 = arith.constant 0 : i32
    %c0_i32_2 = arith.constant 0 : i32
    return %c0_i32, %c0_i32_0, %c0_i32_1 : i32, i32, i32
  }
  func.func @transform_8(%arg0: i32) -> (i32, i32, i32) {
    %c0_i32 = arith.constant 0 : i32
    %c0_i32_0 = arith.constant 0 : i32
    %c0_i32_1 = arith.constant 0 : i32
    %c0_i32_2 = arith.constant 0 : i32
    return %c0_i32, %c0_i32_0, %c0_i32_1 : i32, i32, i32
  }
  func.func @transform_9(%arg0: i32) -> (i32, i32, i32) {
    %c0_i32 = arith.constant 0 : i32
    %c0_i32_0 = arith.constant 0 : i32
    %c0_i32_1 = arith.constant 0 : i32
    %c0_i32_2 = arith.constant 0 : i32
    return %c0_i32, %c0_i32_0, %c0_i32_1 : i32, i32, i32
  }
  func.func @transform_10(%arg0: i32) -> (i32, i32, i32) {
    %c0_i32 = arith.constant 0 : i32
    %c0_i32_0 = arith.constant 0 : i32
    %c0_i32_1 = arith.constant 0 : i32
    %c0_i32_2 = arith.constant 0 : i32
    return %c0_i32, %c0_i32_0, %c0_i32_1 : i32, i32, i32
  }
  func.func @transform_11(%arg0: i32) -> (i32, i32, i32) {
    %c0_i32 = arith.constant 0 : i32
    %c0_i32_0 = arith.constant 0 : i32
    %c0_i32_1 = arith.constant 0 : i32
    %c0_i32_2 = arith.constant 0 : i32
    return %c0_i32, %c0_i32_0, %c0_i32_1 : i32, i32, i32
  }
  func.func @transform_12(%arg0: i32) -> (i32, i32, i32) {
    %c0_i32 = arith.constant 0 : i32
    %c0_i32_0 = arith.constant 0 : i32
    %c0_i32_1 = arith.constant 0 : i32
    %c0_i32_2 = arith.constant 0 : i32
    return %c0_i32, %c0_i32_0, %c0_i32_1 : i32, i32, i32
  }
  func.func @transform_13(%arg0: i32) -> (i32, i32, i32) {
    %c0_i32 = arith.constant 0 : i32
    %c0_i32_0 = arith.constant 0 : i32
    %c0_i32_1 = arith.constant 0 : i32
    %c0_i32_2 = arith.constant 0 : i32
    return %c0_i32, %c0_i32_0, %c0_i32_1 : i32, i32, i32
  }
  func.func @transform_14(%arg0: i32) -> (i32, i32) {
    %c0_i32 = arith.constant 0 : i32
    %c0_i32_0 = arith.constant 0 : i32
    %c0_i32_1 = arith.constant 0 : i32
    return %c0_i32, %c0_i32_0 : i32, i32
  }
  func.func @transform_15(%arg0: i32) -> (i32, i32) {
    %c0_i32 = arith.constant 0 : i32
    %c0_i32_0 = arith.constant 0 : i32
    %c0_i32_1 = arith.constant 0 : i32
    return %c0_i32, %c0_i32_0 : i32, i32
  }
  func.func @transform_16(%arg0: i32) -> (i32, i32, i32) {
    %c0_i32 = arith.constant 0 : i32
    %c0_i32_0 = arith.constant 0 : i32
    %c0_i32_1 = arith.constant 0 : i32
    return %arg0, %c0_i32, %c0_i32_0 : i32, i32, i32
  }
  func.func @transform_17(%arg0: i32) -> (i32, i32, i32, i32, i32) {
    %c0_i32 = arith.constant 0 : i32
    %c0_i32_0 = arith.constant 0 : i32
    %c0_i32_1 = arith.constant 0 : i32
    %c0_i32_2 = arith.constant 0 : i32
    %c0_i32_3 = arith.constant 0 : i32
    return %c0_i32, %arg0, %c0_i32_0, %c0_i32_1, %c0_i32_2 : i32, i32, i32, i32, i32
  }
}

</mosaic_0001>

<llo_original>
// kernel: tpu_custom_call.1
$region0: #{tpu_custom_call.1}
  #allocation0 [shape = 'u32[]', space=smem, size = 0x4, offset = 0x4, fixed_abs, tag = 'smem constant byte address 0x4 - core index']
  #allocation1 [shape = 'u32[144,128]{1,0:T(1,128)}', space=vmem, size = 0x12000, scoped, tag = 'internal scratch']
  #allocation2 [shape = 'f32[1,8,32]{2,1,0:T(8,128)}', space=vmem, size = 0x1000, scoped, tag = 'scratch operand']
  #allocation11 [shape = 's32[]', space=sflag, size = 0x4, offset = 0, fixed_abs, tag = 'sflag constant byte address 0x0 - dummy sync flag']
  %s0 = inlined_call_operand.hbm [shape: f32[2,8,32], index: 0, kind: input, shape index: {}]
  %s1 = inlined_call_operand.hbm [shape: f32[2,8,64], index: 1, kind: input, shape index: {}]
  %s2 = inlined_call_operand.vmem [shape: bf16[2,32,96], index: 2, kind: input, shape index: {}]
  %s3 = inlined_call_operand.vmem [shape: f32[2,1,96], index: 3, kind: input, shape index: {}]
  %s4 = inlined_call_operand.vmem [shape: bf16[2,32,32], index: 4, kind: input, shape index: {}]
  %s5 = inlined_call_operand.vmem [shape: f32[2,1,32], index: 5, kind: input, shape index: {}]
  %s6 = inlined_call_operand.vmem [shape: bf16[2,32,64], index: 6, kind: input, shape index: {}]
  %s7 = inlined_call_operand.vmem [shape: f32[2,1,64], index: 7, kind: input, shape index: {}]
  %s8 = inlined_call_operand.vmem [shape: bf16[2,64,32], index: 8, kind: input, shape index: {}]
  %s9 = inlined_call_operand.vmem [shape: f32[2,1,32], index: 9, kind: input, shape index: {}]
  %s10 = inlined_call_operand.vmem [shape: f32[2,1,32], index: 10, kind: input, shape index: {}]
  %s11 = inlined_call_operand.vmem [shape: f32[2,1,32], index: 11, kind: input, shape index: {}]
  %s12 = inlined_call_operand.vmem [shape: f32[2,1,32], index: 12, kind: input, shape index: {}]
  %s13 = inlined_call_operand.vmem [shape: f32[2,1,32], index: 13, kind: input, shape index: {}]
  %s14 = inlined_call_operand.vmem [shape: f32[1,32], index: 14, kind: input, shape index: {}]
  %s15 = inlined_call_operand.vmem [shape: f32[1,32], index: 15, kind: input, shape index: {}]
  %s16 = inlined_call_operand.hbm [shape: f32[2,8,32], index: 16, kind: output, shape index: {0}]
  %s17 = inlined_call_operand.hbm [shape: bf16[2,2,4,8,8], index: 17, kind: output, shape index: {1}]
  %18 = xla_tuple %s16, %s17
  %s19 = sld [smem:[#allocation0]]
  $region113: #{tpu_custom_call.1} parent=0
    _
  %s21 = ssub.s32 1, %s19
  %s22 = scalar_select 0, %s21, %s19
  $region1: #{tpu_custom_call.1} parent=0
    #allocation3 [shape = 'u8[8192]{0}', space=vmem, size = 0x2000, scoped, tag = 'input window, operand 0']
    #allocation4 [shape = 's32[2]{0}', space=sflag, size = 0x8, scoped, tag = 'scoped memory for tpu_custom_call.1']
    #allocation5 [shape = 's32[2]{0}', space=sflag, size = 0x8, scoped, tag = 'scoped memory for tpu_custom_call.1']
    #allocation6 [shape = 'u8[8192]{0}', space=vmem, size = 0x2000, scoped, tag = 'input window, operand 1, single buffered']
    #allocation7 [shape = 's32[1]{0}', space=sflag, size = 0x4, scoped, tag = 'scoped memory for tpu_custom_call.1']
    #allocation8 [shape = 'u8[8192]{0}', space=vmem, size = 0x2000, scoped, tag = 'output window, operand 0']
    #allocation9 [shape = 'u8[32768]{0}', space=vmem, size = 0x8000, scoped, tag = 'output window, operand 1']
    #allocation10 [shape = 's32[2]{0}', space=sflag, size = 0x8, scoped, tag = 'scoped memory for tpu_custom_call.1']
    %23 = vsyncpa [#allocation4], 0
    %s24 = scalar_lea.sflag [#allocation4], 1
    %25 = vsyncpa %s24, 0
    %26 = vsyncpa [#allocation7], 0
    %27 = vsyncpa [#allocation5], 0
    %s28 = scalar_lea.sflag [#allocation5], 1
    %29 = vsyncpa %s28, 0
    %30 = vsyncpa [#allocation10], 0
    %s31 = scalar_lea.sflag [#allocation10], 1
    %32 = vsyncpa %s31, 0
    loop: start=0, step=1, limit=4
    $region2: #{tpu_custom_call.1} parent=1 // loop_pre_header
      _
    $region3: #{tpu_custom_call.1} parent=1 // loop_header
      %s34 = sphi 0, %s38
      %p35 = scmp.ge.s32.totalorder %s34, 4
      %s44 = sphi 0, %s46
      %s47 = sphi 0, %s44
      %s48 = sphi 0, %s47
      %s64 = sphi 0, %s48
      %s68 = sphi 0, %s68
      %s70 = sphi 0, %s68
      %s71 = sphi 0, %s70
      %s85 = sphi 0, %s71
      %s89 = sphi 0, %s89
      %s91 = sphi 0, %s89
      %s92 = sphi 0, %s91
      %s106 = sphi 0, %s92
      %s110 = sphi 0, %s110
      %s112 = sphi 0, %s110
      %s113 = sphi 0, %s112
      %s127 = sphi 0, %s113
      %s131 = sphi 0, %s131
      %s133 = sphi 0, %s131
      %s134 = sphi 0, %s133
      %s148 = sphi 0, %s134
      %s152 = sphi 0, %s152
      %s154 = sphi 0, %s152
      %s155 = sphi 0, %s154
      %s169 = sphi 0, %s155
      %s173 = sphi 0, %s173
      %s175 = sphi 0, %s173
      %s176 = sphi 0, %s175
      %s190 = sphi 0, %s176
      %s194 = sphi 0, %s194
      %s196 = sphi 0, %s194
      %s197 = sphi 0, %s196
      %s211 = sphi 0, %s197
      %s215 = sphi 0, %s215
      %s217 = sphi 0, %s215
      %s218 = sphi 0, %s217
      %s232 = sphi 0, %s218
      %s236 = sphi 0, %s236
      %s238 = sphi 0, %s236
      %s239 = sphi 0, %s238
      %s253 = sphi 0, %s239
      %s257 = sphi 0, %s257
      %s259 = sphi 0, %s257
      %s260 = sphi 0, %s259
      %s274 = sphi 0, %s260
      %s278 = sphi 0, %s278
      %s280 = sphi 0, %s278
      %s281 = sphi 0, %s280
      %s295 = sphi 0, %s281
      %s299 = sphi 0, %s299
      %s301 = sphi 0, %s299
      %s302 = sphi 0, %s301
      %s316 = sphi 0, %s302
      %s320 = sphi 0, %s320
      %s322 = sphi 0, %s320
      %s323 = sphi 0, %s322
      %s337 = sphi 0, %s323
      %s341 = sphi 0, %s341
      %s343 = sphi 0, %s341
      %s344 = sphi 0, %s343
      %s358 = sphi 0, %s344
      %s362 = sphi 0, %s362
      %s364 = sphi 0, %s362
      %s365 = sphi 0, %s364
      %s379 = sphi 0, %s365
      %s385 = sphi 0, %s387
      %s388 = sphi 0, %s385
      %s389 = sphi 0, %s388
      %s405 = sphi 0, %s389
      %s411 = sphi 0, %s413
      %s414 = sphi 0, %s411
      %s415 = sphi 0, %s414
      %s431 = sphi 0, %s415
    $region4: #{tpu_custom_call.1} parent=1 // loop_header_branch
      %37 = sbr.rel (%p35) target = $region8
    $region5: #{tpu_custom_call.1} parent=1 // loop_body
      %s39 = ssub.s32 %s34, 1
      %s40 = ssub.s32 %s34, 2
      %s41 = sadd.s32 %s34, 1
      %s42 = ssub.s32 %s34, %s41
      %p43 = scmp.eq.s32.totalorder %s42, 0
      %s45 = sadd.s32 %s44, 1
      %s46 = scalar_select %p43, %s44, %s45
      %p49 = pneg %p43
      %p50 = scmp.eq.s32.totalorder %s34, 1
      %p51 = por %p49, %p50
      %p52 = scmp.ne.s32.totalorder %s44, %s47
      %p53 = scmp.eq.s32.totalorder %s34, 0
      %p54 = por %p52, %p53
      %p55 = scmp.ne.s32.totalorder %s44, %s47
      %p56 = scmp.eq.s32.totalorder %s39, 1
      %p57 = por %p55, %p56
      %p58 = scmp.ne.s32.totalorder %s47, %s48
      %p59 = scmp.eq.s32.totalorder %s39, 0
      %p60 = por %p58, %p59
      %p61 = scmp.ne.s32.totalorder %s47, %s48
      %p62 = scmp.eq.s32.totalorder %s40, 1
      %p63 = por %p61, %p62
      %p65 = scmp.ne.s32.totalorder %s48, %s64
      %p66 = scmp.eq.s32.totalorder %s40, 0
      %p67 = por %p65, %p66
      %s69 = sadd.s32 %s68, 1
      %p72 = scmp.eq.s32.totalorder %s34, 1
      %p73 = scmp.ne.s32.totalorder %s68, %s70
      %p74 = scmp.eq.s32.totalorder %s34, 0
      %p75 = por %p73, %p74
      %p76 = scmp.ne.s32.totalorder %s68, %s70
      %p77 = scmp.eq.s32.totalorder %s39, 1
      %p78 = por %p76, %p77
      %p79 = scmp.ne.s32.totalorder %s70, %s71
      %p80 = scmp.eq.s32.totalorder %s39, 0
      %p81 = por %p79, %p80
      %p82 = scmp.ne.s32.totalorder %s70, %s71
      %p83 = scmp.eq.s32.totalorder %s40, 1
      %p84 = por %p82, %p83
      %p86 = scmp.ne.s32.totalorder %s71, %s85
      %p87 = scmp.eq.s32.totalorder %s40, 0
      %p88 = por %p86, %p87
      %s90 = sadd.s32 %s89, 1
      %p93 = scmp.eq.s32.totalorder %s34, 1
      %p94 = scmp.ne.s32.totalorder %s89, %s91
      %p95 = scmp.eq.s32.totalorder %s34, 0
      %p96 = por %p94, %p95
      %p97 = scmp.ne.s32.totalorder %s89, %s91
      %p98 = scmp.eq.s32.totalorder %s39, 1
      %p99 = por %p97, %p98
      %p100 = scmp.ne.s32.totalorder %s91, %s92
      %p101 = scmp.eq.s32.totalorder %s39, 0
      %p102 = por %p100, %p101
      %p103 = scmp.ne.s32.totalorder %s91, %s92
      %p104 = scmp.eq.s32.totalorder %s40, 1
      %p105 = por %p103, %p104
      %p107 = scmp.ne.s32.totalorder %s92, %s106
      %p108 = scmp.eq.s32.totalorder %s40, 0
      %p109 = por %p107, %p108
      %s111 = sadd.s32 %s110, 1
      %p114 = scmp.eq.s32.totalorder %s34, 1
      %p115 = scmp.ne.s32.totalorder %s110, %s112
      %p116 = scmp.eq.s32.totalorder %s34, 0
      %p117 = por %p115, %p116
      %p118 = scmp.ne.s32.totalorder %s110, %s112
      %p119 = scmp.eq.s32.totalorder %s39, 1
      %p120 = por %p118, %p119
      %p121 = scmp.ne.s32.totalorder %s112, %s113
      %p122 = scmp.eq.s32.totalorder %s39, 0
      %p123 = por %p121, %p122
      %p124 = scmp.ne.s32.totalorder %s112, %s113
      %p125 = scmp.eq.s32.totalorder %s40, 1
      %p126 = por %p124, %p125
      %p128 = scmp.ne.s32.totalorder %s113, %s127
      %p129 = scmp.eq.s32.totalorder %s40, 0
      %p130 = por %p128, %p129
      %s132 = sadd.s32 %s131, 1
      %p135 = scmp.eq.s32.totalorder %s34, 1
      %p136 = scmp.ne.s32.totalorder %s131, %s133
      %p137 = scmp.eq.s32.totalorder %s34, 0
      %p138 = por %p136, %p137
      %p139 = scmp.ne.s32.totalorder %s131, %s133
      %p140 = scmp.eq.s32.totalorder %s39, 1
      %p141 = por %p139, %p140
      %p142 = scmp.ne.s32.totalorder %s133, %s134
      %p143 = scmp.eq.s32.totalorder %s39, 0
      %p144 = por %p142, %p143
      %p145 = scmp.ne.s32.totalorder %s133, %s134
      %p146 = scmp.eq.s32.totalorder %s40, 1
      %p147 = por %p145, %p146
      %p149 = scmp.ne.s32.totalorder %s134, %s148
      %p150 = scmp.eq.s32.totalorder %s40, 0
      %p151 = por %p149, %p150
      %s153 = sadd.s32 %s152, 1
      %p156 = scmp.eq.s32.totalorder %s34, 1
      %p157 = scmp.ne.s32.totalorder %s152, %s154
      %p158 = scmp.eq.s32.totalorder %s34, 0
      %p159 = por %p157, %p158
      %p160 = scmp.ne.s32.totalorder %s152, %s154
      %p161 = scmp.eq.s32.totalorder %s39, 1
      %p162 = por %p160, %p161
      %p163 = scmp.ne.s32.totalorder %s154, %s155
      %p164 = scmp.eq.s32.totalorder %s39, 0
      %p165 = por %p163, %p164
      %p166 = scmp.ne.s32.totalorder %s154, %s155
      %p167 = scmp.eq.s32.totalorder %s40, 1
      %p168 = por %p166, %p167
      %p170 = scmp.ne.s32.totalorder %s155, %s169
      %p171 = scmp.eq.s32.totalorder %s40, 0
      %p172 = por %p170, %p171
      %s174 = sadd.s32 %s173, 1
      %p177 = scmp.eq.s32.totalorder %s34, 1
      %p178 = scmp.ne.s32.totalorder %s173, %s175
      %p179 = scmp.eq.s32.totalorder %s34, 0
      %p180 = por %p178, %p179
      %p181 = scmp.ne.s32.totalorder %s173, %s175
      %p182 = scmp.eq.s32.totalorder %s39, 1
      %p183 = por %p181, %p182
      %p184 = scmp.ne.s32.totalorder %s175, %s176
      %p185 = scmp.eq.s32.totalorder %s39, 0
      %p186 = por %p184, %p185
      %p187 = scmp.ne.s32.totalorder %s175, %s176
      %p188 = scmp.eq.s32.totalorder %s40, 1
      %p189 = por %p187, %p188
      %p191 = scmp.ne.s32.totalorder %s176, %s190
      %p192 = scmp.eq.s32.totalorder %s40, 0
      %p193 = por %p191, %p192
      %s195 = sadd.s32 %s194, 1
      %p198 = scmp.eq.s32.totalorder %s34, 1
      %p199 = scmp.ne.s32.totalorder %s194, %s196
      %p200 = scmp.eq.s32.totalorder %s34, 0
      %p201 = por %p199, %p200
      %p202 = scmp.ne.s32.totalorder %s194, %s196
      %p203 = scmp.eq.s32.totalorder %s39, 1
      %p204 = por %p202, %p203
      %p205 = scmp.ne.s32.totalorder %s196, %s197
      %p206 = scmp.eq.s32.totalorder %s39, 0
      %p207 = por %p205, %p206
      %p208 = scmp.ne.s32.totalorder %s196, %s197
      %p209 = scmp.eq.s32.totalorder %s40, 1
      %p210 = por %p208, %p209
      %p212 = scmp.ne.s32.totalorder %s197, %s211
      %p213 = scmp.eq.s32.totalorder %s40, 0
      %p214 = por %p212, %p213
      %s216 = sadd.s32 %s215, 1
      %p219 = scmp.eq.s32.totalorder %s34, 1
      %p220 = scmp.ne.s32.totalorder %s215, %s217
      %p221 = scmp.eq.s32.totalorder %s34, 0
      %p222 = por %p220, %p221
      %p223 = scmp.ne.s32.totalorder %s215, %s217
      %p224 = scmp.eq.s32.totalorder %s39, 1
      %p225 = por %p223, %p224
      %p226 = scmp.ne.s32.totalorder %s217, %s218
      %p227 = scmp.eq.s32.totalorder %s39, 0
      %p228 = por %p226, %p227
      %p229 = scmp.ne.s32.totalorder %s217, %s218
      %p230 = scmp.eq.s32.totalorder %s40, 1
      %p231 = por %p229, %p230
      %p233 = scmp.ne.s32.totalorder %s218, %s232
      %p234 = scmp.eq.s32.totalorder %s40, 0
      %p235 = por %p233, %p234
      %s237 = sadd.s32 %s236, 1
      %p240 = scmp.eq.s32.totalorder %s34, 1
      %p241 = scmp.ne.s32.totalorder %s236, %s238
      %p242 = scmp.eq.s32.totalorder %s34, 0
      %p243 = por %p241, %p242
      %p244 = scmp.ne.s32.totalorder %s236, %s238
      %p245 = scmp.eq.s32.totalorder %s39, 1
      %p246 = por %p244, %p245
      %p247 = scmp.ne.s32.totalorder %s238, %s239
      %p248 = scmp.eq.s32.totalorder %s39, 0
      %p249 = por %p247, %p248
      %p250 = scmp.ne.s32.totalorder %s238, %s239
      %p251 = scmp.eq.s32.totalorder %s40, 1
      %p252 = por %p250, %p251
      %p254 = scmp.ne.s32.totalorder %s239, %s253
      %p255 = scmp.eq.s32.totalorder %s40, 0
      %p256 = por %p254, %p255
      %s258 = sadd.s32 %s257, 1
      %p261 = scmp.eq.s32.totalorder %s34, 1
      %p262 = scmp.ne.s32.totalorder %s257, %s259
      %p263 = scmp.eq.s32.totalorder %s34, 0
      %p264 = por %p262, %p263
      %p265 = scmp.ne.s32.totalorder %s257, %s259
      %p266 = scmp.eq.s32.totalorder %s39, 1
      %p267 = por %p265, %p266
      %p268 = scmp.ne.s32.totalorder %s259, %s260
      %p269 = scmp.eq.s32.totalorder %s39, 0
      %p270 = por %p268, %p269
      %p271 = scmp.ne.s32.totalorder %s259, %s260
      %p272 = scmp.eq.s32.totalorder %s40, 1
      %p273 = por %p271, %p272
      %p275 = scmp.ne.s32.totalorder %s260, %s274
      %p276 = scmp.eq.s32.totalorder %s40, 0
      %p277 = por %p275, %p276
      %s279 = sadd.s32 %s278, 1
      %p282 = scmp.eq.s32.totalorder %s34, 1
      %p283 = scmp.ne.s32.totalorder %s278, %s280
      %p284 = scmp.eq.s32.totalorder %s34, 0
      %p285 = por %p283, %p284
      %p286 = scmp.ne.s32.totalorder %s278, %s280
      %p287 = scmp.eq.s32.totalorder %s39, 1
      %p288 = por %p286, %p287
      %p289 = scmp.ne.s32.totalorder %s280, %s281
      %p290 = scmp.eq.s32.totalorder %s39, 0
      %p291 = por %p289, %p290
      %p292 = scmp.ne.s32.totalorder %s280, %s281
      %p293 = scmp.eq.s32.totalorder %s40, 1
      %p294 = por %p292, %p293
      %p296 = scmp.ne.s32.totalorder %s281, %s295
      %p297 = scmp.eq.s32.totalorder %s40, 0
      %p298 = por %p296, %p297
      %s300 = sadd.s32 %s299, 1
      %p303 = scmp.eq.s32.totalorder %s34, 1
      %p304 = scmp.ne.s32.totalorder %s299, %s301
      %p305 = scmp.eq.s32.totalorder %s34, 0
      %p306 = por %p304, %p305
      %p307 = scmp.ne.s32.totalorder %s299, %s301
      %p308 = scmp.eq.s32.totalorder %s39, 1
      %p309 = por %p307, %p308
      %p310 = scmp.ne.s32.totalorder %s301, %s302
      %p311 = scmp.eq.s32.totalorder %s39, 0
      %p312 = por %p310, %p311
      %p313 = scmp.ne.s32.totalorder %s301, %s302
      %p314 = scmp.eq.s32.totalorder %s40, 1
      %p315 = por %p313, %p314
      %p317 = scmp.ne.s32.totalorder %s302, %s316
      %p318 = scmp.eq.s32.totalorder %s40, 0
      %p319 = por %p317, %p318
      %s321 = sadd.s32 %s320, 1
      %p324 = scmp.eq.s32.totalorder %s34, 1
      %p325 = scmp.ne.s32.totalorder %s320, %s322
      %p326 = scmp.eq.s32.totalorder %s34, 0
      %p327 = por %p325, %p326
      %p328 = scmp.ne.s32.totalorder %s320, %s322
      %p329 = scmp.eq.s32.totalorder %s39, 1
      %p330 = por %p328, %p329
      %p331 = scmp.ne.s32.totalorder %s322, %s323
      %p332 = scmp.eq.s32.totalorder %s39, 0
      %p333 = por %p331, %p332
      %p334 = scmp.ne.s32.totalorder %s322, %s323
      %p335 = scmp.eq.s32.totalorder %s40, 1
      %p336 = por %p334, %p335
      %p338 = scmp.ne.s32.totalorder %s323, %s337
      %p339 = scmp.eq.s32.totalorder %s40, 0
      %p340 = por %p338, %p339
      %s342 = sadd.s32 %s341, 1
      %p345 = scmp.eq.s32.totalorder %s34, 1
      %p346 = scmp.ne.s32.totalorder %s341, %s343
      %p347 = scmp.eq.s32.totalorder %s34, 0
      %p348 = por %p346, %p347
      %p349 = scmp.ne.s32.totalorder %s341, %s343
      %p350 = scmp.eq.s32.totalorder %s39, 1
      %p351 = por %p349, %p350
      %p352 = scmp.ne.s32.totalorder %s343, %s344
      %p353 = scmp.eq.s32.totalorder %s39, 0
      %p354 = por %p352, %p353
      %p355 = scmp.ne.s32.totalorder %s343, %s344
      %p356 = scmp.eq.s32.totalorder %s40, 1
      %p357 = por %p355, %p356
      %p359 = scmp.ne.s32.totalorder %s344, %s358
      %p360 = scmp.eq.s32.totalorder %s40, 0
      %p361 = por %p359, %p360
      %s363 = sadd.s32 %s362, 1
      %p366 = scmp.eq.s32.totalorder %s34, 1
      %p367 = scmp.ne.s32.totalorder %s362, %s364
      %p368 = scmp.eq.s32.totalorder %s34, 0
      %p369 = por %p367, %p368
      %p370 = scmp.ne.s32.totalorder %s362, %s364
      %p371 = scmp.eq.s32.totalorder %s39, 1
      %p372 = por %p370, %p371
      %p373 = scmp.ne.s32.totalorder %s364, %s365
      %p374 = scmp.eq.s32.totalorder %s39, 0
      %p375 = por %p373, %p374
      %p376 = scmp.ne.s32.totalorder %s364, %s365
      %p377 = scmp.eq.s32.totalorder %s40, 1
      %p378 = por %p376, %p377
      %p380 = scmp.ne.s32.totalorder %s365, %s379
      %p381 = scmp.eq.s32.totalorder %s40, 0
      %p382 = por %p380, %p381
      %s383 = ssub.s32 %s34, %s41
      %p384 = scmp.eq.s32.totalorder %s383, 0
      %s386 = sadd.s32 %s385, 1
      %s387 = scalar_select %p384, %s385, %s386
      %p390 = pneg %p384
      %p391 = scmp.eq.s32.totalorder %s34, 1
      %p392 = por %p390, %p391
      %p393 = scmp.ne.s32.totalorder %s385, %s388
      %p394 = scmp.eq.s32.totalorder %s34, 0
      %p395 = por %p393, %p394
      %p396 = scmp.ne.s32.totalorder %s385, %s388
      %p397 = scmp.eq.s32.totalorder %s39, 1
      %p398 = por %p396, %p397
      %p399 = scmp.ne.s32.totalorder %s388, %s389
      %p400 = scmp.eq.s32.totalorder %s39, 0
      %p401 = por %p399, %p400
      %p402 = scmp.ne.s32.totalorder %s388, %s389
      %p403 = scmp.eq.s32.totalorder %s40, 1
      %p404 = por %p402, %p403
      %p406 = scmp.ne.s32.totalorder %s389, %s405
      %p407 = scmp.eq.s32.totalorder %s40, 0
      %p408 = por %p406, %p407
      %s409 = ssub.s32 %s34, %s41
      %p410 = scmp.eq.s32.totalorder %s409, 0
      %s412 = sadd.s32 %s411, 1
      %s413 = scalar_select %p410, %s411, %s412
      %p416 = pneg %p410
      %p417 = scmp.eq.s32.totalorder %s34, 1
      %p418 = por %p416, %p417
      %p419 = scmp.ne.s32.totalorder %s411, %s414
      %p420 = scmp.eq.s32.totalorder %s34, 0
      %p421 = por %p419, %p420
      %p422 = scmp.ne.s32.totalorder %s411, %s414
      %p423 = scmp.eq.s32.totalorder %s39, 1
      %p424 = por %p422, %p423
      %p425 = scmp.ne.s32.totalorder %s414, %s415
      %p426 = scmp.eq.s32.totalorder %s39, 0
      %p427 = por %p425, %p426
      %p428 = scmp.ne.s32.totalorder %s414, %s415
      %p429 = scmp.eq.s32.totalorder %s40, 1
      %p430 = por %p428, %p429
      %p432 = scmp.ne.s32.totalorder %s415, %s431
      %p433 = scmp.eq.s32.totalorder %s40, 0
      %p434 = por %p432, %p433
      %p435 = scmp.le.s32.totalorder 1, %s34
      %p436 = scmp.lt.s32.totalorder %s34, 3
      %p437 = pnand %p435, %p436
      %p438 = pneg %p437
      // Predicated region
      $region9: #{tpu_custom_call.1} parent=5 // pred_check
        _
      $region10: #{tpu_custom_call.1} parent=5 // pred_check_branch
        %440 = sbr.rel (%p437) target = $region12
      $region11: #{tpu_custom_call.1} parent=5 // pred_region
        %s441 = ssub.s32 %s34, 1
        // Predicated region
        $region13: #{tpu_custom_call.1} parent=11 // pred_check
          %p442 = pneg %p81
        $region14: #{tpu_custom_call.1} parent=11 // pred_check_branch
          %444 = sbr.rel (%p442) target = $region16
        $region15: #{tpu_custom_call.1} parent=11 // pred_region
          %s446 = ssub.s32 256, 256
          %447 = vsyncadd [#allocation7], %s446
          %s448 = sshll.u32 [#allocation6], 4
          %s449 = int_to_ptr.vmem [resolvable:$true] %s448
          %454 = dma.hbm_to_vmem [thread:$0]  %s1, 256, %s449, [#allocation7], 128, 128, 8
        $region16: #{tpu_custom_call.1} parent=11 // pred_fallthru
          _
        // Predicated region
        $region17: #{tpu_custom_call.1} parent=11 // pred_check
          %p455 = pneg %p102
        $region18: #{tpu_custom_call.1} parent=11 // pred_check_branch
          %457 = sbr.rel (%p455) target = $region20
        $region19: #{tpu_custom_call.1} parent=11 // pred_region
          _
        $region20: #{tpu_custom_call.1} parent=11 // pred_fallthru
          _
        // Predicated region
        $region21: #{tpu_custom_call.1} parent=11 // pred_check
          %p458 = pneg %p123
        $region22: #{tpu_custom_call.1} parent=11 // pred_check_branch
          %460 = sbr.rel (%p458) target = $region24
        $region23: #{tpu_custom_call.1} parent=11 // pred_region
          _
        $region24: #{tpu_custom_call.1} parent=11 // pred_fallthru
          _
        // Predicated region
        $region25: #{tpu_custom_call.1} parent=11 // pred_check
          %p461 = pneg %p144
        $region26: #{tpu_custom_call.1} parent=11 // pred_check_branch
          %463 = sbr.rel (%p461) target = $region28
        $region27: #{tpu_custom_call.1} parent=11 // pred_region
          _
        $region28: #{tpu_custom_call.1} parent=11 // pred_fallthru
          _
        // Predicated region
        $region29: #{tpu_custom_call.1} parent=11 // pred_check
          %p464 = pneg %p165
        $region30: #{tpu_custom_call.1} parent=11 // pred_check_branch
          %466 = sbr.rel (%p464) target = $region32
        $region31: #{tpu_custom_call.1} parent=11 // pred_region
          _
        $region32: #{tpu_custom_call.1} parent=11 // pred_fallthru
          _
        // Predicated region
        $region33: #{tpu_custom_call.1} parent=11 // pred_check
          %p467 = pneg %p186
        $region34: #{tpu_custom_call.1} parent=11 // pred_check_branch
          %469 = sbr.rel (%p467) target = $region36
        $region35: #{tpu_custom_call.1} parent=11 // pred_region
          _
        $region36: #{tpu_custom_call.1} parent=11 // pred_fallthru
          _
        // Predicated region
        $region37: #{tpu_custom_call.1} parent=11 // pred_check
          %p470 = pneg %p207
        $region38: #{tpu_custom_call.1} parent=11 // pred_check_branch
          %472 = sbr.rel (%p470) target = $region40
        $region39: #{tpu_custom_call.1} parent=11 // pred_region
          _
        $region40: #{tpu_custom_call.1} parent=11 // pred_fallthru
          _
        // Predicated region
        $region41: #{tpu_custom_call.1} parent=11 // pred_check
          %p473 = pneg %p228
        $region42: #{tpu_custom_call.1} parent=11 // pred_check_branch
          %475 = sbr.rel (%p473) target = $region44
        $region43: #{tpu_custom_call.1} parent=11 // pred_region
          _
        $region44: #{tpu_custom_call.1} parent=11 // pred_fallthru
          _
        // Predicated region
        $region45: #{tpu_custom_call.1} parent=11 // pred_check
          %p476 = pneg %p249
        $region46: #{tpu_custom_call.1} parent=11 // pred_check_branch
          %478 = sbr.rel (%p476) target = $region48
        $region47: #{tpu_custom_call.1} parent=11 // pred_region
          _
        $region48: #{tpu_custom_call.1} parent=11 // pred_fallthru
          _
        // Predicated region
        $region49: #{tpu_custom_call.1} parent=11 // pred_check
          %p479 = pneg %p270
        $region50: #{tpu_custom_call.1} parent=11 // pred_check_branch
          %481 = sbr.rel (%p479) target = $region52
        $region51: #{tpu_custom_call.1} parent=11 // pred_region
          _
        $region52: #{tpu_custom_call.1} parent=11 // pred_fallthru
          _
        // Predicated region
        $region53: #{tpu_custom_call.1} parent=11 // pred_check
          %p482 = pneg %p291
        $region54: #{tpu_custom_call.1} parent=11 // pred_check_branch
          %484 = sbr.rel (%p482) target = $region56
        $region55: #{tpu_custom_call.1} parent=11 // pred_region
          _
        $region56: #{tpu_custom_call.1} parent=11 // pred_fallthru
          _
        // Predicated region
        $region57: #{tpu_custom_call.1} parent=11 // pred_check
          %p485 = pneg %p312
        $region58: #{tpu_custom_call.1} parent=11 // pred_check_branch
          %487 = sbr.rel (%p485) target = $region60
        $region59: #{tpu_custom_call.1} parent=11 // pred_region
          _
        $region60: #{tpu_custom_call.1} parent=11 // pred_fallthru
          _
        // Predicated region
        $region61: #{tpu_custom_call.1} parent=11 // pred_check
          %p488 = pneg %p333
        $region62: #{tpu_custom_call.1} parent=11 // pred_check_branch
          %490 = sbr.rel (%p488) target = $region64
        $region63: #{tpu_custom_call.1} parent=11 // pred_region
          _
        $region64: #{tpu_custom_call.1} parent=11 // pred_fallthru
          _
        // Predicated region
        $region65: #{tpu_custom_call.1} parent=11 // pred_check
          %p491 = pneg %p354
        $region66: #{tpu_custom_call.1} parent=11 // pred_check_branch
          %493 = sbr.rel (%p491) target = $region68
        $region67: #{tpu_custom_call.1} parent=11 // pred_region
          _
        $region68: #{tpu_custom_call.1} parent=11 // pred_fallthru
          _
        // Predicated region
        $region69: #{tpu_custom_call.1} parent=11 // pred_check
          %p494 = pneg %p375
        $region70: #{tpu_custom_call.1} parent=11 // pred_check_branch
          %496 = sbr.rel (%p494) target = $region72
        $region71: #{tpu_custom_call.1} parent=11 // pred_region
          _
        $region72: #{tpu_custom_call.1} parent=11 // pred_fallthru
          _
      $region12: #{tpu_custom_call.1} parent=5 // pred_fallthru
        _
      %p497 = scmp.lt.s32.totalorder %s34, 2
      // Predicated region
      $region73: #{tpu_custom_call.1} parent=5 // pred_check
        %p498 = pneg %p497
      $region74: #{tpu_custom_call.1} parent=5 // pred_check_branch
        %500 = sbr.rel (%p498) target = $region76
      $region75: #{tpu_custom_call.1} parent=5 // pred_region
        // Predicated region
        $region77: #{tpu_custom_call.1} parent=75 // pred_check
          %p501 = pneg %p54
        $region78: #{tpu_custom_call.1} parent=75 // pred_check_branch
          %503 = sbr.rel (%p501) target = $region80
        $region79: #{tpu_custom_call.1} parent=75 // pred_region
          %s504 = sand.u32 %s44, 1
          %s505 = scalar_lea.sflag [#allocation4], %s504
          %s506 = sand.u32 %s44, 1
          %s507 = smul.addr %s506, 8
          %s508 = scalar_lea.vmem [#allocation3], %s507
          %s510 = ssub.s32 128, 128
          %511 = vsyncadd %s505, %s510
          %s512 = smul.addr %s34, 128
          %s513 = scalar_lea.hbm %s0, %s512
          %s515 = sshll.u32 %s508, 4
          %s516 = int_to_ptr.vmem [resolvable:$true] %s515
          %518 = dma.hbm_to_vmem [thread:$0]  %s513, 128, %s516, %s505
        $region80: #{tpu_custom_call.1} parent=75 // pred_fallthru
          _
      $region76: #{tpu_custom_call.1} parent=5 // pred_fallthru
        _
      %p519 = scmp.le.s32.totalorder 1, %s34
      %p520 = scmp.lt.s32.totalorder %s34, 3
      %p521 = pnand %p519, %p520
      %p522 = pneg %p521
      // Predicated region
      $region81: #{tpu_custom_call.1} parent=5 // pred_check
        _
      $region82: #{tpu_custom_call.1} parent=5 // pred_check_branch
        %524 = sbr.rel (%p521) target = $region84
      $region83: #{tpu_custom_call.1} parent=5 // pred_region
        %s525 = ssub.s32 %s34, 1
        %s526 = sand.u32 %s47, 1
        %s527 = scalar_lea.sflag [#allocation4], %s526
        %s528 = sand.u32 %s47, 1
        %s529 = smul.addr %s528, 8
        %s530 = scalar_lea.vmem [#allocation3], %s529
        // Predicated region
        $region85: #{tpu_custom_call.1} parent=83 // pred_check
          %p531 = pneg %p60
        $region86: #{tpu_custom_call.1} parent=83 // pred_check_branch
          %533 = sbr.rel (%p531) target = $region88
        $region87: #{tpu_custom_call.1} parent=83 // pred_region
          %534 = dma.done %s527, 128
        $region88: #{tpu_custom_call.1} parent=83 // pred_fallthru
          _
        // Predicated region
        $region89: #{tpu_custom_call.1} parent=83 // pred_check
          %p535 = pneg %p81
        $region90: #{tpu_custom_call.1} parent=83 // pred_check_branch
          %537 = sbr.rel (%p535) target = $region92
        $region91: #{tpu_custom_call.1} parent=83 // pred_region
          %538 = dma.done [#allocation7], 256
        $region92: #{tpu_custom_call.1} parent=83 // pred_fallthru
          _
        %s539 = sand.u32 %s47, 1
        %s540 = scalar_lea.sflag [#allocation4], %s539
        %s541 = sand.u32 %s47, 1
        %s542 = smul.addr %s541, 8
        %s543 = scalar_lea.vmem [#allocation3], %s542
        %p544 = pneg %p60
        %p545 = pneg %p57
        %p546 = pneg %p81
        %p547 = pneg %p78
        %p548 = pneg %p102
        %p549 = pneg %p99
        %p550 = pneg %p123
        %p551 = pneg %p120
        %p552 = pneg %p144
        %p553 = pneg %p141
        %p554 = pneg %p165
        %p555 = pneg %p162
        %p556 = pneg %p186
        %p557 = pneg %p183
        %p558 = pneg %p207
        %p559 = pneg %p204
        %p560 = pneg %p228
        %p561 = pneg %p225
        %p562 = pneg %p249
        %p563 = pneg %p246
        %p564 = pneg %p270
        %p565 = pneg %p267
        %p566 = pneg %p291
        %p567 = pneg %p288
        %p568 = pneg %p312
        %p569 = pneg %p309
        %p570 = pneg %p333
        %p571 = pneg %p330
        %p572 = pneg %p354
        %p573 = pneg %p351
        %p574 = pneg %p375
        %p575 = pneg %p372
        %p576 = pneg %p401
        %p577 = pneg %p398
        %s578 = sand.u32 %s388, 1
        %s579 = scalar_lea.sflag [#allocation5], %s578
        %s580 = sand.u32 %s388, 1
        %s581 = smul.addr %s580, 8
        %s582 = scalar_lea.vmem [#allocation8], %s581
        %p583 = pneg %p427
        %p584 = pneg %p424
        %s585 = sand.u32 %s414, 1
        %s586 = scalar_lea.sflag [#allocation10], %s585
        %s587 = sand.u32 %s414, 1
        %s588 = smul.addr %s587, 32
        %s589 = scalar_lea.vmem [#allocation9], %s588
        %v591 = vld [vmem:[%s530] sm:$0xff]
        %v592 = vpack.c.bf16 %v591, %v591
        %v593 = vld [vmem:[%s2] sm:$0xf]
        %v594 = vld [vmem:[%s2 + $0x4] sm:$0xf]
        %v595 = vld [vmem:[%s2 + $0x8] sm:$0xf]
        %v596 = vld [vmem:[%s2 + $0xc] sm:$0xf]
        %v597 = vld [vmem:[%s3] sm:$0x1]
        %v599 = vlaneseq
        %v600 = vshrl.u32 %v599, 7
        %v601 = vsub.s32 0, %v600
        %v602 = vrot.slane %v597, %v601
        %v608 = vunpack.c.l.b16 %v593
        %v609 = vunpack.c.l.b16 %v594
        %v610 = vunpack.c.l.b16 %v595
        %v611 = vunpack.c.l.b16 %v596
        %v612 = vpack.c.b16 %v609, %v608
        %v613 = vpack.c.b16 %v611, %v610
        %vm616 = vcmask 261120
        %v618 = vsel %vm616, %v592, 0
        %620 = vmatprep.subr.bf16.mxu0 0
        %621 = vmatpush1.bf16.msra.mxu0 0
        %622 = vmatprep.subr.bf16.mxu0 0
        %623 = vmatpush1.bf16.msra.mxu0 0
        %624 = vmatprep.subr.bf16.mxu0 0
        %625 = vmatpush1.bf16.msra.mxu0 0
        %626 = vmatprep.subr.bf16.mxu0 0
        %627 = vmatpush1.bf16.msra.mxu0 0
        %628 = vmatprep.subr.bf16.mxu0 0
        %629 = vmatpush1.bf16.msra.mxu0 0
        %630 = vmatprep.subr.bf16.mxu0 0
        %631 = vmatpush1.bf16.msra.mxu0 0
        %632 = vmatprep.subr.bf16.mxu0 0
        %633 = vmatpush1.bf16.msra.mxu0 %v613
        %634 = vmatprep.subr.bf16.mxu0 0
        %635 = vmatpush1.bf16.msra.mxu0 %v612
        %636 = vmatprep.subr.bf16.mxu0 0
        %637 = vmatpush2.bf16.msra.mxu0 0
        %638 = vmatprep.subr.bf16.mxu0 0
        %639 = vmatpush2.bf16.msra.mxu0 0
        %640 = vmatprep.subr.bf16.mxu0 0
        %641 = vmatpush2.bf16.msra.mxu0 0
        %642 = vmatprep.subr.bf16.mxu0 0
        %643 = vmatpush2.bf16.msra.mxu0 0
        %644 = vmatprep.subr.bf16.mxu0 0
        %645 = vmatpush2.bf16.msra.mxu0 0
        %646 = vmatprep.subr.bf16.mxu0 0
        %647 = vmatpush2.bf16.msra.mxu0 0
        %648 = vmatprep.subr.bf16.mxu0 0
        %649 = vmatpush2.bf16.msra.mxu0 0
        %650 = vmatprep.subr.bf16.mxu0 0
        %651 = vmatpush2.bf16.msra.mxu0 0
        %652 = vmatprep.mubr.bf16.mxu0 0
        %653 = vmatmul.mubr.bf16.gmra.mxu0 %v618
        %v654 = vpop.f32.mrf.mxu0
        %v655 = vadd.f32 %v602, %v654
        %v656 = vpop.f32.mrf.mxu0
        %v657 = vpop.f32.mrf.mxu0
        %v658 = vpop.f32.mrf.mxu0
        %659 = vdwg.mxu0
        %v660 = vld [vmem:[#allocation6] sm:$0xff]
        %v661 = vadd.f32 %v655, %v660
        %v662 = vmul.f32 %v661, 0.35355338
        %v663 = vpack.c.bf16 %v662, %v662
        %v664 = vpack.c.bf16 %v661, %v661
        %v665 = vpack.c.bf16 %v655, %v655
        %667 = vrot.lane.b32.xlu0 %v664, 96
        %v668 = vpop.permute.xlu0 %667
        %vm669 = vcmask 64512
        %v671 = vsel %vm669, %v663, 0
        %v674 = vsel %vm669, %v668, 0
        %676 = vmatprep.subr.bf16.mxu0 0
        %677 = vmatpush1.bf16.xpose.msra.mxu0 0
        %678 = vmatprep.subr.bf16.mxu0 0
        %679 = vmatpush1.bf16.xpose.msra.mxu0 0
        %680 = vmatprep.subr.bf16.mxu0 0
        %681 = vmatpush1.bf16.xpose.msra.mxu0 0
        %682 = vmatprep.subr.bf16.mxu0 0
        %683 = vmatpush1.bf16.xpose.msra.mxu0 0
        %684 = vmatprep.subr.bf16.mxu0 0
        %685 = vmatpush1.bf16.xpose.msra.mxu0 0
        %686 = vmatprep.subr.bf16.mxu0 0
        %687 = vmatpush1.bf16.xpose.msra.mxu0 0
        %688 = vmatprep.subr.bf16.mxu0 0
        %689 = vmatpush1.bf16.xpose.msra.mxu0 0
        %690 = vmatprep.subr.bf16.mxu0 0
        %691 = vmatpush1.bf16.xpose.msra.mxu0 %v674
        %692 = vmatprep.subr.bf16.mxu0 0
        %693 = vmatpush2.bf16.xpose.msra.mxu0 0
        %694 = vmatprep.subr.bf16.mxu0 0
        %695 = vmatpush2.bf16.xpose.msra.mxu0 0
        %696 = vmatprep.subr.bf16.mxu0 0
        %697 = vmatpush2.bf16.xpose.msra.mxu0 0
        %698 = vmatprep.subr.bf16.mxu0 0
        %699 = vmatpush2.bf16.xpose.msra.mxu0 0
        %700 = vmatprep.subr.bf16.mxu0 0
        %701 = vmatpush2.bf16.xpose.msra.mxu0 0
        %702 = vmatprep.subr.bf16.mxu0 0
        %703 = vmatpush2.bf16.xpose.msra.mxu0 0
        %704 = vmatprep.subr.bf16.mxu0 0
        %705 = vmatpush2.bf16.xpose.msra.mxu0 0
        %706 = vmatprep.subr.bf16.mxu0 0
        %707 = vmatpush2.bf16.xpose.msra.mxu0 0
        %708 = vmatprep.mubr.bf16.mxu0 0
        %709 = vmatmul.mubr.bf16.gmra.mxu0 %v671
        %v710 = vpop.f32.mrf.mxu0
        %v711 = vadd.f32 0.0, %v710
        %v712 = vpop.f32.mrf.mxu0
        %v713 = vpop.f32.mrf.mxu0
        %v714 = vpop.f32.mrf.mxu0
        %715 = vdwg.mxu0
        %v716 = vsel %vm669, %v711, -inf
        %717 = vmax.xlane.f32.xlu0 %v716
        %v718 = vpop.xlane.xlu0 %717
        %v719 = vsub.f32 %v711, %v718
        %v720 = vmul.f32 %v719, 1.442695
        %v721 = vpow.pop %v720
        %v722 = vsel %vm669, %v721, 0.0
        %723 = vadd.xlane.f32.xlu0 %v722
        %v724 = vpop.xlane.xlu0 %723
        %v725 = vrcp.pop %v724
        %v726 = vmul.f32 %v721, %v725
        %v727 = vpack.c.bf16 %v726, %v726
        %vm728 = vcmask 60416
        %729 = vst.msk [vmem:[%s589] sm:$0xf] %vm728, %v727
        %731 = vrot.lane.b32.xlu0 %v665, 64
        %v732 = vpop.permute.xlu0 %731
        %v734 = vsel %vm669, %v727, 0
        %vm736 = vcmask 1043456
        %v738 = vsel %vm736, %v732, 0
        %740 = vmatprep.subr.bf16.mxu0 0
        %741 = vmatpush1.bf16.msra.mxu0 0
        %742 = vmatprep.subr.bf16.mxu0 0
        %743 = vmatpush1.bf16.msra.mxu0 0
        %744 = vmatprep.subr.bf16.mxu0 0
        %745 = vmatpush1.bf16.msra.mxu0 0
        %746 = vmatprep.subr.bf16.mxu0 0
        %747 = vmatpush1.bf16.msra.mxu0 0
        %748 = vmatprep.subr.bf16.mxu0 0
        %749 = vmatpush1.bf16.msra.mxu0 0
        %750 = vmatprep.subr.bf16.mxu0 0
        %751 = vmatpush1.bf16.msra.mxu0 0
        %752 = vmatprep.subr.bf16.mxu0 0
        %753 = vmatpush1.bf16.msra.mxu0 0
        %754 = vmatprep.subr.bf16.mxu0 0
        %755 = vmatpush1.bf16.msra.mxu0 %v738
        %756 = vmatprep.subr.bf16.mxu0 0
        %757 = vmatpush2.bf16.msra.mxu0 0
        %758 = vmatprep.subr.bf16.mxu0 0
        %759 = vmatpush2.bf16.msra.mxu0 0
        %760 = vmatprep.subr.bf16.mxu0 0
        %761 = vmatpush2.bf16.msra.mxu0 0
        %762 = vmatprep.subr.bf16.mxu0 0
        %763 = vmatpush2.bf16.msra.mxu0 0
        %764 = vmatprep.subr.bf16.mxu0 0
        %765 = vmatpush2.bf16.msra.mxu0 0
        %766 = vmatprep.subr.bf16.mxu0 0
        %767 = vmatpush2.bf16.msra.mxu0 0
        %768 = vmatprep.subr.bf16.mxu0 0
        %769 = vmatpush2.bf16.msra.mxu0 0
        %770 = vmatprep.subr.bf16.mxu0 0
        %771 = vmatpush2.bf16.msra.mxu0 0
        %772 = vmatprep.mubr.bf16.mxu0 0
        %773 = vmatmul.mubr.bf16.gmra.mxu0 %v734
        %v774 = vpop.f32.mrf.mxu0
        %v775 = vadd.f32 0.0, %v774
        %v776 = vpop.f32.mrf.mxu0
        %v777 = vpop.f32.mrf.mxu0
        %v778 = vpop.f32.mrf.mxu0
        %779 = vdwg.mxu0
        %780 = vst.msk [vmem:[#allocation2] sm:$0xff] %vm669, %v775
        %782 = vrot.lane.b32.xlu0 %v663, 120
        %v783 = vpop.permute.xlu0 %782
        %784 = vrot.lane.b32.xlu0 %v664, 88
        %v785 = vpop.permute.xlu0 %784
        %v787 = vsel %vm669, %v783, 0
        %v790 = vsel %vm669, %v785, 0
        %792 = vmatprep.subr.bf16.mxu0 0
        %793 = vmatpush1.bf16.xpose.msra.mxu0 0
        %794 = vmatprep.subr.bf16.mxu0 0
        %795 = vmatpush1.bf16.xpose.msra.mxu0 0
        %796 = vmatprep.subr.bf16.mxu0 0
        %797 = vmatpush1.bf16.xpose.msra.mxu0 0
        %798 = vmatprep.subr.bf16.mxu0 0
        %799 = vmatpush1.bf16.xpose.msra.mxu0 0
        %800 = vmatprep.subr.bf16.mxu0 0
        %801 = vmatpush1.bf16.xpose.msra.mxu0 0
        %802 = vmatprep.subr.bf16.mxu0 0
        %803 = vmatpush1.bf16.xpose.msra.mxu0 0
        %804 = vmatprep.subr.bf16.mxu0 0
        %805 = vmatpush1.bf16.xpose.msra.mxu0 0
        %806 = vmatprep.subr.bf16.mxu0 0
        %807 = vmatpush1.bf16.xpose.msra.mxu0 %v790
        %808 = vmatprep.subr.bf16.mxu0 0
        %809 = vmatpush2.bf16.xpose.msra.mxu0 0
        %810 = vmatprep.subr.bf16.mxu0 0
        %811 = vmatpush2.bf16.xpose.msra.mxu0 0
        %812 = vmatprep.subr.bf16.mxu0 0
        %813 = vmatpush2.bf16.xpose.msra.mxu0 0
        %814 = vmatprep.subr.bf16.mxu0 0
        %815 = vmatpush2.bf16.xpose.msra.mxu0 0
        %816 = vmatprep.subr.bf16.mxu0 0
        %817 = vmatpush2.bf16.xpose.msra.mxu0 0
        %818 = vmatprep.subr.bf16.mxu0 0
        %819 = vmatpush2.bf16.xpose.msra.mxu0 0
        %820 = vmatprep.subr.bf16.mxu0 0
        %821 = vmatpush2.bf16.xpose.msra.mxu0 0
        %822 = vmatprep.subr.bf16.mxu0 0
        %823 = vmatpush2.bf16.xpose.msra.mxu0 0
        %824 = vmatprep.mubr.bf16.mxu0 0
        %825 = vmatmul.mubr.bf16.gmra.mxu0 %v787
        %v826 = vpop.f32.mrf.mxu0
        %v827 = vadd.f32 0.0, %v826
        %v828 = vpop.f32.mrf.mxu0
        %v829 = vpop.f32.mrf.mxu0
        %v830 = vpop.f32.mrf.mxu0
        %831 = vdwg.mxu0
        %v832 = vsel %vm669, %v827, -inf
        %833 = vmax.xlane.f32.xlu0 %v832
        %v834 = vpop.xlane.xlu0 %833
        %v835 = vsub.f32 %v827, %v834
        %v836 = vmul.f32 %v835, 1.442695
        %v837 = vpow.pop %v836
        %v838 = vsel %vm669, %v837, 0.0
        %839 = vadd.xlane.f32.xlu0 %v838
        %v840 = vpop.xlane.xlu0 %839
        %v841 = vrcp.pop %v840
        %v842 = vmul.f32 %v837, %v841
        %v843 = vpack.c.bf16 %v842, %v842
        %s844 = scalar_lea.vmem %s589, 4 [#allocation9]
        %845 = vst.msk [vmem:[%s844] sm:$0xf] %vm728, %v843
        %846 = vrot.lane.b32.xlu0 %v665, 56
        %v847 = vpop.permute.xlu0 %846
        %v849 = vsel %vm669, %v843, 0
        %v852 = vsel %vm736, %v847, 0
        %854 = vmatprep.subr.bf16.mxu0 0
        %855 = vmatpush1.bf16.msra.mxu0 0
        %856 = vmatprep.subr.bf16.mxu0 0
        %857 = vmatpush1.bf16.msra.mxu0 0
        %858 = vmatprep.subr.bf16.mxu0 0
        %859 = vmatpush1.bf16.msra.mxu0 0
        %860 = vmatprep.subr.bf16.mxu0 0
        %861 = vmatpush1.bf16.msra.mxu0 0
        %862 = vmatprep.subr.bf16.mxu0 0
        %863 = vmatpush1.bf16.msra.mxu0 0
        %864 = vmatprep.subr.bf16.mxu0 0
        %865 = vmatpush1.bf16.msra.mxu0 0
        %866 = vmatprep.subr.bf16.mxu0 0
        %867 = vmatpush1.bf16.msra.mxu0 0
        %868 = vmatprep.subr.bf16.mxu0 0
        %869 = vmatpush1.bf16.msra.mxu0 %v852
        %870 = vmatprep.subr.bf16.mxu0 0
        %871 = vmatpush2.bf16.msra.mxu0 0
        %872 = vmatprep.subr.bf16.mxu0 0
        %873 = vmatpush2.bf16.msra.mxu0 0
        %874 = vmatprep.subr.bf16.mxu0 0
        %875 = vmatpush2.bf16.msra.mxu0 0
        %876 = vmatprep.subr.bf16.mxu0 0
        %877 = vmatpush2.bf16.msra.mxu0 0
        %878 = vmatprep.subr.bf16.mxu0 0
        %879 = vmatpush2.bf16.msra.mxu0 0
        %880 = vmatprep.subr.bf16.mxu0 0
        %881 = vmatpush2.bf16.msra.mxu0 0
        %882 = vmatprep.subr.bf16.mxu0 0
        %883 = vmatpush2.bf16.msra.mxu0 0
        %884 = vmatprep.subr.bf16.mxu0 0
        %885 = vmatpush2.bf16.msra.mxu0 0
        %886 = vmatprep.mubr.bf16.mxu0 0
        %887 = vmatmul.mubr.bf16.gmra.mxu0 %v849
        %v888 = vpop.f32.mrf.mxu0
        %v889 = vadd.f32 0.0, %v888
        %v890 = vpop.f32.mrf.mxu0
        %v891 = vpop.f32.mrf.mxu0
        %v892 = vpop.f32.mrf.mxu0
        %893 = vdwg.mxu0
        %895 = vrot.lane.b32.xlu0 %v889, 8
        %v896 = vpop.permute.xlu0 %895
        %vm898 = vcmask 130112
        %899 = vst.msk [vmem:[#allocation2] sm:$0xff] %vm898, %v896
        %900 = vrot.lane.b32.xlu0 %v663, 112
        %v901 = vpop.permute.xlu0 %900
        %902 = vrot.lane.b32.xlu0 %v664, 80
        %v903 = vpop.permute.xlu0 %902
        %v905 = vsel %vm669, %v901, 0
        %v908 = vsel %vm669, %v903, 0
        %910 = vmatprep.subr.bf16.mxu0 0
        %911 = vmatpush1.bf16.xpose.msra.mxu0 0
        %912 = vmatprep.subr.bf16.mxu0 0
        %913 = vmatpush1.bf16.xpose.msra.mxu0 0
        %914 = vmatprep.subr.bf16.mxu0 0
        %915 = vmatpush1.bf16.xpose.msra.mxu0 0
        %916 = vmatprep.subr.bf16.mxu0 0
        %917 = vmatpush1.bf16.xpose.msra.mxu0 0
        %918 = vmatprep.subr.bf16.mxu0 0
        %919 = vmatpush1.bf16.xpose.msra.mxu0 0
        %920 = vmatprep.subr.bf16.mxu0 0
        %921 = vmatpush1.bf16.xpose.msra.mxu0 0
        %922 = vmatprep.subr.bf16.mxu0 0
        %923 = vmatpush1.bf16.xpose.msra.mxu0 0
        %924 = vmatprep.subr.bf16.mxu0 0
        %925 = vmatpush1.bf16.xpose.msra.mxu0 %v908
        %926 = vmatprep.subr.bf16.mxu0 0
        %927 = vmatpush2.bf16.xpose.msra.mxu0 0
        %928 = vmatprep.subr.bf16.mxu0 0
        %929 = vmatpush2.bf16.xpose.msra.mxu0 0
        %930 = vmatprep.subr.bf16.mxu0 0
        %931 = vmatpush2.bf16.xpose.msra.mxu0 0
        %932 = vmatprep.subr.bf16.mxu0 0
        %933 = vmatpush2.bf16.xpose.msra.mxu0 0
        %934 = vmatprep.subr.bf16.mxu0 0
        %935 = vmatpush2.bf16.xpose.msra.mxu0 0
        %936 = vmatprep.subr.bf16.mxu0 0
        %937 = vmatpush2.bf16.xpose.msra.mxu0 0
        %938 = vmatprep.subr.bf16.mxu0 0
        %939 = vmatpush2.bf16.xpose.msra.mxu0 0
        %940 = vmatprep.subr.bf16.mxu0 0
        %941 = vmatpush2.bf16.xpose.msra.mxu0 0
        %942 = vmatprep.mubr.bf16.mxu0 0
        %943 = vmatmul.mubr.bf16.gmra.mxu0 %v905
        %v944 = vpop.f32.mrf.mxu0
        %v945 = vadd.f32 0.0, %v944
        %v946 = vpop.f32.mrf.mxu0
        %v947 = vpop.f32.mrf.mxu0
        %v948 = vpop.f32.mrf.mxu0
        %949 = vdwg.mxu0
        %v950 = vsel %vm669, %v945, -inf
        %951 = vmax.xlane.f32.xlu0 %v950
        %v952 = vpop.xlane.xlu0 %951
        %v953 = vsub.f32 %v945, %v952
        %v954 = vmul.f32 %v953, 1.442695
        %v955 = vpow.pop %v954
        %v956 = vsel %vm669, %v955, 0.0
        %957 = vadd.xlane.f32.xlu0 %v956
        %v958 = vpop.xlane.xlu0 %957
        %v959 = vrcp.pop %v958
        %v960 = vmul.f32 %v955, %v959
        %v961 = vpack.c.bf16 %v960, %v960
        %s962 = scalar_lea.vmem %s589, 8 [#allocation9]
        %963 = vst.msk [vmem:[%s962] sm:$0xf] %vm728, %v961
        %964 = vrot.lane.b32.xlu0 %v665, 48
        %v965 = vpop.permute.xlu0 %964
        %v967 = vsel %vm669, %v961, 0
        %v970 = vsel %vm736, %v965, 0
        %972 = vmatprep.subr.bf16.mxu0 0
        %973 = vmatpush1.bf16.msra.mxu0 0
        %974 = vmatprep.subr.bf16.mxu0 0
        %975 = vmatpush1.bf16.msra.mxu0 0
        %976 = vmatprep.subr.bf16.mxu0 0
        %977 = vmatpush1.bf16.msra.mxu0 0
        %978 = vmatprep.subr.bf16.mxu0 0
        %979 = vmatpush1.bf16.msra.mxu0 0
        %980 = vmatprep.subr.bf16.mxu0 0
        %981 = vmatpush1.bf16.msra.mxu0 0
        %982 = vmatprep.subr.bf16.mxu0 0
        %983 = vmatpush1.bf16.msra.mxu0 0
        %984 = vmatprep.subr.bf16.mxu0 0
        %985 = vmatpush1.bf16.msra.mxu0 0
        %986 = vmatprep.subr.bf16.mxu0 0
        %987 = vmatpush1.bf16.msra.mxu0 %v970
        %988 = vmatprep.subr.bf16.mxu0 0
        %989 = vmatpush2.bf16.msra.mxu0 0
        %990 = vmatprep.subr.bf16.mxu0 0
        %991 = vmatpush2.bf16.msra.mxu0 0
        %992 = vmatprep.subr.bf16.mxu0 0
        %993 = vmatpush2.bf16.msra.mxu0 0
        %994 = vmatprep.subr.bf16.mxu0 0
        %995 = vmatpush2.bf16.msra.mxu0 0
        %996 = vmatprep.subr.bf16.mxu0 0
        %997 = vmatpush2.bf16.msra.mxu0 0
        %998 = vmatprep.subr.bf16.mxu0 0
        %999 = vmatpush2.bf16.msra.mxu0 0
        %1000 = vmatprep.subr.bf16.mxu0 0
        %1001 = vmatpush2.bf16.msra.mxu0 0
        %1002 = vmatprep.subr.bf16.mxu0 0
        %1003 = vmatpush2.bf16.msra.mxu0 0
        %1004 = vmatprep.mubr.bf16.mxu0 0
        %1005 = vmatmul.mubr.bf16.gmra.mxu0 %v967
        %v1006 = vpop.f32.mrf.mxu0
        %v1007 = vadd.f32 0.0, %v1006
        %v1008 = vpop.f32.mrf.mxu0
        %v1009 = vpop.f32.mrf.mxu0
        %v1010 = vpop.f32.mrf.mxu0
        %1011 = vdwg.mxu0
        %1013 = vrot.lane.b32.xlu0 %v1007, 16
        %v1014 = vpop.permute.xlu0 %1013
        %vm1016 = vcmask 195712
        %1017 = vst.msk [vmem:[#allocation2] sm:$0xff] %vm1016, %v1014
        %1018 = vrot.lane.b32.xlu0 %v663, 104
        %v1019 = vpop.permute.xlu0 %1018
        %1020 = vrot.lane.b32.xlu0 %v664, 72
        %v1021 = vpop.permute.xlu0 %1020
        %v1023 = vsel %vm669, %v1019, 0
        %v1026 = vsel %vm669, %v1021, 0
        %1028 = vmatprep.subr.bf16.mxu0 0
        %1029 = vmatpush1.bf16.xpose.msra.mxu0 0
        %1030 = vmatprep.subr.bf16.mxu0 0
        %1031 = vmatpush1.bf16.xpose.msra.mxu0 0
        %1032 = vmatprep.subr.bf16.mxu0 0
        %1033 = vmatpush1.bf16.xpose.msra.mxu0 0
        %1034 = vmatprep.subr.bf16.mxu0 0
        %1035 = vmatpush1.bf16.xpose.msra.mxu0 0
        %1036 = vmatprep.subr.bf16.mxu0 0
        %1037 = vmatpush1.bf16.xpose.msra.mxu0 0
        %1038 = vmatprep.subr.bf16.mxu0 0
        %1039 = vmatpush1.bf16.xpose.msra.mxu0 0
        %1040 = vmatprep.subr.bf16.mxu0 0
        %1041 = vmatpush1.bf16.xpose.msra.mxu0 0
        %1042 = vmatprep.subr.bf16.mxu0 0
        %1043 = vmatpush1.bf16.xpose.msra.mxu0 %v1026
        %1044 = vmatprep.subr.bf16.mxu0 0
        %1045 = vmatpush2.bf16.xpose.msra.mxu0 0
        %1046 = vmatprep.subr.bf16.mxu0 0
        %1047 = vmatpush2.bf16.xpose.msra.mxu0 0
        %1048 = vmatprep.subr.bf16.mxu0 0
        %1049 = vmatpush2.bf16.xpose.msra.mxu0 0
        %1050 = vmatprep.subr.bf16.mxu0 0
        %1051 = vmatpush2.bf16.xpose.msra.mxu0 0
        %1052 = vmatprep.subr.bf16.mxu0 0
        %1053 = vmatpush2.bf16.xpose.msra.mxu0 0
        %1054 = vmatprep.subr.bf16.mxu0 0
        %1055 = vmatpush2.bf16.xpose.msra.mxu0 0
        %1056 = vmatprep.subr.bf16.mxu0 0
        %1057 = vmatpush2.bf16.xpose.msra.mxu0 0
        %1058 = vmatprep.subr.bf16.mxu0 0
        %1059 = vmatpush2.bf16.xpose.msra.mxu0 0
        %1060 = vmatprep.mubr.bf16.mxu0 0
        %1061 = vmatmul.mubr.bf16.gmra.mxu0 %v1023
        %v1062 = vpop.f32.mrf.mxu0
        %v1063 = vadd.f32 0.0, %v1062
        %v1064 = vpop.f32.mrf.mxu0
        %v1065 = vpop.f32.mrf.mxu0
        %v1066 = vpop.f32.mrf.mxu0
        %1067 = vdwg.mxu0
        %v1068 = vsel %vm669, %v1063, -inf
        %1069 = vmax.xlane.f32.xlu0 %v1068
        %v1070 = vpop.xlane.xlu0 %1069
        %v1071 = vsub.f32 %v1063, %v1070
        %v1072 = vmul.f32 %v1071, 1.442695
        %v1073 = vpow.pop %v1072
        %v1074 = vsel %vm669, %v1073, 0.0
        %1075 = vadd.xlane.f32.xlu0 %v1074
        %v1076 = vpop.xlane.xlu0 %1075
        %v1077 = vrcp.pop %v1076
        %v1078 = vmul.f32 %v1073, %v1077
        %v1079 = vpack.c.bf16 %v1078, %v1078
        %s1080 = scalar_lea.vmem %s589, 12 [#allocation9]
        %1081 = vst.msk [vmem:[%s1080] sm:$0xf] %vm728, %v1079
        %1082 = vrot.lane.b32.xlu0 %v665, 40
        %v1083 = vpop.permute.xlu0 %1082
        %v1085 = vsel %vm669, %v1079, 0
        %v1088 = vsel %vm736, %v1083, 0
        %1090 = vmatprep.subr.bf16.mxu0 0
        %1091 = vmatpush1.bf16.msra.mxu0 0
        %1092 = vmatprep.subr.bf16.mxu0 0
        %1093 = vmatpush1.bf16.msra.mxu0 0
        %1094 = vmatprep.subr.bf16.mxu0 0
        %1095 = vmatpush1.bf16.msra.mxu0 0
        %1096 = vmatprep.subr.bf16.mxu0 0
        %1097 = vmatpush1.bf16.msra.mxu0 0
        %1098 = vmatprep.subr.bf16.mxu0 0
        %1099 = vmatpush1.bf16.msra.mxu0 0
        %1100 = vmatprep.subr.bf16.mxu0 0
        %1101 = vmatpush1.bf16.msra.mxu0 0
        %1102 = vmatprep.subr.bf16.mxu0 0
        %1103 = vmatpush1.bf16.msra.mxu0 0
        %1104 = vmatprep.subr.bf16.mxu0 0
        %1105 = vmatpush1.bf16.msra.mxu0 %v1088
        %1106 = vmatprep.subr.bf16.mxu0 0
        %1107 = vmatpush2.bf16.msra.mxu0 0
        %1108 = vmatprep.subr.bf16.mxu0 0
        %1109 = vmatpush2.bf16.msra.mxu0 0
        %1110 = vmatprep.subr.bf16.mxu0 0
        %1111 = vmatpush2.bf16.msra.mxu0 0
        %1112 = vmatprep.subr.bf16.mxu0 0
        %1113 = vmatpush2.bf16.msra.mxu0 0
        %1114 = vmatprep.subr.bf16.mxu0 0
        %1115 = vmatpush2.bf16.msra.mxu0 0
        %1116 = vmatprep.subr.bf16.mxu0 0
        %1117 = vmatpush2.bf16.msra.mxu0 0
        %1118 = vmatprep.subr.bf16.mxu0 0
        %1119 = vmatpush2.bf16.msra.mxu0 0
        %1120 = vmatprep.subr.bf16.mxu0 0
        %1121 = vmatpush2.bf16.msra.mxu0 0
        %1122 = vmatprep.mubr.bf16.mxu0 0
        %1123 = vmatmul.mubr.bf16.gmra.mxu0 %v1085
        %v1124 = vpop.f32.mrf.mxu0
        %v1125 = vadd.f32 0.0, %v1124
        %v1126 = vpop.f32.mrf.mxu0
        %v1127 = vpop.f32.mrf.mxu0
        %v1128 = vpop.f32.mrf.mxu0
        %1129 = vdwg.mxu0
        %1131 = vrot.lane.b32.xlu0 %v1125, 24
        %v1132 = vpop.permute.xlu0 %1131
        %vm1134 = vcmask 261312
        %1135 = vst.msk [vmem:[#allocation2] sm:$0xff] %vm1134, %v1132
        %v1136 = vld [vmem:[#allocation2] sm:$0xff]
        %v1137 = vpack.c.bf16 %v1136, %v1136
        %v1138 = vld [vmem:[%s4] sm:$0xf]
        %v1139 = vld [vmem:[%s4 + $0x4] sm:$0xf]
        %v1140 = vld [vmem:[%s4 + $0x8] sm:$0xf]
        %v1141 = vld [vmem:[%s4 + $0xc] sm:$0xf]
        %v1142 = vld [vmem:[%s5] sm:$0x1]
        %v1144 = vlaneseq
        %v1145 = vshrl.u32 %v1144, 7
        %v1146 = vsub.s32 0, %v1145
        %v1147 = vrot.slane %v1142, %v1146
        %v1153 = vunpack.c.l.b16 %v1138
        %v1154 = vunpack.c.l.b16 %v1139
        %v1155 = vunpack.c.l.b16 %v1140
        %v1156 = vunpack.c.l.b16 %v1141
        %v1157 = vpack.c.b16 %v1154, %v1153
        %v1158 = vpack.c.b16 %v1156, %v1155
        %v1162 = vsel %vm616, %v1137, 0
        %1164 = vmatprep.subr.bf16.mxu0 0
        %1165 = vmatpush1.bf16.msra.mxu0 0
        %1166 = vmatprep.subr.bf16.mxu0 0
        %1167 = vmatpush1.bf16.msra.mxu0 0
        %1168 = vmatprep.subr.bf16.mxu0 0
        %1169 = vmatpush1.bf16.msra.mxu0 0
        %1170 = vmatprep.subr.bf16.mxu0 0
        %1171 = vmatpush1.bf16.msra.mxu0 0
        %1172 = vmatprep.subr.bf16.mxu0 0
        %1173 = vmatpush1.bf16.msra.mxu0 0
        %1174 = vmatprep.subr.bf16.mxu0 0
        %1175 = vmatpush1.bf16.msra.mxu0 0
        %1176 = vmatprep.subr.bf16.mxu0 0
        %1177 = vmatpush1.bf16.msra.mxu0 %v1158
        %1178 = vmatprep.subr.bf16.mxu0 0
        %1179 = vmatpush1.bf16.msra.mxu0 %v1157
        %1180 = vmatprep.subr.bf16.mxu0 0
        %1181 = vmatpush2.bf16.msra.mxu0 0
        %1182 = vmatprep.subr.bf16.mxu0 0
        %1183 = vmatpush2.bf16.msra.mxu0 0
        %1184 = vmatprep.subr.bf16.mxu0 0
        %1185 = vmatpush2.bf16.msra.mxu0 0
        %1186 = vmatprep.subr.bf16.mxu0 0
        %1187 = vmatpush2.bf16.msra.mxu0 0
        %1188 = vmatprep.subr.bf16.mxu0 0
        %1189 = vmatpush2.bf16.msra.mxu0 0
        %1190 = vmatprep.subr.bf16.mxu0 0
        %1191 = vmatpush2.bf16.msra.mxu0 0
        %1192 = vmatprep.subr.bf16.mxu0 0
        %1193 = vmatpush2.bf16.msra.mxu0 0
        %1194 = vmatprep.subr.bf16.mxu0 0
        %1195 = vmatpush2.bf16.msra.mxu0 0
        %1196 = vmatprep.mubr.bf16.mxu0 0
        %1197 = vmatmul.mubr.bf16.gmra.mxu0 %v1162
        %v1198 = vpop.f32.mrf.mxu0
        %v1199 = vadd.f32 %v1147, %v1198
        %v1200 = vpop.f32.mrf.mxu0
        %v1201 = vpop.f32.mrf.mxu0
        %v1202 = vpop.f32.mrf.mxu0
        %1203 = vdwg.mxu0
        %v1204 = vadd.f32 %v591, %v1199
        %v1205 = vld [vmem:[%s10] sm:$0x1]
        %v1206 = vld [vmem:[%s11] sm:$0x1]
        %v1207 = vsel %vm616, %v1204, 0.0
        %1208 = vadd.xlane.f32.xlu0 %v1207
        %v1209 = vpop.xlane.xlu0 %1208
        %v1210 = vmul.f32 %v1209, 0.03125
        %v1211 = vsub.f32 %v1204, %v1210
        %v1212 = vmul.f32 %v1211, %v1211
        %v1213 = vsel %vm616, %v1212, 0.0
        %1214 = vadd.xlane.f32.xlu0 %v1213
        %v1215 = vpop.xlane.xlu0 %1214
        %v1216 = vmul.f32 %v1215, 0.03125
        %v1217 = vadd.f32 %v1216, 1e-05
        %v1218 = vrsqrt.pop %v1217
        %v1219 = vmul.f32 %v1211, %v1218
        %v1221 = vlaneseq
        %v1222 = vshrl.u32 %v1221, 7
        %v1223 = vsub.s32 0, %v1222
        %v1224 = vrot.slane %v1205, %v1223
        %v1226 = vmul.f32 %v1219, %v1224
        %v1228 = vlaneseq
        %v1229 = vshrl.u32 %v1228, 7
        %v1230 = vsub.s32 0, %v1229
        %v1231 = vrot.slane %v1206, %v1230
        %v1233 = vadd.f32 %v1226, %v1231
        %v1234 = vpack.c.bf16 %v1233, %v1233
        %v1235 = vld [vmem:[%s6] sm:$0xf]
        %v1236 = vld [vmem:[%s6 + $0x4] sm:$0xf]
        %v1237 = vld [vmem:[%s6 + $0x8] sm:$0xf]
        %v1238 = vld [vmem:[%s6 + $0xc] sm:$0xf]
        %v1239 = vld [vmem:[%s7] sm:$0x1]
        %v1241 = vlaneseq
        %v1242 = vshrl.u32 %v1241, 7
        %v1243 = vsub.s32 0, %v1242
        %v1244 = vrot.slane %v1239, %v1243
        %v1250 = vunpack.c.l.b16 %v1235
        %v1251 = vunpack.c.l.b16 %v1236
        %v1252 = vunpack.c.l.b16 %v1237
        %v1253 = vunpack.c.l.b16 %v1238
        %v1254 = vpack.c.b16 %v1251, %v1250
        %v1255 = vpack.c.b16 %v1253, %v1252
        %v1259 = vsel %vm616, %v1234, 0
        %1261 = vmatprep.subr.bf16.mxu0 0
        %1262 = vmatpush1.bf16.msra.mxu0 0
        %1263 = vmatprep.subr.bf16.mxu0 0
        %1264 = vmatpush1.bf16.msra.mxu0 0
        %1265 = vmatprep.subr.bf16.mxu0 0
        %1266 = vmatpush1.bf16.msra.mxu0 0
        %1267 = vmatprep.subr.bf16.mxu0 0
        %1268 = vmatpush1.bf16.msra.mxu0 0
        %1269 = vmatprep.subr.bf16.mxu0 0
        %1270 = vmatpush1.bf16.msra.mxu0 0
        %1271 = vmatprep.subr.bf16.mxu0 0
        %1272 = vmatpush1.bf16.msra.mxu0 0
        %1273 = vmatprep.subr.bf16.mxu0 0
        %1274 = vmatpush1.bf16.msra.mxu0 %v1255
        %1275 = vmatprep.subr.bf16.mxu0 0
        %1276 = vmatpush1.bf16.msra.mxu0 %v1254
        %1277 = vmatprep.subr.bf16.mxu0 0
        %1278 = vmatpush2.bf16.msra.mxu0 0
        %1279 = vmatprep.subr.bf16.mxu0 0
        %1280 = vmatpush2.bf16.msra.mxu0 0
        %1281 = vmatprep.subr.bf16.mxu0 0
        %1282 = vmatpush2.bf16.msra.mxu0 0
        %1283 = vmatprep.subr.bf16.mxu0 0
        %1284 = vmatpush2.bf16.msra.mxu0 0
        %1285 = vmatprep.subr.bf16.mxu0 0
        %1286 = vmatpush2.bf16.msra.mxu0 0
        %1287 = vmatprep.subr.bf16.mxu0 0
        %1288 = vmatpush2.bf16.msra.mxu0 0
        %1289 = vmatprep.subr.bf16.mxu0 0
        %1290 = vmatpush2.bf16.msra.mxu0 0
        %1291 = vmatprep.subr.bf16.mxu0 0
        %1292 = vmatpush2.bf16.msra.mxu0 0
        %1293 = vmatprep.mubr.bf16.mxu0 0
        %1294 = vmatmul.mubr.bf16.gmra.mxu0 %v1259
        %v1295 = vpop.f32.mrf.mxu0
        %v1296 = vadd.f32 %v1244, %v1295
        %v1297 = vpop.f32.mrf.mxu0
        %v1298 = vpop.f32.mrf.mxu0
        %v1299 = vpop.f32.mrf.mxu0
        %1300 = vdwg.mxu0
        %v1301 = vmax.f32 %v1296, 0.0
        %v1302 = vpack.c.bf16 %v1301, %v1301
        %v1303 = vld [vmem:[%s8] sm:$0xf]
        %v1304 = vld [vmem:[%s8 + $0x4] sm:$0xf]
        %v1305 = vld [vmem:[%s8 + $0x8] sm:$0xf]
        %v1306 = vld [vmem:[%s8 + $0xc] sm:$0xf]
        %v1307 = vld [vmem:[%s8 + $0x10] sm:$0xf]
        %v1308 = vld [vmem:[%s8 + $0x14] sm:$0xf]
        %v1309 = vld [vmem:[%s8 + $0x18] sm:$0xf]
        %v1310 = vld [vmem:[%s8 + $0x1c] sm:$0xf]
        %v1311 = vld [vmem:[%s9] sm:$0x1]
        %v1313 = vlaneseq
        %v1314 = vshrl.u32 %v1313, 7
        %v1315 = vsub.s32 0, %v1314
        %v1316 = vrot.slane %v1311, %v1315
        %v1326 = vunpack.c.l.b16 %v1303
        %v1327 = vunpack.c.l.b16 %v1304
        %v1328 = vunpack.c.l.b16 %v1305
        %v1329 = vunpack.c.l.b16 %v1306
        %v1330 = vunpack.c.l.b16 %v1307
        %v1331 = vunpack.c.l.b16 %v1308
        %v1332 = vunpack.c.l.b16 %v1309
        %v1333 = vunpack.c.l.b16 %v1310
        %v1334 = vpack.c.b16 %v1327, %v1326
        %v1335 = vpack.c.b16 %v1329, %v1328
        %v1336 = vpack.c.b16 %v1331, %v1330
        %v1337 = vpack.c.b16 %v1333, %v1332
        %vm1342 = vcmask 523264
        %v1344 = vsel %vm1342, %v1302, 0
        %1346 = vmatprep.subr.bf16.mxu0 0
        %1347 = vmatpush1.bf16.msra.mxu0 0
        %1348 = vmatprep.subr.bf16.mxu0 0
        %1349 = vmatpush1.bf16.msra.mxu0 0
        %1350 = vmatprep.subr.bf16.mxu0 0
        %1351 = vmatpush1.bf16.msra.mxu0 0
        %1352 = vmatprep.subr.bf16.mxu0 0
        %1353 = vmatpush1.bf16.msra.mxu0 0
        %1354 = vmatprep.subr.bf16.mxu0 0
        %1355 = vmatpush1.bf16.msra.mxu0 %v1337
        %1356 = vmatprep.subr.bf16.mxu0 0
        %1357 = vmatpush1.bf16.msra.mxu0 %v1336
        %1358 = vmatprep.subr.bf16.mxu0 0
        %1359 = vmatpush1.bf16.msra.mxu0 %v1335
        %1360 = vmatprep.subr.bf16.mxu0 0
        %1361 = vmatpush1.bf16.msra.mxu0 %v1334
        %1362 = vmatprep.subr.bf16.mxu0 0
        %1363 = vmatpush2.bf16.msra.mxu0 0
        %1364 = vmatprep.subr.bf16.mxu0 0
        %1365 = vmatpush2.bf16.msra.mxu0 0
        %1366 = vmatprep.subr.bf16.mxu0 0
        %1367 = vmatpush2.bf16.msra.mxu0 0
        %1368 = vmatprep.subr.bf16.mxu0 0
        %1369 = vmatpush2.bf16.msra.mxu0 0
        %1370 = vmatprep.subr.bf16.mxu0 0
        %1371 = vmatpush2.bf16.msra.mxu0 0
        %1372 = vmatprep.subr.bf16.mxu0 0
        %1373 = vmatpush2.bf16.msra.mxu0 0
        %1374 = vmatprep.subr.bf16.mxu0 0
        %1375 = vmatpush2.bf16.msra.mxu0 0
        %1376 = vmatprep.subr.bf16.mxu0 0
        %1377 = vmatpush2.bf16.msra.mxu0 0
        %1378 = vmatprep.mubr.bf16.mxu0 0
        %1379 = vmatmul.mubr.bf16.gmra.mxu0 %v1344
        %v1380 = vpop.f32.mrf.mxu0
        %v1381 = vadd.f32 %v1316, %v1380
        %v1382 = vpop.f32.mrf.mxu0
        %v1383 = vpop.f32.mrf.mxu0
        %v1384 = vpop.f32.mrf.mxu0
        %1385 = vdwg.mxu0
        %v1386 = vadd.f32 %v1233, %v1381
        %v1387 = vld [vmem:[%s12] sm:$0x1]
        %v1388 = vld [vmem:[%s13] sm:$0x1]
        %v1389 = vsel %vm616, %v1386, 0.0
        %1390 = vadd.xlane.f32.xlu0 %v1389
        %v1391 = vpop.xlane.xlu0 %1390
        %v1392 = vmul.f32 %v1391, 0.03125
        %v1393 = vsub.f32 %v1386, %v1392
        %v1394 = vmul.f32 %v1393, %v1393
        %v1395 = vsel %vm616, %v1394, 0.0
        %1396 = vadd.xlane.f32.xlu0 %v1395
        %v1397 = vpop.xlane.xlu0 %1396
        %v1398 = vmul.f32 %v1397, 0.03125
        %v1399 = vadd.f32 %v1398, 1e-05
        %v1400 = vrsqrt.pop %v1399
        %v1401 = vmul.f32 %v1393, %v1400
        %v1403 = vlaneseq
        %v1404 = vshrl.u32 %v1403, 7
        %v1405 = vsub.s32 0, %v1404
        %v1406 = vrot.slane %v1387, %v1405
        %v1408 = vmul.f32 %v1401, %v1406
        %v1410 = vlaneseq
        %v1411 = vshrl.u32 %v1410, 7
        %v1412 = vsub.s32 0, %v1411
        %v1413 = vrot.slane %v1388, %v1412
        %v1415 = vadd.f32 %v1408, %v1413
        %v1416 = vpack.c.bf16 %v1415, %v1415
        %s1417 = scalar_lea.vmem %s2, 16
        %v1418 = vld [vmem:[%s1417] sm:$0xf]
        %v1419 = vld [vmem:[%s1417 + $0x4] sm:$0xf]
        %v1420 = vld [vmem:[%s1417 + $0x8] sm:$0xf]
        %v1421 = vld [vmem:[%s1417 + $0xc] sm:$0xf]
        %s1422 = scalar_lea.vmem %s3, 1
        %v1423 = vld [vmem:[%s1422] sm:$0x1]
        %v1425 = vlaneseq
        %v1426 = vshrl.u32 %v1425, 7
        %v1427 = vsub.s32 0, %v1426
        %v1428 = vrot.slane %v1423, %v1427
        %v1434 = vunpack.c.l.b16 %v1418
        %v1435 = vunpack.c.l.b16 %v1419
        %v1436 = vunpack.c.l.b16 %v1420
        %v1437 = vunpack.c.l.b16 %v1421
        %v1438 = vpack.c.b16 %v1435, %v1434
        %v1439 = vpack.c.b16 %v1437, %v1436
        %v1443 = vsel %vm616, %v1416, 0
        %1445 = vmatprep.subr.bf16.mxu0 0
        %1446 = vmatpush1.bf16.msra.mxu0 0
        %1447 = vmatprep.subr.bf16.mxu0 0
        %1448 = vmatpush1.bf16.msra.mxu0 0
        %1449 = vmatprep.subr.bf16.mxu0 0
        %1450 = vmatpush1.bf16.msra.mxu0 0
        %1451 = vmatprep.subr.bf16.mxu0 0
        %1452 = vmatpush1.bf16.msra.mxu0 0
        %1453 = vmatprep.subr.bf16.mxu0 0
        %1454 = vmatpush1.bf16.msra.mxu0 0
        %1455 = vmatprep.subr.bf16.mxu0 0
        %1456 = vmatpush1.bf16.msra.mxu0 0
        %1457 = vmatprep.subr.bf16.mxu0 0
        %1458 = vmatpush1.bf16.msra.mxu0 %v1439
        %1459 = vmatprep.subr.bf16.mxu0 0
        %1460 = vmatpush1.bf16.msra.mxu0 %v1438
        %1461 = vmatprep.subr.bf16.mxu0 0
        %1462 = vmatpush2.bf16.msra.mxu0 0
        %1463 = vmatprep.subr.bf16.mxu0 0
        %1464 = vmatpush2.bf16.msra.mxu0 0
        %1465 = vmatprep.subr.bf16.mxu0 0
        %1466 = vmatpush2.bf16.msra.mxu0 0
        %1467 = vmatprep.subr.bf16.mxu0 0
        %1468 = vmatpush2.bf16.msra.mxu0 0
        %1469 = vmatprep.subr.bf16.mxu0 0
        %1470 = vmatpush2.bf16.msra.mxu0 0
        %1471 = vmatprep.subr.bf16.mxu0 0
        %1472 = vmatpush2.bf16.msra.mxu0 0
        %1473 = vmatprep.subr.bf16.mxu0 0
        %1474 = vmatpush2.bf16.msra.mxu0 0
        %1475 = vmatprep.subr.bf16.mxu0 0
        %1476 = vmatpush2.bf16.msra.mxu0 0
        %1477 = vmatprep.mubr.bf16.mxu0 0
        %1478 = vmatmul.mubr.bf16.gmra.mxu0 %v1443
        %v1479 = vpop.f32.mrf.mxu0
        %v1480 = vadd.f32 %v1428, %v1479
        %v1481 = vpop.f32.mrf.mxu0
        %v1482 = vpop.f32.mrf.mxu0
        %v1483 = vpop.f32.mrf.mxu0
        %1484 = vdwg.mxu0
        %s1485 = scalar_lea.vmem [#allocation6], 8
        %v1486 = vld [vmem:[%s1485] sm:$0xff]
        %v1487 = vadd.f32 %v1480, %v1486
        %v1488 = vmul.f32 %v1487, 0.35355338
        %v1489 = vpack.c.bf16 %v1488, %v1488
        %v1490 = vpack.c.bf16 %v1487, %v1487
        %v1491 = vpack.c.bf16 %v1480, %v1480
        %1493 = vrot.lane.b32.xlu0 %v1490, 96
        %v1494 = vpop.permute.xlu0 %1493
        %v1496 = vsel %vm669, %v1489, 0
        %v1499 = vsel %vm669, %v1494, 0
        %1501 = vmatprep.subr.bf16.mxu0 0
        %1502 = vmatpush1.bf16.xpose.msra.mxu0 0
        %1503 = vmatprep.subr.bf16.mxu0 0
        %1504 = vmatpush1.bf16.xpose.msra.mxu0 0
        %1505 = vmatprep.subr.bf16.mxu0 0
        %1506 = vmatpush1.bf16.xpose.msra.mxu0 0
        %1507 = vmatprep.subr.bf16.mxu0 0
        %1508 = vmatpush1.bf16.xpose.msra.mxu0 0
        %1509 = vmatprep.subr.bf16.mxu0 0
        %1510 = vmatpush1.bf16.xpose.msra.mxu0 0
        %1511 = vmatprep.subr.bf16.mxu0 0
        %1512 = vmatpush1.bf16.xpose.msra.mxu0 0
        %1513 = vmatprep.subr.bf16.mxu0 0
        %1514 = vmatpush1.bf16.xpose.msra.mxu0 0
        %1515 = vmatprep.subr.bf16.mxu0 0
        %1516 = vmatpush1.bf16.xpose.msra.mxu0 %v1499
        %1517 = vmatprep.subr.bf16.mxu0 0
        %1518 = vmatpush2.bf16.xpose.msra.mxu0 0
        %1519 = vmatprep.subr.bf16.mxu0 0
        %1520 = vmatpush2.bf16.xpose.msra.mxu0 0
        %1521 = vmatprep.subr.bf16.mxu0 0
        %1522 = vmatpush2.bf16.xpose.msra.mxu0 0
        %1523 = vmatprep.subr.bf16.mxu0 0
        %1524 = vmatpush2.bf16.xpose.msra.mxu0 0
        %1525 = vmatprep.subr.bf16.mxu0 0
        %1526 = vmatpush2.bf16.xpose.msra.mxu0 0
        %1527 = vmatprep.subr.bf16.mxu0 0
        %1528 = vmatpush2.bf16.xpose.msra.mxu0 0
        %1529 = vmatprep.subr.bf16.mxu0 0
        %1530 = vmatpush2.bf16.xpose.msra.mxu0 0
        %1531 = vmatprep.subr.bf16.mxu0 0
        %1532 = vmatpush2.bf16.xpose.msra.mxu0 0
        %1533 = vmatprep.mubr.bf16.mxu0 0
        %1534 = vmatmul.mubr.bf16.gmra.mxu0 %v1496
        %v1535 = vpop.f32.mrf.mxu0
        %v1536 = vadd.f32 0.0, %v1535
        %v1537 = vpop.f32.mrf.mxu0
        %v1538 = vpop.f32.mrf.mxu0
        %v1539 = vpop.f32.mrf.mxu0
        %1540 = vdwg.mxu0
        %v1541 = vsel %vm669, %v1536, -inf
        %1542 = vmax.xlane.f32.xlu0 %v1541
        %v1543 = vpop.xlane.xlu0 %1542
        %v1544 = vsub.f32 %v1536, %v1543
        %v1545 = vmul.f32 %v1544, 1.442695
        %v1546 = vpow.pop %v1545
        %v1547 = vsel %vm669, %v1546, 0.0
        %1548 = vadd.xlane.f32.xlu0 %v1547
        %v1549 = vpop.xlane.xlu0 %1548
        %v1550 = vrcp.pop %v1549
        %v1551 = vmul.f32 %v1546, %v1550
        %v1552 = vpack.c.bf16 %v1551, %v1551
        %s1553 = scalar_lea.vmem %s589, 16 [#allocation9]
        %1554 = vst.msk [vmem:[%s1553] sm:$0xf] %vm728, %v1552
        %1556 = vrot.lane.b32.xlu0 %v1491, 64
        %v1557 = vpop.permute.xlu0 %1556
        %v1559 = vsel %vm669, %v1552, 0
        %v1562 = vsel %vm736, %v1557, 0
        %1564 = vmatprep.subr.bf16.mxu0 0
        %1565 = vmatpush1.bf16.msra.mxu0 0
        %1566 = vmatprep.subr.bf16.mxu0 0
        %1567 = vmatpush1.bf16.msra.mxu0 0
        %1568 = vmatprep.subr.bf16.mxu0 0
        %1569 = vmatpush1.bf16.msra.mxu0 0
        %1570 = vmatprep.subr.bf16.mxu0 0
        %1571 = vmatpush1.bf16.msra.mxu0 0
        %1572 = vmatprep.subr.bf16.mxu0 0
        %1573 = vmatpush1.bf16.msra.mxu0 0
        %1574 = vmatprep.subr.bf16.mxu0 0
        %1575 = vmatpush1.bf16.msra.mxu0 0
        %1576 = vmatprep.subr.bf16.mxu0 0
        %1577 = vmatpush1.bf16.msra.mxu0 0
        %1578 = vmatprep.subr.bf16.mxu0 0
        %1579 = vmatpush1.bf16.msra.mxu0 %v1562
        %1580 = vmatprep.subr.bf16.mxu0 0
        %1581 = vmatpush2.bf16.msra.mxu0 0
        %1582 = vmatprep.subr.bf16.mxu0 0
        %1583 = vmatpush2.bf16.msra.mxu0 0
        %1584 = vmatprep.subr.bf16.mxu0 0
        %1585 = vmatpush2.bf16.msra.mxu0 0
        %1586 = vmatprep.subr.bf16.mxu0 0
        %1587 = vmatpush2.bf16.msra.mxu0 0
        %1588 = vmatprep.subr.bf16.mxu0 0
        %1589 = vmatpush2.bf16.msra.mxu0 0
        %1590 = vmatprep.subr.bf16.mxu0 0
        %1591 = vmatpush2.bf16.msra.mxu0 0
        %1592 = vmatprep.subr.bf16.mxu0 0
        %1593 = vmatpush2.bf16.msra.mxu0 0
        %1594 = vmatprep.subr.bf16.mxu0 0
        %1595 = vmatpush2.bf16.msra.mxu0 0
        %1596 = vmatprep.mubr.bf16.mxu0 0
        %1597 = vmatmul.mubr.bf16.gmra.mxu0 %v1559
        %v1598 = vpop.f32.mrf.mxu0
        %v1599 = vadd.f32 0.0, %v1598
        %v1600 = vpop.f32.mrf.mxu0
        %v1601 = vpop.f32.mrf.mxu0
        %v1602 = vpop.f32.mrf.mxu0
        %1603 = vdwg.mxu0
        %1604 = vst.msk [vmem:[#allocation2] sm:$0xff] %vm669, %v1599
        %1606 = vrot.lane.b32.xlu0 %v1489, 120
        %v1607 = vpop.permute.xlu0 %1606
        %1608 = vrot.lane.b32.xlu0 %v1490, 88
        %v1609 = vpop.permute.xlu0 %1608
        %v1611 = vsel %vm669, %v1607, 0
        %v1614 = vsel %vm669, %v1609, 0
        %1616 = vmatprep.subr.bf16.mxu0 0
        %1617 = vmatpush1.bf16.xpose.msra.mxu0 0
        %1618 = vmatprep.subr.bf16.mxu0 0
        %1619 = vmatpush1.bf16.xpose.msra.mxu0 0
        %1620 = vmatprep.subr.bf16.mxu0 0
        %1621 = vmatpush1.bf16.xpose.msra.mxu0 0
        %1622 = vmatprep.subr.bf16.mxu0 0
        %1623 = vmatpush1.bf16.xpose.msra.mxu0 0
        %1624 = vmatprep.subr.bf16.mxu0 0
        %1625 = vmatpush1.bf16.xpose.msra.mxu0 0
        %1626 = vmatprep.subr.bf16.mxu0 0
        %1627 = vmatpush1.bf16.xpose.msra.mxu0 0
        %1628 = vmatprep.subr.bf16.mxu0 0
        %1629 = vmatpush1.bf16.xpose.msra.mxu0 0
        %1630 = vmatprep.subr.bf16.mxu0 0
        %1631 = vmatpush1.bf16.xpose.msra.mxu0 %v1614
        %1632 = vmatprep.subr.bf16.mxu0 0
        %1633 = vmatpush2.bf16.xpose.msra.mxu0 0
        %1634 = vmatprep.subr.bf16.mxu0 0
        %1635 = vmatpush2.bf16.xpose.msra.mxu0 0
        %1636 = vmatprep.subr.bf16.mxu0 0
        %1637 = vmatpush2.bf16.xpose.msra.mxu0 0
        %1638 = vmatprep.subr.bf16.mxu0 0
        %1639 = vmatpush2.bf16.xpose.msra.mxu0 0
        %1640 = vmatprep.subr.bf16.mxu0 0
        %1641 = vmatpush2.bf16.xpose.msra.mxu0 0
        %1642 = vmatprep.subr.bf16.mxu0 0
        %1643 = vmatpush2.bf16.xpose.msra.mxu0 0
        %1644 = vmatprep.subr.bf16.mxu0 0
        %1645 = vmatpush2.bf16.xpose.msra.mxu0 0
        %1646 = vmatprep.subr.bf16.mxu0 0
        %1647 = vmatpush2.bf16.xpose.msra.mxu0 0
        %1648 = vmatprep.mubr.bf16.mxu0 0
        %1649 = vmatmul.mubr.bf16.gmra.mxu0 %v1611
        %v1650 = vpop.f32.mrf.mxu0
        %v1651 = vadd.f32 0.0, %v1650
        %v1652 = vpop.f32.mrf.mxu0
        %v1653 = vpop.f32.mrf.mxu0
        %v1654 = vpop.f32.mrf.mxu0
        %1655 = vdwg.mxu0
        %v1656 = vsel %vm669, %v1651, -inf
        %1657 = vmax.xlane.f32.xlu0 %v1656
        %v1658 = vpop.xlane.xlu0 %1657
        %v1659 = vsub.f32 %v1651, %v1658
        %v1660 = vmul.f32 %v1659, 1.442695
        %v1661 = vpow.pop %v1660
        %v1662 = vsel %vm669, %v1661, 0.0
        %1663 = vadd.xlane.f32.xlu0 %v1662
        %v1664 = vpop.xlane.xlu0 %1663
        %v1665 = vrcp.pop %v1664
        %v1666 = vmul.f32 %v1661, %v1665
        %v1667 = vpack.c.bf16 %v1666, %v1666
        %s1668 = scalar_lea.vmem %s589, 20 [#allocation9]
        %1669 = vst.msk [vmem:[%s1668] sm:$0xf] %vm728, %v1667
        %1670 = vrot.lane.b32.xlu0 %v1491, 56
        %v1671 = vpop.permute.xlu0 %1670
        %v1673 = vsel %vm669, %v1667, 0
        %v1676 = vsel %vm736, %v1671, 0
        %1678 = vmatprep.subr.bf16.mxu0 0
        %1679 = vmatpush1.bf16.msra.mxu0 0
        %1680 = vmatprep.subr.bf16.mxu0 0
        %1681 = vmatpush1.bf16.msra.mxu0 0
        %1682 = vmatprep.subr.bf16.mxu0 0
        %1683 = vmatpush1.bf16.msra.mxu0 0
        %1684 = vmatprep.subr.bf16.mxu0 0
        %1685 = vmatpush1.bf16.msra.mxu0 0
        %1686 = vmatprep.subr.bf16.mxu0 0
        %1687 = vmatpush1.bf16.msra.mxu0 0
        %1688 = vmatprep.subr.bf16.mxu0 0
        %1689 = vmatpush1.bf16.msra.mxu0 0
        %1690 = vmatprep.subr.bf16.mxu0 0
        %1691 = vmatpush1.bf16.msra.mxu0 0
        %1692 = vmatprep.subr.bf16.mxu0 0
        %1693 = vmatpush1.bf16.msra.mxu0 %v1676
        %1694 = vmatprep.subr.bf16.mxu0 0
        %1695 = vmatpush2.bf16.msra.mxu0 0
        %1696 = vmatprep.subr.bf16.mxu0 0
        %1697 = vmatpush2.bf16.msra.mxu0 0
        %1698 = vmatprep.subr.bf16.mxu0 0
        %1699 = vmatpush2.bf16.msra.mxu0 0
        %1700 = vmatprep.subr.bf16.mxu0 0
        %1701 = vmatpush2.bf16.msra.mxu0 0
        %1702 = vmatprep.subr.bf16.mxu0 0
        %1703 = vmatpush2.bf16.msra.mxu0 0
        %1704 = vmatprep.subr.bf16.mxu0 0
        %1705 = vmatpush2.bf16.msra.mxu0 0
        %1706 = vmatprep.subr.bf16.mxu0 0
        %1707 = vmatpush2.bf16.msra.mxu0 0
        %1708 = vmatprep.subr.bf16.mxu0 0
        %1709 = vmatpush2.bf16.msra.mxu0 0
        %1710 = vmatprep.mubr.bf16.mxu0 0
        %1711 = vmatmul.mubr.bf16.gmra.mxu0 %v1673
        %v1712 = vpop.f32.mrf.mxu0
        %v1713 = vadd.f32 0.0, %v1712
        %v1714 = vpop.f32.mrf.mxu0
        %v1715 = vpop.f32.mrf.mxu0
        %v1716 = vpop.f32.mrf.mxu0
        %1717 = vdwg.mxu0
        %1719 = vrot.lane.b32.xlu0 %v1713, 8
        %v1720 = vpop.permute.xlu0 %1719
        %1722 = vst.msk [vmem:[#allocation2] sm:$0xff] %vm898, %v1720
        %1723 = vrot.lane.b32.xlu0 %v1489, 112
        %v1724 = vpop.permute.xlu0 %1723
        %1725 = vrot.lane.b32.xlu0 %v1490, 80
        %v1726 = vpop.permute.xlu0 %1725
        %v1728 = vsel %vm669, %v1724, 0
        %v1731 = vsel %vm669, %v1726, 0
        %1733 = vmatprep.subr.bf16.mxu0 0
        %1734 = vmatpush1.bf16.xpose.msra.mxu0 0
        %1735 = vmatprep.subr.bf16.mxu0 0
        %1736 = vmatpush1.bf16.xpose.msra.mxu0 0
        %1737 = vmatprep.subr.bf16.mxu0 0
        %1738 = vmatpush1.bf16.xpose.msra.mxu0 0
        %1739 = vmatprep.subr.bf16.mxu0 0
        %1740 = vmatpush1.bf16.xpose.msra.mxu0 0
        %1741 = vmatprep.subr.bf16.mxu0 0
        %1742 = vmatpush1.bf16.xpose.msra.mxu0 0
        %1743 = vmatprep.subr.bf16.mxu0 0
        %1744 = vmatpush1.bf16.xpose.msra.mxu0 0
        %1745 = vmatprep.subr.bf16.mxu0 0
        %1746 = vmatpush1.bf16.xpose.msra.mxu0 0
        %1747 = vmatprep.subr.bf16.mxu0 0
        %1748 = vmatpush1.bf16.xpose.msra.mxu0 %v1731
        %1749 = vmatprep.subr.bf16.mxu0 0
        %1750 = vmatpush2.bf16.xpose.msra.mxu0 0
        %1751 = vmatprep.subr.bf16.mxu0 0
        %1752 = vmatpush2.bf16.xpose.msra.mxu0 0
        %1753 = vmatprep.subr.bf16.mxu0 0
        %1754 = vmatpush2.bf16.xpose.msra.mxu0 0
        %1755 = vmatprep.subr.bf16.mxu0 0
        %1756 = vmatpush2.bf16.xpose.msra.mxu0 0
        %1757 = vmatprep.subr.bf16.mxu0 0
        %1758 = vmatpush2.bf16.xpose.msra.mxu0 0
        %1759 = vmatprep.subr.bf16.mxu0 0
        %1760 = vmatpush2.bf16.xpose.msra.mxu0 0
        %1761 = vmatprep.subr.bf16.mxu0 0
        %1762 = vmatpush2.bf16.xpose.msra.mxu0 0
        %1763 = vmatprep.subr.bf16.mxu0 0
        %1764 = vmatpush2.bf16.xpose.msra.mxu0 0
        %1765 = vmatprep.mubr.bf16.mxu0 0
        %1766 = vmatmul.mubr.bf16.gmra.mxu0 %v1728
        %v1767 = vpop.f32.mrf.mxu0
        %v1768 = vadd.f32 0.0, %v1767
        %v1769 = vpop.f32.mrf.mxu0
        %v1770 = vpop.f32.mrf.mxu0
        %v1771 = vpop.f32.mrf.mxu0
        %1772 = vdwg.mxu0
        %v1773 = vsel %vm669, %v1768, -inf
        %1774 = vmax.xlane.f32.xlu0 %v1773
        %v1775 = vpop.xlane.xlu0 %1774
        %v1776 = vsub.f32 %v1768, %v1775
        %v1777 = vmul.f32 %v1776, 1.442695
        %v1778 = vpow.pop %v1777
        %v1779 = vsel %vm669, %v1778, 0.0
        %1780 = vadd.xlane.f32.xlu0 %v1779
        %v1781 = vpop.xlane.xlu0 %1780
        %v1782 = vrcp.pop %v1781
        %v1783 = vmul.f32 %v1778, %v1782
        %v1784 = vpack.c.bf16 %v1783, %v1783
        %s1785 = scalar_lea.vmem %s589, 24 [#allocation9]
        %1786 = vst.msk [vmem:[%s1785] sm:$0xf] %vm728, %v1784
        %1787 = vrot.lane.b32.xlu0 %v1491, 48
        %v1788 = vpop.permute.xlu0 %1787
        %v1790 = vsel %vm669, %v1784, 0
        %v1793 = vsel %vm736, %v1788, 0
        %1795 = vmatprep.subr.bf16.mxu0 0
        %1796 = vmatpush1.bf16.msra.mxu0 0
        %1797 = vmatprep.subr.bf16.mxu0 0
        %1798 = vmatpush1.bf16.msra.mxu0 0
        %1799 = vmatprep.subr.bf16.mxu0 0
        %1800 = vmatpush1.bf16.msra.mxu0 0
        %1801 = vmatprep.subr.bf16.mxu0 0
        %1802 = vmatpush1.bf16.msra.mxu0 0
        %1803 = vmatprep.subr.bf16.mxu0 0
        %1804 = vmatpush1.bf16.msra.mxu0 0
        %1805 = vmatprep.subr.bf16.mxu0 0
        %1806 = vmatpush1.bf16.msra.mxu0 0
        %1807 = vmatprep.subr.bf16.mxu0 0
        %1808 = vmatpush1.bf16.msra.mxu0 0
        %1809 = vmatprep.subr.bf16.mxu0 0
        %1810 = vmatpush1.bf16.msra.mxu0 %v1793
        %1811 = vmatprep.subr.bf16.mxu0 0
        %1812 = vmatpush2.bf16.msra.mxu0 0
        %1813 = vmatprep.subr.bf16.mxu0 0
        %1814 = vmatpush2.bf16.msra.mxu0 0
        %1815 = vmatprep.subr.bf16.mxu0 0
        %1816 = vmatpush2.bf16.msra.mxu0 0
        %1817 = vmatprep.subr.bf16.mxu0 0
        %1818 = vmatpush2.bf16.msra.mxu0 0
        %1819 = vmatprep.subr.bf16.mxu0 0
        %1820 = vmatpush2.bf16.msra.mxu0 0
        %1821 = vmatprep.subr.bf16.mxu0 0
        %1822 = vmatpush2.bf16.msra.mxu0 0
        %1823 = vmatprep.subr.bf16.mxu0 0
        %1824 = vmatpush2.bf16.msra.mxu0 0
        %1825 = vmatprep.subr.bf16.mxu0 0
        %1826 = vmatpush2.bf16.msra.mxu0 0
        %1827 = vmatprep.mubr.bf16.mxu0 0
        %1828 = vmatmul.mubr.bf16.gmra.mxu0 %v1790
        %v1829 = vpop.f32.mrf.mxu0
        %v1830 = vadd.f32 0.0, %v1829
        %v1831 = vpop.f32.mrf.mxu0
        %v1832 = vpop.f32.mrf.mxu0
        %v1833 = vpop.f32.mrf.mxu0
        %1834 = vdwg.mxu0
        %1836 = vrot.lane.b32.xlu0 %v1830, 16
        %v1837 = vpop.permute.xlu0 %1836
        %1839 = vst.msk [vmem:[#allocation2] sm:$0xff] %vm1016, %v1837
        %1840 = vrot.lane.b32.xlu0 %v1489, 104
        %v1841 = vpop.permute.xlu0 %1840
        %1842 = vrot.lane.b32.xlu0 %v1490, 72
        %v1843 = vpop.permute.xlu0 %1842
        %v1845 = vsel %vm669, %v1841, 0
        %v1848 = vsel %vm669, %v1843, 0
        %1850 = vmatprep.subr.bf16.mxu0 0
        %1851 = vmatpush1.bf16.xpose.msra.mxu0 0
        %1852 = vmatprep.subr.bf16.mxu0 0
        %1853 = vmatpush1.bf16.xpose.msra.mxu0 0
        %1854 = vmatprep.subr.bf16.mxu0 0
        %1855 = vmatpush1.bf16.xpose.msra.mxu0 0
        %1856 = vmatprep.subr.bf16.mxu0 0
        %1857 = vmatpush1.bf16.xpose.msra.mxu0 0
        %1858 = vmatprep.subr.bf16.mxu0 0
        %1859 = vmatpush1.bf16.xpose.msra.mxu0 0
        %1860 = vmatprep.subr.bf16.mxu0 0
        %1861 = vmatpush1.bf16.xpose.msra.mxu0 0
        %1862 = vmatprep.subr.bf16.mxu0 0
        %1863 = vmatpush1.bf16.xpose.msra.mxu0 0
        %1864 = vmatprep.subr.bf16.mxu0 0
        %1865 = vmatpush1.bf16.xpose.msra.mxu0 %v1848
        %1866 = vmatprep.subr.bf16.mxu0 0
        %1867 = vmatpush2.bf16.xpose.msra.mxu0 0
        %1868 = vmatprep.subr.bf16.mxu0 0
        %1869 = vmatpush2.bf16.xpose.msra.mxu0 0
        %1870 = vmatprep.subr.bf16.mxu0 0
        %1871 = vmatpush2.bf16.xpose.msra.mxu0 0
        %1872 = vmatprep.subr.bf16.mxu0 0
        %1873 = vmatpush2.bf16.xpose.msra.mxu0 0
        %1874 = vmatprep.subr.bf16.mxu0 0
        %1875 = vmatpush2.bf16.xpose.msra.mxu0 0
        %1876 = vmatprep.subr.bf16.mxu0 0
        %1877 = vmatpush2.bf16.xpose.msra.mxu0 0
        %1878 = vmatprep.subr.bf16.mxu0 0
        %1879 = vmatpush2.bf16.xpose.msra.mxu0 0
        %1880 = vmatprep.subr.bf16.mxu0 0
        %1881 = vmatpush2.bf16.xpose.msra.mxu0 0
        %1882 = vmatprep.mubr.bf16.mxu0 0
        %1883 = vmatmul.mubr.bf16.gmra.mxu0 %v1845
        %v1884 = vpop.f32.mrf.mxu0
        %v1885 = vadd.f32 0.0, %v1884
        %v1886 = vpop.f32.mrf.mxu0
        %v1887 = vpop.f32.mrf.mxu0
        %v1888 = vpop.f32.mrf.mxu0
        %1889 = vdwg.mxu0
        %v1890 = vsel %vm669, %v1885, -inf
        %1891 = vmax.xlane.f32.xlu0 %v1890
        %v1892 = vpop.xlane.xlu0 %1891
        %v1893 = vsub.f32 %v1885, %v1892
        %v1894 = vmul.f32 %v1893, 1.442695
        %v1895 = vpow.pop %v1894
        %v1896 = vsel %vm669, %v1895, 0.0
        %1897 = vadd.xlane.f32.xlu0 %v1896
        %v1898 = vpop.xlane.xlu0 %1897
        %v1899 = vrcp.pop %v1898
        %v1900 = vmul.f32 %v1895, %v1899
        %v1901 = vpack.c.bf16 %v1900, %v1900
        %s1902 = scalar_lea.vmem %s589, 28 [#allocation9]
        %1903 = vst.msk [vmem:[%s1902] sm:$0xf] %vm728, %v1901
        %1904 = vrot.lane.b32.xlu0 %v1491, 40
        %v1905 = vpop.permute.xlu0 %1904
        %v1907 = vsel %vm669, %v1901, 0
        %v1910 = vsel %vm736, %v1905, 0
        %1912 = vmatprep.subr.bf16.mxu0 0
        %1913 = vmatpush1.bf16.msra.mxu0 0
        %1914 = vmatprep.subr.bf16.mxu0 0
        %1915 = vmatpush1.bf16.msra.mxu0 0
        %1916 = vmatprep.subr.bf16.mxu0 0
        %1917 = vmatpush1.bf16.msra.mxu0 0
        %1918 = vmatprep.subr.bf16.mxu0 0
        %1919 = vmatpush1.bf16.msra.mxu0 0
        %1920 = vmatprep.subr.bf16.mxu0 0
        %1921 = vmatpush1.bf16.msra.mxu0 0
        %1922 = vmatprep.subr.bf16.mxu0 0
        %1923 = vmatpush1.bf16.msra.mxu0 0
        %1924 = vmatprep.subr.bf16.mxu0 0
        %1925 = vmatpush1.bf16.msra.mxu0 0
        %1926 = vmatprep.subr.bf16.mxu0 0
        %1927 = vmatpush1.bf16.msra.mxu0 %v1910
        %1928 = vmatprep.subr.bf16.mxu0 0
        %1929 = vmatpush2.bf16.msra.mxu0 0
        %1930 = vmatprep.subr.bf16.mxu0 0
        %1931 = vmatpush2.bf16.msra.mxu0 0
        %1932 = vmatprep.subr.bf16.mxu0 0
        %1933 = vmatpush2.bf16.msra.mxu0 0
        %1934 = vmatprep.subr.bf16.mxu0 0
        %1935 = vmatpush2.bf16.msra.mxu0 0
        %1936 = vmatprep.subr.bf16.mxu0 0
        %1937 = vmatpush2.bf16.msra.mxu0 0
        %1938 = vmatprep.subr.bf16.mxu0 0
        %1939 = vmatpush2.bf16.msra.mxu0 0
        %1940 = vmatprep.subr.bf16.mxu0 0
        %1941 = vmatpush2.bf16.msra.mxu0 0
        %1942 = vmatprep.subr.bf16.mxu0 0
        %1943 = vmatpush2.bf16.msra.mxu0 0
        %1944 = vmatprep.mubr.bf16.mxu0 0
        %1945 = vmatmul.mubr.bf16.gmra.mxu0 %v1907
        %v1946 = vpop.f32.mrf.mxu0
        %v1947 = vadd.f32 0.0, %v1946
        %v1948 = vpop.f32.mrf.mxu0
        %v1949 = vpop.f32.mrf.mxu0
        %v1950 = vpop.f32.mrf.mxu0
        %1951 = vdwg.mxu0
        %1953 = vrot.lane.b32.xlu0 %v1947, 24
        %v1954 = vpop.permute.xlu0 %1953
        %1956 = vst.msk [vmem:[#allocation2] sm:$0xff] %vm1134, %v1954
        %v1957 = vld [vmem:[#allocation2] sm:$0xff]
        %v1958 = vpack.c.bf16 %v1957, %v1957
        %s1959 = scalar_lea.vmem %s4, 16
        %v1960 = vld [vmem:[%s1959] sm:$0xf]
        %v1961 = vld [vmem:[%s1959 + $0x4] sm:$0xf]
        %v1962 = vld [vmem:[%s1959 + $0x8] sm:$0xf]
        %v1963 = vld [vmem:[%s1959 + $0xc] sm:$0xf]
        %s1964 = scalar_lea.vmem %s5, 1
        %v1965 = vld [vmem:[%s1964] sm:$0x1]
        %v1967 = vlaneseq
        %v1968 = vshrl.u32 %v1967, 7
        %v1969 = vsub.s32 0, %v1968
        %v1970 = vrot.slane %v1965, %v1969
        %v1976 = vunpack.c.l.b16 %v1960
        %v1977 = vunpack.c.l.b16 %v1961
        %v1978 = vunpack.c.l.b16 %v1962
        %v1979 = vunpack.c.l.b16 %v1963
        %v1980 = vpack.c.b16 %v1977, %v1976
        %v1981 = vpack.c.b16 %v1979, %v1978
        %v1985 = vsel %vm616, %v1958, 0
        %1987 = vmatprep.subr.bf16.mxu0 0
        %1988 = vmatpush1.bf16.msra.mxu0 0
        %1989 = vmatprep.subr.bf16.mxu0 0
        %1990 = vmatpush1.bf16.msra.mxu0 0
        %1991 = vmatprep.subr.bf16.mxu0 0
        %1992 = vmatpush1.bf16.msra.mxu0 0
        %1993 = vmatprep.subr.bf16.mxu0 0
        %1994 = vmatpush1.bf16.msra.mxu0 0
        %1995 = vmatprep.subr.bf16.mxu0 0
        %1996 = vmatpush1.bf16.msra.mxu0 0
        %1997 = vmatprep.subr.bf16.mxu0 0
        %1998 = vmatpush1.bf16.msra.mxu0 0
        %1999 = vmatprep.subr.bf16.mxu0 0
        %2000 = vmatpush1.bf16.msra.mxu0 %v1981
        %2001 = vmatprep.subr.bf16.mxu0 0
        %2002 = vmatpush1.bf16.msra.mxu0 %v1980
        %2003 = vmatprep.subr.bf16.mxu0 0
        %2004 = vmatpush2.bf16.msra.mxu0 0
        %2005 = vmatprep.subr.bf16.mxu0 0
        %2006 = vmatpush2.bf16.msra.mxu0 0
        %2007 = vmatprep.subr.bf16.mxu0 0
        %2008 = vmatpush2.bf16.msra.mxu0 0
        %2009 = vmatprep.subr.bf16.mxu0 0
        %2010 = vmatpush2.bf16.msra.mxu0 0
        %2011 = vmatprep.subr.bf16.mxu0 0
        %2012 = vmatpush2.bf16.msra.mxu0 0
        %2013 = vmatprep.subr.bf16.mxu0 0
        %2014 = vmatpush2.bf16.msra.mxu0 0
        %2015 = vmatprep.subr.bf16.mxu0 0
        %2016 = vmatpush2.bf16.msra.mxu0 0
        %2017 = vmatprep.subr.bf16.mxu0 0
        %2018 = vmatpush2.bf16.msra.mxu0 0
        %2019 = vmatprep.mubr.bf16.mxu0 0
        %2020 = vmatmul.mubr.bf16.gmra.mxu0 %v1985
        %v2021 = vpop.f32.mrf.mxu0
        %v2022 = vadd.f32 %v1970, %v2021
        %v2023 = vpop.f32.mrf.mxu0
        %v2024 = vpop.f32.mrf.mxu0
        %v2025 = vpop.f32.mrf.mxu0
        %2026 = vdwg.mxu0
        %v2027 = vadd.f32 %v1415, %v2022
        %s2028 = scalar_lea.vmem %s10, 1
        %v2029 = vld [vmem:[%s2028] sm:$0x1]
        %s2030 = scalar_lea.vmem %s11, 1
        %v2031 = vld [vmem:[%s2030] sm:$0x1]
        %v2032 = vsel %vm616, %v2027, 0.0
        %2033 = vadd.xlane.f32.xlu0 %v2032
        %v2034 = vpop.xlane.xlu0 %2033
        %v2035 = vmul.f32 %v2034, 0.03125
        %v2036 = vsub.f32 %v2027, %v2035
        %v2037 = vmul.f32 %v2036, %v2036
        %v2038 = vsel %vm616, %v2037, 0.0
        %2039 = vadd.xlane.f32.xlu0 %v2038
        %v2040 = vpop.xlane.xlu0 %2039
        %v2041 = vmul.f32 %v2040, 0.03125
        %v2042 = vadd.f32 %v2041, 1e-05
        %v2043 = vrsqrt.pop %v2042
        %v2044 = vmul.f32 %v2036, %v2043
        %v2046 = vlaneseq
        %v2047 = vshrl.u32 %v2046, 7
        %v2048 = vsub.s32 0, %v2047
        %v2049 = vrot.slane %v2029, %v2048
        %v2051 = vmul.f32 %v2044, %v2049
        %v2053 = vlaneseq
        %v2054 = vshrl.u32 %v2053, 7
        %v2055 = vsub.s32 0, %v2054
        %v2056 = vrot.slane %v2031, %v2055
        %v2058 = vadd.f32 %v2051, %v2056
        %v2059 = vpack.c.bf16 %v2058, %v2058
        %s2060 = scalar_lea.vmem %s6, 16
        %v2061 = vld [vmem:[%s2060] sm:$0xf]
        %v2062 = vld [vmem:[%s2060 + $0x4] sm:$0xf]
        %v2063 = vld [vmem:[%s2060 + $0x8] sm:$0xf]
        %v2064 = vld [vmem:[%s2060 + $0xc] sm:$0xf]
        %s2065 = scalar_lea.vmem %s7, 1
        %v2066 = vld [vmem:[%s2065] sm:$0x1]
        %v2068 = vlaneseq
        %v2069 = vshrl.u32 %v2068, 7
        %v2070 = vsub.s32 0, %v2069
        %v2071 = vrot.slane %v2066, %v2070
        %v2077 = vunpack.c.l.b16 %v2061
        %v2078 = vunpack.c.l.b16 %v2062
        %v2079 = vunpack.c.l.b16 %v2063
        %v2080 = vunpack.c.l.b16 %v2064
        %v2081 = vpack.c.b16 %v2078, %v2077
        %v2082 = vpack.c.b16 %v2080, %v2079
        %v2086 = vsel %vm616, %v2059, 0
        %2088 = vmatprep.subr.bf16.mxu0 0
        %2089 = vmatpush1.bf16.msra.mxu0 0
        %2090 = vmatprep.subr.bf16.mxu0 0
        %2091 = vmatpush1.bf16.msra.mxu0 0
        %2092 = vmatprep.subr.bf16.mxu0 0
        %2093 = vmatpush1.bf16.msra.mxu0 0
        %2094 = vmatprep.subr.bf16.mxu0 0
        %2095 = vmatpush1.bf16.msra.mxu0 0
        %2096 = vmatprep.subr.bf16.mxu0 0
        %2097 = vmatpush1.bf16.msra.mxu0 0
        %2098 = vmatprep.subr.bf16.mxu0 0
        %2099 = vmatpush1.bf16.msra.mxu0 0
        %2100 = vmatprep.subr.bf16.mxu0 0
        %2101 = vmatpush1.bf16.msra.mxu0 %v2082
        %2102 = vmatprep.subr.bf16.mxu0 0
        %2103 = vmatpush1.bf16.msra.mxu0 %v2081
        %2104 = vmatprep.subr.bf16.mxu0 0
        %2105 = vmatpush2.bf16.msra.mxu0 0
        %2106 = vmatprep.subr.bf16.mxu0 0
        %2107 = vmatpush2.bf16.msra.mxu0 0
        %2108 = vmatprep.subr.bf16.mxu0 0
        %2109 = vmatpush2.bf16.msra.mxu0 0
        %2110 = vmatprep.subr.bf16.mxu0 0
        %2111 = vmatpush2.bf16.msra.mxu0 0
        %2112 = vmatprep.subr.bf16.mxu0 0
        %2113 = vmatpush2.bf16.msra.mxu0 0
        %2114 = vmatprep.subr.bf16.mxu0 0
        %2115 = vmatpush2.bf16.msra.mxu0 0
        %2116 = vmatprep.subr.bf16.mxu0 0
        %2117 = vmatpush2.bf16.msra.mxu0 0
        %2118 = vmatprep.subr.bf16.mxu0 0
        %2119 = vmatpush2.bf16.msra.mxu0 0
        %2120 = vmatprep.mubr.bf16.mxu0 0
        %2121 = vmatmul.mubr.bf16.gmra.mxu0 %v2086
        %v2122 = vpop.f32.mrf.mxu0
        %v2123 = vadd.f32 %v2071, %v2122
        %v2124 = vpop.f32.mrf.mxu0
        %v2125 = vpop.f32.mrf.mxu0
        %v2126 = vpop.f32.mrf.mxu0
        %2127 = vdwg.mxu0
        %v2128 = vmax.f32 %v2123, 0.0
        %v2129 = vpack.c.bf16 %v2128, %v2128
        %s2130 = scalar_lea.vmem %s8, 32
        %v2131 = vld [vmem:[%s2130] sm:$0xf]
        %v2132 = vld [vmem:[%s2130 + $0x4] sm:$0xf]
        %v2133 = vld [vmem:[%s2130 + $0x8] sm:$0xf]
        %v2134 = vld [vmem:[%s2130 + $0xc] sm:$0xf]
        %v2135 = vld [vmem:[%s2130 + $0x10] sm:$0xf]
        %v2136 = vld [vmem:[%s2130 + $0x14] sm:$0xf]
        %v2137 = vld [vmem:[%s2130 + $0x18] sm:$0xf]
        %v2138 = vld [vmem:[%s2130 + $0x1c] sm:$0xf]
        %s2139 = scalar_lea.vmem %s9, 1
        %v2140 = vld [vmem:[%s2139] sm:$0x1]
        %v2142 = vlaneseq
        %v2143 = vshrl.u32 %v2142, 7
        %v2144 = vsub.s32 0, %v2143
        %v2145 = vrot.slane %v2140, %v2144
        %v2155 = vunpack.c.l.b16 %v2131
        %v2156 = vunpack.c.l.b16 %v2132
        %v2157 = vunpack.c.l.b16 %v2133
        %v2158 = vunpack.c.l.b16 %v2134
        %v2159 = vunpack.c.l.b16 %v2135
        %v2160 = vunpack.c.l.b16 %v2136
        %v2161 = vunpack.c.l.b16 %v2137
        %v2162 = vunpack.c.l.b16 %v2138
        %v2163 = vpack.c.b16 %v2156, %v2155
        %v2164 = vpack.c.b16 %v2158, %v2157
        %v2165 = vpack.c.b16 %v2160, %v2159
        %v2166 = vpack.c.b16 %v2162, %v2161
        %v2172 = vsel %vm1342, %v2129, 0
        %2174 = vmatprep.subr.bf16.mxu0 0
        %2175 = vmatpush1.bf16.msra.mxu0 0
        %2176 = vmatprep.subr.bf16.mxu0 0
        %2177 = vmatpush1.bf16.msra.mxu0 0
        %2178 = vmatprep.subr.bf16.mxu0 0
        %2179 = vmatpush1.bf16.msra.mxu0 0
        %2180 = vmatprep.subr.bf16.mxu0 0
        %2181 = vmatpush1.bf16.msra.mxu0 0
        %2182 = vmatprep.subr.bf16.mxu0 0
        %2183 = vmatpush1.bf16.msra.mxu0 %v2166
        %2184 = vmatprep.subr.bf16.mxu0 0
        %2185 = vmatpush1.bf16.msra.mxu0 %v2165
        %2186 = vmatprep.subr.bf16.mxu0 0
        %2187 = vmatpush1.bf16.msra.mxu0 %v2164
        %2188 = vmatprep.subr.bf16.mxu0 0
        %2189 = vmatpush1.bf16.msra.mxu0 %v2163
        %2190 = vmatprep.subr.bf16.mxu0 0
        %2191 = vmatpush2.bf16.msra.mxu0 0
        %2192 = vmatprep.subr.bf16.mxu0 0
        %2193 = vmatpush2.bf16.msra.mxu0 0
        %2194 = vmatprep.subr.bf16.mxu0 0
        %2195 = vmatpush2.bf16.msra.mxu0 0
        %2196 = vmatprep.subr.bf16.mxu0 0
        %2197 = vmatpush2.bf16.msra.mxu0 0
        %2198 = vmatprep.subr.bf16.mxu0 0
        %2199 = vmatpush2.bf16.msra.mxu0 0
        %2200 = vmatprep.subr.bf16.mxu0 0
        %2201 = vmatpush2.bf16.msra.mxu0 0
        %2202 = vmatprep.subr.bf16.mxu0 0
        %2203 = vmatpush2.bf16.msra.mxu0 0
        %2204 = vmatprep.subr.bf16.mxu0 0
        %2205 = vmatpush2.bf16.msra.mxu0 0
        %2206 = vmatprep.mubr.bf16.mxu0 0
        %2207 = vmatmul.mubr.bf16.gmra.mxu0 %v2172
        %v2208 = vpop.f32.mrf.mxu0
        %v2209 = vadd.f32 %v2145, %v2208
        %v2210 = vpop.f32.mrf.mxu0
        %v2211 = vpop.f32.mrf.mxu0
        %v2212 = vpop.f32.mrf.mxu0
        %2213 = vdwg.mxu0
        %v2214 = vadd.f32 %v2058, %v2209
        %s2215 = scalar_lea.vmem %s12, 1
        %v2216 = vld [vmem:[%s2215] sm:$0x1]
        %s2217 = scalar_lea.vmem %s13, 1
        %v2218 = vld [vmem:[%s2217] sm:$0x1]
        %v2219 = vsel %vm616, %v2214, 0.0
        %2220 = vadd.xlane.f32.xlu0 %v2219
        %v2221 = vpop.xlane.xlu0 %2220
        %v2222 = vmul.f32 %v2221, 0.03125
        %v2223 = vsub.f32 %v2214, %v2222
        %v2224 = vmul.f32 %v2223, %v2223
        %v2225 = vsel %vm616, %v2224, 0.0
        %2226 = vadd.xlane.f32.xlu0 %v2225
        %v2227 = vpop.xlane.xlu0 %2226
        %v2228 = vmul.f32 %v2227, 0.03125
        %v2229 = vadd.f32 %v2228, 1e-05
        %v2230 = vrsqrt.pop %v2229
        %v2231 = vmul.f32 %v2223, %v2230
        %v2233 = vlaneseq
        %v2234 = vshrl.u32 %v2233, 7
        %v2235 = vsub.s32 0, %v2234
        %v2236 = vrot.slane %v2216, %v2235
        %v2238 = vmul.f32 %v2231, %v2236
        %v2240 = vlaneseq
        %v2241 = vshrl.u32 %v2240, 7
        %v2242 = vsub.s32 0, %v2241
        %v2243 = vrot.slane %v2218, %v2242
        %v2245 = vadd.f32 %v2238, %v2243
        %v2246 = vld [vmem:[%s14] sm:$0x1]
        %v2247 = vld [vmem:[%s15] sm:$0x1]
        %v2248 = vsel %vm616, %v2245, 0.0
        %2249 = vadd.xlane.f32.xlu0 %v2248
        %v2250 = vpop.xlane.xlu0 %2249
        %v2251 = vmul.f32 %v2250, 0.03125
        %v2252 = vsub.f32 %v2245, %v2251
        %v2253 = vmul.f32 %v2252, %v2252
        %v2254 = vsel %vm616, %v2253, 0.0
        %2255 = vadd.xlane.f32.xlu0 %v2254
        %v2256 = vpop.xlane.xlu0 %2255
        %v2257 = vmul.f32 %v2256, 0.03125
        %v2258 = vadd.f32 %v2257, 1e-05
        %v2259 = vrsqrt.pop %v2258
        %v2260 = vmul.f32 %v2252, %v2259
        %v2262 = vlaneseq
        %v2263 = vshrl.u32 %v2262, 7
        %v2264 = vsub.s32 0, %v2263
        %v2265 = vrot.slane %v2246, %v2264
        %v2267 = vmul.f32 %v2260, %v2265
        %v2269 = vlaneseq
        %v2270 = vshrl.u32 %v2269, 7
        %v2271 = vsub.s32 0, %v2270
        %v2272 = vrot.slane %v2247, %v2271
        %v2274 = vadd.f32 %v2267, %v2272
        %2275 = vst.msk [vmem:[%s582] sm:$0xff] %vm616, %v2274
        %s2276 = sand.u32 %s388, 1
        %s2277 = scalar_lea.sflag [#allocation5], %s2276
        %s2278 = sand.u32 %s388, 1
        %s2279 = smul.addr %s2278, 8
        %s2280 = scalar_lea.vmem [#allocation8], %s2279
        %s2281 = sand.u32 %s414, 1
        %s2282 = scalar_lea.sflag [#allocation10], %s2281
        %s2283 = sand.u32 %s414, 1
        %s2284 = smul.addr %s2283, 32
        %s2285 = scalar_lea.vmem [#allocation9], %s2284
        // Predicated region
        $region93: #{tpu_custom_call.1} parent=83 // pred_check
          %p2286 = pneg %p398
        $region94: #{tpu_custom_call.1} parent=83 // pred_check_branch
          %2288 = sbr.rel (%p2286) target = $region96
        $region95: #{tpu_custom_call.1} parent=83 // pred_region
          %s2290 = ssub.s32 128, 128
          %2291 = vsyncadd %s2277, %s2290
          %s2292 = smul.addr %s39, 128
          %s2293 = scalar_lea.hbm %s16, %s2292
          %s2295 = sshll.u32 %s2280, 4
          %s2296 = int_to_ptr.vmem [resolvable:$true] %s2295
          %2298 = dma.vmem_to_hbm [thread:$0]  %s2296, 128, %s2293, %s2277
        $region96: #{tpu_custom_call.1} parent=83 // pred_fallthru
          _
        // Predicated region
        $region97: #{tpu_custom_call.1} parent=83 // pred_check
          %p2299 = pneg %p424
        $region98: #{tpu_custom_call.1} parent=83 // pred_check_branch
          %2301 = sbr.rel (%p2299) target = $region100
        $region99: #{tpu_custom_call.1} parent=83 // pred_region
          #allocation12 [shape = 'u32[6]{0}', space=smem, size = 0x18, scoped, tag = 'DMA stride descriptor']
          %s2303 = ssub.s32 512, 512
          %2304 = vsyncadd %s2282, %s2303
          %s2305 = smul.addr %s39, 4
          %s2306 = smul.addr %s2305, 64
          %s2307 = scalar_lea.hbm %s17, %s2306
          %s2309 = sshll.u32 1, 14
          %s2310 = sxor.u32 4294967295, %s2309
          %s2313 = sshll.u32 7, 18
          %s2314 = sxor.u32 4294967295, %s2313
          %s2315 = sand.u32 0, %s2314
          %s2317 = sor.u32 %s2315, 0
          %s2318 = sshll.u32 %s2285, 4
          %s2319 = int_to_ptr.vmem [resolvable:$true] %s2318
          %2325 = sst [smem:[#allocation12]] 256
          %s2326 = scalar_lea.smem [#allocation12], 1
          %2327 = sst [smem:[%s2326]] 512
          %s2328 = scalar_lea.smem [#allocation12], 2
          %2329 = sst [smem:[%s2328]] 4
          %s2330 = scalar_lea.smem [#allocation12], 3
          %2331 = sst [smem:[%s2330]] 64
          %s2332 = scalar_lea.smem [#allocation12], 4
          %2333 = sst [smem:[%s2332]] 64
          %s2334 = scalar_lea.smem [#allocation12], 5
          %2335 = sst [smem:[%s2334]] 4
          %2337 = dma.general %s2319, 512, %s2307, %s2282, 131072, [#allocation12], %s2317, 0
        $region100: #{tpu_custom_call.1} parent=83 // pred_fallthru
          _
      $region84: #{tpu_custom_call.1} parent=5 // pred_fallthru
        _
      %p2338 = scmp.le.s32.totalorder 2, %s34
      // Predicated region
      $region101: #{tpu_custom_call.1} parent=5 // pred_check
        %p2339 = pneg %p2338
      $region102: #{tpu_custom_call.1} parent=5 // pred_check_branch
        %2341 = sbr.rel (%p2339) target = $region104
      $region103: #{tpu_custom_call.1} parent=5 // pred_region
        %s2342 = ssub.s32 %s34, 2
        // Predicated region
        $region105: #{tpu_custom_call.1} parent=103 // pred_check
          %p2343 = pneg %p404
        $region106: #{tpu_custom_call.1} parent=103 // pred_check_branch
          %2345 = sbr.rel (%p2343) target = $region108
        $region107: #{tpu_custom_call.1} parent=103 // pred_region
          %s2346 = sand.u32 %s389, 1
          %s2347 = scalar_lea.sflag [#allocation5], %s2346
          %s2348 = sand.u32 %s389, 1
          %s2349 = smul.addr %s2348, 8
          %s2350 = scalar_lea.vmem [#allocation8], %s2349
          %2351 = dma.done %s2347, 128
        $region108: #{tpu_custom_call.1} parent=103 // pred_fallthru
          _
        // Predicated region
        $region109: #{tpu_custom_call.1} parent=103 // pred_check
          %p2352 = pneg %p430
        $region110: #{tpu_custom_call.1} parent=103 // pred_check_branch
          %2354 = sbr.rel (%p2352) target = $region112
        $region111: #{tpu_custom_call.1} parent=103 // pred_region
          %s2355 = sand.u32 %s415, 1
          %s2356 = scalar_lea.sflag [#allocation10], %s2355
          %s2357 = sand.u32 %s415, 1
          %s2358 = smul.addr %s2357, 32
          %s2359 = scalar_lea.vmem [#allocation9], %s2358
          %2360 = dma.done %s2356, 512
        $region112: #{tpu_custom_call.1} parent=103 // pred_fallthru
          _
      $region104: #{tpu_custom_call.1} parent=5 // pred_fallthru
        _
    $region6: #{tpu_custom_call.1} parent=1 // loop_footer
      %s38 = sadd.s32 1, %s34
    $region7: #{tpu_custom_call.1} parent=1 // loop_footer_branch
      %33 = sbr.rel target = $region3
    $region8: #{tpu_custom_call.1} parent=1 // loop_exit
      _
    %2361 = vsyncpa [#allocation4], 1
    %s2362 = scalar_lea.sflag [#allocation4], 1
    %2363 = vsyncpa %s2362, 1
    %2364 = vsyncpa [#allocation7], 1
    %2365 = vsyncpa [#allocation5], 1
    %s2366 = scalar_lea.sflag [#allocation5], 1
    %2367 = vsyncpa %s2366, 1
    %2368 = vsyncpa [#allocation10], 1
    %s2369 = scalar_lea.sflag [#allocation10], 1
    %2370 = vsyncpa %s2369, 1

</llo_original>
